<compile_context>
chip_gen: v6e
topology: v6e:2x2x1
jax: 0.10.0
libtpu: 0.0.40
codegen_flags: <defaults>
</compile_context>

<pallas_src>
import functools

import numpy as np
import jax
import jax.numpy as jnp
from jax.experimental import pallas as pl
from jax.experimental.pallas import tpu as pltpu


def _round_up(x, m):
    return (x + m - 1) // m * m


def _avg_pool(src_f32, vp_ref, H, W, stride):
    """AvgPool2d(stride) on a spatially-flattened (H*W, C) f32 tensor, matrix-free."""
    Ho, Wo = H // stride, W // stride
    C = src_f32.shape[1]
    # vertical pooling: relabel reshape + aligned slices + adds
    t = src_f32.reshape(Ho, stride * W, C)
    vsum = t[:, 0:W, :]
    for di in range(1, stride):
        vsum = vsum + t[:, di * W:(di + 1) * W, :]
    vp_ref[...] = vsum.reshape(Ho * W, C)
    # horizontal pooling: sublane-strided reads
    hsum = vp_ref[pl.ds(0, Ho * Wo, stride=stride), :]
    for dj in range(1, stride):
        hsum = hsum + vp_ref[pl.ds(dj, Ho * Wo, stride=stride), :]
    return hsum * (1.0 / (stride * stride))


def _bottleneck_kernel(x_ref, w1_ref, b1_ref, w2_ref, b2_ref, w3_ref, b3_ref,
                       *rest, H, W, stride, planes_p, has_ds):
    if has_ds:
        wds_ref, bds_ref, o_ref, conv_ref, tap_ref, *pool_scratch = rest
    else:
        o_ref, conv_ref, tap_ref, *pool_scratch = rest

    f32 = jnp.float32
    bf16 = jnp.bfloat16
    HW = H * W
    pad_rows = _round_up(W + 1, 8)          # zero border above/below y1 inside conv_ref

    xn = x_ref[0]                                               # (HW, Cin_p) bf16

    # ---- conv1 (1x1) [BN scale folded into w1] + bias + relu ----------------
    y1 = jnp.dot(xn, w1_ref[...], preferred_element_type=f32)
    y1 = jnp.maximum(y1 + b1_ref[...], 0.0)                     # (HW, P) f32

    # ---- conv2 (3x3, pad=1): zero-bordered scratch + 9 shifted windows ------
    # conv_ref rows: [0, pad_rows) zeros | [pad_rows, pad_rows+HW) = y1 | trailing zeros.
    conv_ref[pl.ds(0, pad_rows), :] = jnp.zeros((pad_rows, planes_p), f32)
    conv_ref[pl.ds(pad_rows + HW, pad_rows), :] = jnp.zeros((pad_rows, planes_p), f32)
    conv_ref[pl.ds(pad_rows, HW), :] = y1

    col = jax.lax.broadcasted_iota(jnp.int32, (HW, 1), 0) % W
    not_first_col = col >= 1                                    # valid for dx = -1
    not_last_col = col < (W - 1)                                # valid for dx = +1

    # Write each tap straight into its 128-lane slab of the (HW, 9P) bf16 scratch
    # (no tap list / concat materialization); masks applied after the bf16 cast.
    k = 0
    for dy in (-1, 0, 1):
        for dx in (-1, 0, 1):
            if dy == 0 and dx == 0:
                win = y1.astype(bf16)
            else:
                # window[i] = y1[i + dy*W + dx] (zero when the source row leaves the image)
                win = conv_ref[pl.ds(pad_rows + dy * W + dx, HW), :].astype(bf16)
            if dx == 1:
                win = jnp.where(not_last_col, win, 0.0)
            elif dx == -1:
                win = jnp.where(not_first_col, win, 0.0)
            tap_ref[:, k * planes_p:(k + 1) * planes_p] = win
            k += 1

    y2 = jnp.dot(tap_ref[...], w2_ref[...], preferred_element_type=f32)
    y2 = jnp.maximum(y2 + b2_ref[...], 0.0)                     # (HW, P) f32

    # ---- AvgPool2d(stride), separately per branch (no concat copy) ----------
    if stride > 1:
        vp_main_ref, vp_id_ref = pool_scratch
        y2p = _avg_pool(y2, vp_main_ref, H, W, stride)          # (HWo, P) f32
    else:
        y2p = y2

    # ---- conv3 (1x1) [BN scale folded] + bias --------------------------------
    y3 = jnp.dot(y2p.astype(bf16), w3_ref[...], preferred_element_type=f32)
    y3 = y3 + b3_ref[...]                                       # (HWo, 4P)

    # ---- identity / downsample branch + residual add + relu ------------------
    if has_ds:
        if stride > 1:
            xp_bf = _avg_pool(xn.astype(f32), vp_id_ref, H, W, stride).astype(bf16)
        else:
            xp_bf = xn
        ident = jnp.dot(xp_bf, wds_ref[...], preferred_element_type=f32) + bds_ref[...]
    else:
        # pure passthrough (stride == 1, Cin == 4*planes): no matmul, no extra weights.
        ident = xn.astype(f32)

    o_ref[0] = jnp.maximum(y3 + ident, 0.0).astype(o_ref.dtype)


def bottleneck_forward(x_nchw, params, stride):
    N, Cin, H, W = x_nchw.shape
    planes = params["conv1_w"].shape[0]
    cout = planes * 4
    has_ds = params.get("ds_conv_w") is not None

    if stride > 1:
        assert H % stride == 0 and W % stride == 0, "spatial dims must be divisible by stride"
    if not has_ds:
        # PyTorch only omits the downsample branch when stride == 1 and inplanes == planes*4.
        assert stride == 1 and Cin == cout, \
            "missing downsample branch requires stride == 1 and inplanes == planes * 4"

    Ho, Wo = H // stride, W // stride
    HW, HWo = H * W, Ho * Wo

    cin_p = _round_up(Cin, 128)
    p_p = _round_up(planes, 128)
    cout_p = _round_up(cout, 128)

    f32, bf16 = jnp.float32, jnp.bfloat16

    # activations: NCHW -> channels-last, spatially flattened, channel-padded, bf16
    x = jnp.transpose(x_nchw, (0, 2, 3, 1)).reshape(N, HW, Cin).astype(f32)
    x = jnp.pad(x, ((0, 0), (0, 0), (0, cin_p - Cin))).astype(bf16)

    def pad2(w, r, c):
        return jnp.zeros((r, c), f32).at[: w.shape[0], : w.shape[1]].set(w)

    def fold_bn(bn, eps=1e-5):
        gamma, beta, mean, var = bn
        scale = gamma / jnp.sqrt(var + eps)
        bias = beta - mean * scale
        return scale, bias

    def pad_bias(b, c_pad):
        return jnp.zeros((1, c_pad), f32).at[0, : b.shape[0]].set(b)

    # BN scale folded into the conv weight output columns; kernel only adds the bias.
    s1, bb1 = fold_bn(params["bn1"])
    w1 = pad2(params["conv1_w"][:, :, 0, 0].T * s1[None, :], cin_p, p_p).astype(bf16)
    b1 = pad_bias(bb1, p_p)

    s2, bb2 = fold_bn(params["bn2"])
    w2 = jnp.transpose(params["conv2_w"], (2, 3, 1, 0)).reshape(9, planes, planes) * s2[None, None, :]
    w2 = jnp.zeros((9, p_p, p_p), f32).at[:, :planes, :planes].set(w2)
    w2 = w2.reshape(9 * p_p, p_p).astype(bf16)                                   # (9*P_p, P_p)
    b2 = pad_bias(bb2, p_p)

    s3, bb3 = fold_bn(params["bn3"])
    w3 = pad2(params["conv3_w"][:, :, 0, 0].T * s3[None, :], p_p, cout_p).astype(bf16)
    b3 = pad_bias(bb3, cout_p)

    if has_ds:
        sds, bbds = fold_bn(params["ds_bn"])
        wds = pad2(params["ds_conv_w"][:, :, 0, 0].T * sds[None, :], cin_p, cout_p).astype(bf16)
        bds = pad_bias(bbds, cout_p)

    kernel = functools.partial(_bottleneck_kernel, H=H, W=W, stride=stride,
                               planes_p=p_p, has_ds=has_ds)

    pad_rows = _round_up(W + 1, 8)
    scratch_shapes = [
        pltpu.VMEM((HW + 2 * pad_rows, p_p), f32),          # conv2 zero-bordered scratch
        pltpu.VMEM((HW, 9 * p_p), bf16),                    # conv2 tap slab (no concat)
    ]
    if stride > 1:
        scratch_shapes += [
            pltpu.VMEM((Ho * W, p_p), f32),                 # pooling scratch (main branch)
            pltpu.VMEM((Ho * W, cin_p), f32),               # pooling scratch (identity branch)
        ]

    const2 = lambda n: (0, 0)
    in_specs = [
        pl.BlockSpec((1, HW, cin_p), lambda n: (n, 0, 0)),  # x (streams per batch elem)
        pl.BlockSpec((cin_p, p_p), const2),                 # w1 (BN1 scale folded)
        pl.BlockSpec((1, p_p), const2),                     # b1
        pl.BlockSpec((9 * p_p, p_p), const2),               # w2 (9 taps fused along K)
        pl.BlockSpec((1, p_p), const2),                     # b2
        pl.BlockSpec((p_p, cout_p), const2),                # w3
        pl.BlockSpec((1, cout_p), const2),                  # b3
    ]
    args = [x, w1, b1, w2, b2, w3, b3]
    if has_ds:
        in_specs += [
            pl.BlockSpec((cin_p, cout_p), const2),          # wds
            pl.BlockSpec((1, cout_p), const2),              # bds
        ]
        args += [wds, bds]

    grid_spec = pltpu.PrefetchScalarGridSpec(
        num_scalar_prefetch=0,
        grid=(N,),
        in_specs=in_specs,
        out_specs=pl.BlockSpec((1, HWo, cout_p), lambda n: (n, 0, 0)),
        scratch_shapes=scratch_shapes,
    )

    # ---- cost estimate + explicit VMEM budget -------------------------------
    flops = 2 * N * (HW * cin_p * p_p + HW * 9 * p_p * p_p + HWo * p_p * cout_p
                     + (HWo * cin_p * cout_p if has_ds else 0))
    weight_bytes = (cin_p * p_p + 9 * p_p * p_p + p_p * cout_p
                    + (cin_p * cout_p if has_ds else 0)) * 2
    bias_bytes = (3 + (1 if has_ds else 0)) * cout_p * 4
    bytes_accessed = N * HW * cin_p * 2 + N * HWo * cout_p * 2 + weight_bytes + bias_bytes

    vmem_est = (2 * HW * cin_p * 2              # x block, double-buffered, bf16
                + 2 * HWo * cout_p * 2          # out block, double-buffered, bf16
                + (HW + 2 * pad_rows) * p_p * 4  # conv2 scratch (f32)
                + HW * 9 * p_p * 2              # tap slab (bf16)
                + 2 * (weight_bytes + bias_bytes))
    if stride > 1:
        vmem_est += Ho * W * (p_p + cin_p) * 4
    # headroom, floor at 32 MiB, cap at 64 MiB (physical VMEM on v7x; safe on v5e/v6e too)
    vmem_limit = min(max(int(vmem_est * 1.4) + (2 << 20), 32 << 20), 64 << 20)

    out = pl.pallas_call(
        kernel,
        out_shape=jax.ShapeDtypeStruct((N, HWo, cout_p), bf16),
        grid_spec=grid_spec,
        compiler_params=pltpu.CompilerParams(
            dimension_semantics=("parallel",),
            vmem_limit_bytes=vmem_limit,
        ),
        cost_estimate=pl.CostEstimate(flops=flops, transcendentals=0,
                                      bytes_accessed=bytes_accessed),
    )(*args)

    out = out[:, :, :cout].reshape(N, Ho, Wo, cout)
    return jnp.transpose(out, (0, 3, 1, 2))                      # back to NCHW (bf16)


def bottleneck_reference(x, params, stride):
    """Pure-JAX (lax.conv) reference for correctness check."""
    def conv(x, w, pad):
        return jax.lax.conv_general_dilated(
            x, w, window_strides=(1, 1), padding=[(pad, pad), (pad, pad)],
            dimension_numbers=("NCHW", "OIHW", "NCHW"))

    def bn(x, p, eps=1e-5):
        gamma, beta, mean, var = p
        scale = gamma / jnp.sqrt(var + eps)
        bias = beta - mean * scale
        return x * scale[None, :, None, None] + bias[None, :, None, None]

    def avgpool(x, s):
        if s <= 1:
            return x
        y = jax.lax.reduce_window(x, 0.0, jax.lax.add, (1, 1, s, s), (1, 1, s, s), "VALID")
        return y / float(s * s)

    out = jax.nn.relu(bn(conv(x, params["conv1_w"], 0), params["bn1"]))
    out = jax.nn.relu(bn(conv(out, params["conv2_w"], 1), params["bn2"]))
    out = avgpool(out, stride)
    out = bn(conv(out, params["conv3_w"], 0), params["bn3"])
    if params.get("ds_conv_w") is not None:
        identity = bn(conv(avgpool(x, stride), params["ds_conv_w"], 0), params["ds_bn"])
    else:
        identity = x
    return jax.nn.relu(out + identity)


if __name__ == "__main__":
    N, inplanes, planes, H, W, stride = 2, 4, 4, 16, 16, 2
    cout = planes * 4
    key = jax.random.PRNGKey(0)
    ks = jax.random.split(key, 16)

    def bn_params(k, c):
        k1, k2, k3, k4 = jax.random.split(k, 4)
        gamma = 1.0 + 0.1 * jax.random.normal(k1, (c,), jnp.float32)
        beta = 0.1 * jax.random.normal(k2, (c,), jnp.float32)
        mean = 0.1 * jax.random.normal(k3, (c,), jnp.float32)
        var = 0.5 + jax.random.uniform(k4, (c,), jnp.float32)
        return (gamma, beta, mean, var)

    params = {
        "conv1_w": 0.2 * jax.random.normal(ks[0], (planes, inplanes, 1, 1), jnp.float32),
        "bn1": bn_params(ks[1], planes),
        "conv2_w": 0.1 * jax.random.normal(ks[2], (planes, planes, 3, 3), jnp.float32),
        "bn2": bn_params(ks[3], planes),
        "conv3_w": 0.2 * jax.random.normal(ks[4], (cout, planes, 1, 1), jnp.float32),
        "bn3": bn_params(ks[5], cout),
        # downsample is present because stride > 1 and inplanes != planes * 4
        "ds_conv_w": 0.2 * jax.random.normal(ks[6], (cout, inplanes, 1, 1), jnp.float32),
        "ds_bn": bn_params(ks[7], cout),
    }
    x = jax.random.normal(ks[8], (N, inplanes, H, W), jnp.float32)

    out = bottleneck_forward(x, params, stride)
    out = jax.block_until_ready(out)

    ref = bottleneck_reference(x, params, stride)
    assert out.shape == (N, cout, H // stride, W // stride), out.shape
    # bf16 matmul inputs / bf16 output with f32 accumulation -> loosened tolerance vs pure f32
    np.testing.assert_allclose(np.asarray(out.astype(jnp.float32)), np.asarray(ref),
                               rtol=3e-2, atol=3e-2)
    print("KERNEL_OK")
</pallas_src>

<mosaic_0001>
module attributes {stable_mosaic.version = 11 : i64} {
  func.func @_bottleneck_kernel(%arg0: i32, %arg1: memref<1x256x128xbf16, #tpu.memory_space<vmem>>, %arg2: memref<128x128xbf16, #tpu.memory_space<vmem>>, %arg3: memref<1x128xf32, #tpu.memory_space<vmem>>, %arg4: memref<1152x128xbf16, #tpu.memory_space<vmem>>, %arg5: memref<1x128xf32, #tpu.memory_space<vmem>>, %arg6: memref<128x128xbf16, #tpu.memory_space<vmem>>, %arg7: memref<1x128xf32, #tpu.memory_space<vmem>>, %arg8: memref<128x128xbf16, #tpu.memory_space<vmem>>, %arg9: memref<1x128xf32, #tpu.memory_space<vmem>>, %arg10: memref<1x64x128xbf16, #tpu.memory_space<vmem>>, %arg11: memref<304x128xf32, #tpu.memory_space<vmem>>, %arg12: memref<256x1152xbf16, #tpu.memory_space<vmem>>, %arg13: memref<128x128xf32, #tpu.memory_space<vmem>>, %arg14: memref<128x128xf32, #tpu.memory_space<vmem>>) attributes {dimension_semantics = [#tpu.dimension_semantics<parallel>], iteration_bounds = array<i64: 2>, scalar_prefetch = 0 : i64, scratch_operands = 4 : i64, tpu.core_type = #tpu.core_type<tc>, window_params = [{transform_indices = @transform_0, window_bounds = array<i64: 1, 256, 128>}, {pipeline_mode = #tpu.pipeline_mode<synchronous>, transform_indices = @transform_1, window_bounds = array<i64: 128, 128>}, {pipeline_mode = #tpu.pipeline_mode<synchronous>, transform_indices = @transform_2, window_bounds = array<i64: 1, 128>}, {pipeline_mode = #tpu.pipeline_mode<synchronous>, transform_indices = @transform_3, window_bounds = array<i64: 1152, 128>}, {pipeline_mode = #tpu.pipeline_mode<synchronous>, transform_indices = @transform_4, window_bounds = array<i64: 1, 128>}, {pipeline_mode = #tpu.pipeline_mode<synchronous>, transform_indices = @transform_5, window_bounds = array<i64: 128, 128>}, {pipeline_mode = #tpu.pipeline_mode<synchronous>, transform_indices = @transform_6, window_bounds = array<i64: 1, 128>}, {pipeline_mode = #tpu.pipeline_mode<synchronous>, transform_indices = @transform_7, window_bounds = array<i64: 128, 128>}, {pipeline_mode = #tpu.pipeline_mode<synchronous>, transform_indices = @transform_8, window_bounds = array<i64: 1, 128>}, {transform_indices = @transform_9, window_bounds = array<i64: 1, 64, 128>}]} {
    %c0 = arith.constant 0 : index
    %c0_0 = arith.constant 0 : index
    %c0_1 = arith.constant 0 : index
    %0 = vector.load %arg1[%c0, %c0_0, %c0_1] : memref<1x256x128xbf16, #tpu.memory_space<vmem>>, vector<1x256x128xbf16>
    %1 = vector.shape_cast %0 : vector<1x256x128xbf16> to vector<256x128xbf16>
    %c0_2 = arith.constant 0 : index
    %c0_3 = arith.constant 0 : index
    %2 = vector.load %arg2[%c0_2, %c0_3] : memref<128x128xbf16, #tpu.memory_space<vmem>>, vector<128x128xbf16>
    %cst = arith.constant dense<0.000000e+00> : vector<256x128xf32>
    %3 = tpu.matmul %1, %2, %cst {dimension_numbers = #tpu.dot_dimension_numbers<[1], [0], [0], [1], [0, 0, 1, 1], [], []>} : vector<256x128xbf16>, vector<128x128xbf16>, vector<256x128xf32> -> vector<256x128xf32>
    %c0_4 = arith.constant 0 : index
    %c0_5 = arith.constant 0 : index
    %4 = vector.load %arg3[%c0_4, %c0_5] : memref<1x128xf32, #tpu.memory_space<vmem>>, vector<1x128xf32>
    %5 = vector.broadcast %4 : vector<1x128xf32> to vector<256x128xf32>
    %6 = arith.addf %3, %5 : vector<256x128xf32>
    %cst_6 = arith.constant 0.000000e+00 : f32
    %7 = vector.broadcast %cst_6 : f32 to vector<256x128xf32>
    %8 = arith.maximumf %6, %7 : vector<256x128xf32>
    %cst_7 = arith.constant 0.000000e+00 : f32
    %9 = vector.broadcast %cst_7 : f32 to vector<24x128xf32>
    %c0_8 = arith.constant 0 : index
    %c0_9 = arith.constant 0 : index
    %10 = vector.load %arg11[%c0_8, %c0_9] : memref<304x128xf32, #tpu.memory_space<vmem>>, vector<24x128xf32>
    tpu.vector_store %arg11[%c0_8, %c0_9], %9 {strides = array<i32>} : memref<304x128xf32, #tpu.memory_space<vmem>>, vector<24x128xf32>,
    %cst_10 = arith.constant 0.000000e+00 : f32
    %11 = vector.broadcast %cst_10 : f32 to vector<24x128xf32>
    %c280 = arith.constant 280 : index
    %c0_11 = arith.constant 0 : index
    %12 = vector.load %arg11[%c280, %c0_11] : memref<304x128xf32, #tpu.memory_space<vmem>>, vector<24x128xf32>
    tpu.vector_store %arg11[%c280, %c0_11], %11 {strides = array<i32>} : memref<304x128xf32, #tpu.memory_space<vmem>>, vector<24x128xf32>,
    %c24 = arith.constant 24 : index
    %c0_12 = arith.constant 0 : index
    %13 = vector.load %arg11[%c24, %c0_12] : memref<304x128xf32, #tpu.memory_space<vmem>>, vector<256x128xf32>
    tpu.vector_store %arg11[%c24, %c0_12], %8 {strides = array<i32>} : memref<304x128xf32, #tpu.memory_space<vmem>>, vector<256x128xf32>,
    %14 = tpu.iota {dimensions = array<i32: 0>} : vector<256x1xi32>
    %c16_i32 = arith.constant 16 : i32
    %c0_i32 = arith.constant 0 : i32
    %15 = arith.cmpi eq, %c16_i32, %c0_i32 : i32
    %c1_i32 = arith.constant 1 : i32
    %16 = arith.select %15, %c1_i32, %c16_i32 : i32
    %17 = vector.broadcast %16 : i32 to vector<256x1xi32>
    %18 = arith.remsi %14, %17 : vector<256x1xi32>
    %c0_i32_13 = arith.constant 0 : i32
    %19 = vector.broadcast %c0_i32_13 : i32 to vector<256x1xi32>
    %20 = arith.cmpi ne, %18, %19 : vector<256x1xi32>
    %c0_i32_14 = arith.constant 0 : i32
    %21 = vector.broadcast %c0_i32_14 : i32 to vector<256x1xi32>
    %22 = arith.cmpi slt, %18, %21 : vector<256x1xi32>
    %c0_i32_15 = arith.constant 0 : i32
    %23 = arith.cmpi slt, %16, %c0_i32_15 : i32
    %24 = vector.broadcast %23 : i1 to vector<256x1xi1>
    %25 = vector.broadcast %24 : vector<256x1xi1> to vector<256x1xi1>
    %26 = arith.xori %22, %25 : vector<256x1xi1>
    %27 = arith.andi %26, %20 : vector<256x1xi1>
    %28 = vector.broadcast %16 : i32 to vector<256x1xi32>
    %29 = arith.addi %18, %28 : vector<256x1xi32>
    %30 = arith.select %27, %29, %18 : vector<256x1xi1>, vector<256x1xi32>
    %c1_i32_16 = arith.constant 1 : i32
    %31 = vector.broadcast %c1_i32_16 : i32 to vector<256x1xi32>
    %32 = arith.cmpi sge, %30, %31 : vector<256x1xi32>
    %c15_i32 = arith.constant 15 : i32
    %33 = vector.broadcast %c15_i32 : i32 to vector<256x1xi32>
    %34 = arith.cmpi slt, %30, %33 : vector<256x1xi32>
    %c7 = arith.constant 7 : index
    %c0_17 = arith.constant 0 : index
    %35 = vector.load %arg11[%c7, %c0_17] : memref<304x128xf32, #tpu.memory_space<vmem>>, vector<256x128xf32>
    %36 = arith.truncf %35 : vector<256x128xf32> to vector<256x128xbf16>
    %cst_18 = arith.constant 0.000000e+00 : f32
    %37 = arith.truncf %cst_18 : f32 to bf16
    %38 = vector.shape_cast %32 : vector<256x1xi1> to vector<256x1xi1>
    %39 = vector.broadcast %38 : vector<256x1xi1> to vector<256x128xi1>
    %40 = vector.broadcast %37 : bf16 to vector<256x128xbf16>
    %41 = arith.select %39, %36, %40 : vector<256x128xi1>, vector<256x128xbf16>
    %c0_19 = arith.constant 0 : index
    %c0_20 = arith.constant 0 : index
    %42 = vector.load %arg12[%c0_19, %c0_20] : memref<256x1152xbf16, #tpu.memory_space<vmem>>, vector<256x128xbf16>
    tpu.vector_store %arg12[%c0_19, %c0_20], %41 {strides = array<i32>} : memref<256x1152xbf16, #tpu.memory_space<vmem>>, vector<256x128xbf16>,
    %c8 = arith.constant 8 : index
    %c0_21 = arith.constant 0 : index
    %43 = vector.load %arg11[%c8, %c0_21] : memref<304x128xf32, #tpu.memory_space<vmem>>, vector<256x128xf32>
    %44 = arith.truncf %43 : vector<256x128xf32> to vector<256x128xbf16>
    %c0_22 = arith.constant 0 : index
    %c128 = arith.constant 128 : index
    %45 = vector.load %arg12[%c0_22, %c128] : memref<256x1152xbf16, #tpu.memory_space<vmem>>, vector<256x128xbf16>
    tpu.vector_store %arg12[%c0_22, %c128], %44 {strides = array<i32>} : memref<256x1152xbf16, #tpu.memory_space<vmem>>, vector<256x128xbf16>,
    %c9 = arith.constant 9 : index
    %c0_23 = arith.constant 0 : index
    %46 = vector.load %arg11[%c9, %c0_23] : memref<304x128xf32, #tpu.memory_space<vmem>>, vector<256x128xf32>
    %47 = arith.truncf %46 : vector<256x128xf32> to vector<256x128xbf16>
    %cst_24 = arith.constant 0.000000e+00 : f32
    %48 = arith.truncf %cst_24 : f32 to bf16
    %49 = vector.shape_cast %34 : vector<256x1xi1> to vector<256x1xi1>
    %50 = vector.broadcast %49 : vector<256x1xi1> to vector<256x128xi1>
    %51 = vector.broadcast %48 : bf16 to vector<256x128xbf16>
    %52 = arith.select %50, %47, %51 : vector<256x128xi1>, vector<256x128xbf16>
    %c0_25 = arith.constant 0 : index
    %c256 = arith.constant 256 : index
    %53 = vector.load %arg12[%c0_25, %c256] : memref<256x1152xbf16, #tpu.memory_space<vmem>>, vector<256x128xbf16>
    tpu.vector_store %arg12[%c0_25, %c256], %52 {strides = array<i32>} : memref<256x1152xbf16, #tpu.memory_space<vmem>>, vector<256x128xbf16>,
    %c23 = arith.constant 23 : index
    %c0_26 = arith.constant 0 : index
    %54 = vector.load %arg11[%c23, %c0_26] : memref<304x128xf32, #tpu.memory_space<vmem>>, vector<256x128xf32>
    %55 = arith.truncf %54 : vector<256x128xf32> to vector<256x128xbf16>
    %cst_27 = arith.constant 0.000000e+00 : f32
    %56 = arith.truncf %cst_27 : f32 to bf16
    %57 = vector.shape_cast %32 : vector<256x1xi1> to vector<256x1xi1>
    %58 = vector.broadcast %57 : vector<256x1xi1> to vector<256x128xi1>
    %59 = vector.broadcast %56 : bf16 to vector<256x128xbf16>
    %60 = arith.select %58, %55, %59 : vector<256x128xi1>, vector<256x128xbf16>
    %c0_28 = arith.constant 0 : index
    %c384 = arith.constant 384 : index
    %61 = vector.load %arg12[%c0_28, %c384] : memref<256x1152xbf16, #tpu.memory_space<vmem>>, vector<256x128xbf16>
    tpu.vector_store %arg12[%c0_28, %c384], %60 {strides = array<i32>} : memref<256x1152xbf16, #tpu.memory_space<vmem>>, vector<256x128xbf16>,
    %62 = arith.truncf %8 : vector<256x128xf32> to vector<256x128xbf16>
    %c0_29 = arith.constant 0 : index
    %c512 = arith.constant 512 : index
    %63 = vector.load %arg12[%c0_29, %c512] : memref<256x1152xbf16, #tpu.memory_space<vmem>>, vector<256x128xbf16>
    tpu.vector_store %arg12[%c0_29, %c512], %62 {strides = array<i32>} : memref<256x1152xbf16, #tpu.memory_space<vmem>>, vector<256x128xbf16>,
    %c25 = arith.constant 25 : index
    %c0_30 = arith.constant 0 : index
    %64 = vector.load %arg11[%c25, %c0_30] : memref<304x128xf32, #tpu.memory_space<vmem>>, vector<256x128xf32>
    %65 = arith.truncf %64 : vector<256x128xf32> to vector<256x128xbf16>
    %cst_31 = arith.constant 0.000000e+00 : f32
    %66 = arith.truncf %cst_31 : f32 to bf16
    %67 = vector.shape_cast %34 : vector<256x1xi1> to vector<256x1xi1>
    %68 = vector.broadcast %67 : vector<256x1xi1> to vector<256x128xi1>
    %69 = vector.broadcast %66 : bf16 to vector<256x128xbf16>
    %70 = arith.select %68, %65, %69 : vector<256x128xi1>, vector<256x128xbf16>
    %c0_32 = arith.constant 0 : index
    %c640 = arith.constant 640 : index
    %71 = vector.load %arg12[%c0_32, %c640] : memref<256x1152xbf16, #tpu.memory_space<vmem>>, vector<256x128xbf16>
    tpu.vector_store %arg12[%c0_32, %c640], %70 {strides = array<i32>} : memref<256x1152xbf16, #tpu.memory_space<vmem>>, vector<256x128xbf16>,
    %c39 = arith.constant 39 : index
    %c0_33 = arith.constant 0 : index
    %72 = vector.load %arg11[%c39, %c0_33] : memref<304x128xf32, #tpu.memory_space<vmem>>, vector<256x128xf32>
    %73 = arith.truncf %72 : vector<256x128xf32> to vector<256x128xbf16>
    %cst_34 = arith.constant 0.000000e+00 : f32
    %74 = arith.truncf %cst_34 : f32 to bf16
    %75 = vector.shape_cast %32 : vector<256x1xi1> to vector<256x1xi1>
    %76 = vector.broadcast %75 : vector<256x1xi1> to vector<256x128xi1>
    %77 = vector.broadcast %74 : bf16 to vector<256x128xbf16>
    %78 = arith.select %76, %73, %77 : vector<256x128xi1>, vector<256x128xbf16>
    %c0_35 = arith.constant 0 : index
    %c768 = arith.constant 768 : index
    %79 = vector.load %arg12[%c0_35, %c768] : memref<256x1152xbf16, #tpu.memory_space<vmem>>, vector<256x128xbf16>
    tpu.vector_store %arg12[%c0_35, %c768], %78 {strides = array<i32>} : memref<256x1152xbf16, #tpu.memory_space<vmem>>, vector<256x128xbf16>,
    %c40 = arith.constant 40 : index
    %c0_36 = arith.constant 0 : index
    %80 = vector.load %arg11[%c40, %c0_36] : memref<304x128xf32, #tpu.memory_space<vmem>>, vector<256x128xf32>
    %81 = arith.truncf %80 : vector<256x128xf32> to vector<256x128xbf16>
    %c0_37 = arith.constant 0 : index
    %c896 = arith.constant 896 : index
    %82 = vector.load %arg12[%c0_37, %c896] : memref<256x1152xbf16, #tpu.memory_space<vmem>>, vector<256x128xbf16>
    tpu.vector_store %arg12[%c0_37, %c896], %81 {strides = array<i32>} : memref<256x1152xbf16, #tpu.memory_space<vmem>>, vector<256x128xbf16>,
    %c41 = arith.constant 41 : index
    %c0_38 = arith.constant 0 : index
    %83 = vector.load %arg11[%c41, %c0_38] : memref<304x128xf32, #tpu.memory_space<vmem>>, vector<256x128xf32>
    %84 = arith.truncf %83 : vector<256x128xf32> to vector<256x128xbf16>
    %cst_39 = arith.constant 0.000000e+00 : f32
    %85 = arith.truncf %cst_39 : f32 to bf16
    %86 = vector.shape_cast %34 : vector<256x1xi1> to vector<256x1xi1>
    %87 = vector.broadcast %86 : vector<256x1xi1> to vector<256x128xi1>
    %88 = vector.broadcast %85 : bf16 to vector<256x128xbf16>
    %89 = arith.select %87, %84, %88 : vector<256x128xi1>, vector<256x128xbf16>
    %c0_40 = arith.constant 0 : index
    %c1024 = arith.constant 1024 : index
    %90 = vector.load %arg12[%c0_40, %c1024] : memref<256x1152xbf16, #tpu.memory_space<vmem>>, vector<256x128xbf16>
    tpu.vector_store %arg12[%c0_40, %c1024], %89 {strides = array<i32>} : memref<256x1152xbf16, #tpu.memory_space<vmem>>, vector<256x128xbf16>,
    %c0_41 = arith.constant 0 : index
    %c0_42 = arith.constant 0 : index
    %91 = vector.load %arg12[%c0_41, %c0_42] : memref<256x1152xbf16, #tpu.memory_space<vmem>>, vector<256x1152xbf16>
    %c0_43 = arith.constant 0 : index
    %c0_44 = arith.constant 0 : index
    %92 = vector.load %arg4[%c0_43, %c0_44] : memref<1152x128xbf16, #tpu.memory_space<vmem>>, vector<1152x128xbf16>
    %cst_45 = arith.constant dense<0.000000e+00> : vector<256x128xf32>
    %93 = tpu.matmul %91, %92, %cst_45 {dimension_numbers = #tpu.dot_dimension_numbers<[1], [0], [0], [1], [0, 0, 1, 1], [], []>} : vector<256x1152xbf16>, vector<1152x128xbf16>, vector<256x128xf32> -> vector<256x128xf32>
    %c0_46 = arith.constant 0 : index
    %c0_47 = arith.constant 0 : index
    %94 = vector.load %arg5[%c0_46, %c0_47] : memref<1x128xf32, #tpu.memory_space<vmem>>, vector<1x128xf32>
    %95 = vector.broadcast %94 : vector<1x128xf32> to vector<256x128xf32>
    %96 = arith.addf %93, %95 : vector<256x128xf32>
    %cst_48 = arith.constant 0.000000e+00 : f32
    %97 = vector.broadcast %cst_48 : f32 to vector<256x128xf32>
    %98 = arith.maximumf %96, %97 : vector<256x128xf32>
    %99 = vector.shape_cast %98 : vector<256x128xf32> to vector<8x32x128xf32>
    %100 = vector.extract_strided_slice %99 {offsets = [0, 0, 0], sizes = [8, 16, 128], strides = [1, 1, 1]} : vector<8x32x128xf32> to vector<8x16x128xf32>
    %101 = vector.extract_strided_slice %99 {offsets = [0, 16, 0], sizes = [8, 16, 128], strides = [1, 1, 1]} : vector<8x32x128xf32> to vector<8x16x128xf32>
    %102 = arith.addf %100, %101 : vector<8x16x128xf32>
    %103 = vector.shape_cast %102 : vector<8x16x128xf32> to vector<128x128xf32>
    %c0_49 = arith.constant 0 : index
    %c0_50 = arith.constant 0 : index
    %104 = vector.load %arg13[%c0_49, %c0_50] : memref<128x128xf32, #tpu.memory_space<vmem>>, vector<128x128xf32>
    tpu.vector_store %arg13[%c0_49, %c0_50], %103 {strides = array<i32>} : memref<128x128xf32, #tpu.memory_space<vmem>>, vector<128x128xf32>,
    %c0_51 = arith.constant 0 : index
    %c0_52 = arith.constant 0 : index
    %105 = tpu.strided_load %arg13[%c0_51, %c0_52] {strides = array<i32: 2, 1>} : memref<128x128xf32, #tpu.memory_space<vmem>>, vector<64x128xf32>
    %c1 = arith.constant 1 : index
    %c0_53 = arith.constant 0 : index
    %106 = tpu.strided_load %arg13[%c1, %c0_53] {strides = array<i32: 2, 1>} : memref<128x128xf32, #tpu.memory_space<vmem>>, vector<64x128xf32>
    %107 = arith.addf %105, %106 : vector<64x128xf32>
    %cst_54 = arith.constant 2.500000e-01 : f32
    %108 = vector.broadcast %cst_54 : f32 to vector<64x128xf32>
    %109 = arith.mulf %107, %108 : vector<64x128xf32>
    %110 = arith.truncf %109 : vector<64x128xf32> to vector<64x128xbf16>
    %c0_55 = arith.constant 0 : index
    %c0_56 = arith.constant 0 : index
    %111 = vector.load %arg6[%c0_55, %c0_56] : memref<128x128xbf16, #tpu.memory_space<vmem>>, vector<128x128xbf16>
    %cst_57 = arith.constant dense<0.000000e+00> : vector<64x128xf32>
    %112 = tpu.matmul %110, %111, %cst_57 {dimension_numbers = #tpu.dot_dimension_numbers<[1], [0], [0], [1], [0, 0, 1, 1], [], []>} : vector<64x128xbf16>, vector<128x128xbf16>, vector<64x128xf32> -> vector<64x128xf32>
    %c0_58 = arith.constant 0 : index
    %c0_59 = arith.constant 0 : index
    %113 = vector.load %arg7[%c0_58, %c0_59] : memref<1x128xf32, #tpu.memory_space<vmem>>, vector<1x128xf32>
    %114 = vector.broadcast %113 : vector<1x128xf32> to vector<64x128xf32>
    %115 = arith.addf %112, %114 : vector<64x128xf32>
    %116 = arith.extf %1 : vector<256x128xbf16> to vector<256x128xf32>
    %117 = vector.shape_cast %116 : vector<256x128xf32> to vector<8x32x128xf32>
    %118 = vector.extract_strided_slice %117 {offsets = [0, 0, 0], sizes = [8, 16, 128], strides = [1, 1, 1]} : vector<8x32x128xf32> to vector<8x16x128xf32>
    %119 = vector.extract_strided_slice %117 {offsets = [0, 16, 0], sizes = [8, 16, 128], strides = [1, 1, 1]} : vector<8x32x128xf32> to vector<8x16x128xf32>
    %120 = arith.addf %118, %119 : vector<8x16x128xf32>
    %121 = vector.shape_cast %120 : vector<8x16x128xf32> to vector<128x128xf32>
    %c0_60 = arith.constant 0 : index
    %c0_61 = arith.constant 0 : index
    %122 = vector.load %arg14[%c0_60, %c0_61] : memref<128x128xf32, #tpu.memory_space<vmem>>, vector<128x128xf32>
    tpu.vector_store %arg14[%c0_60, %c0_61], %121 {strides = array<i32>} : memref<128x128xf32, #tpu.memory_space<vmem>>, vector<128x128xf32>,
    %c0_62 = arith.constant 0 : index
    %c0_63 = arith.constant 0 : index
    %123 = tpu.strided_load %arg14[%c0_62, %c0_63] {strides = array<i32: 2, 1>} : memref<128x128xf32, #tpu.memory_space<vmem>>, vector<64x128xf32>
    %c1_64 = arith.constant 1 : index
    %c0_65 = arith.constant 0 : index
    %124 = tpu.strided_load %arg14[%c1_64, %c0_65] {strides = array<i32: 2, 1>} : memref<128x128xf32, #tpu.memory_space<vmem>>, vector<64x128xf32>
    %125 = arith.addf %123, %124 : vector<64x128xf32>
    %cst_66 = arith.constant 2.500000e-01 : f32
    %126 = vector.broadcast %cst_66 : f32 to vector<64x128xf32>
    %127 = arith.mulf %125, %126 : vector<64x128xf32>
    %128 = arith.truncf %127 : vector<64x128xf32> to vector<64x128xbf16>
    %c0_67 = arith.constant 0 : index
    %c0_68 = arith.constant 0 : index
    %129 = vector.load %arg8[%c0_67, %c0_68] : memref<128x128xbf16, #tpu.memory_space<vmem>>, vector<128x128xbf16>
    %cst_69 = arith.constant dense<0.000000e+00> : vector<64x128xf32>
    %130 = tpu.matmul %128, %129, %cst_69 {dimension_numbers = #tpu.dot_dimension_numbers<[1], [0], [0], [1], [0, 0, 1, 1], [], []>} : vector<64x128xbf16>, vector<128x128xbf16>, vector<64x128xf32> -> vector<64x128xf32>
    %c0_70 = arith.constant 0 : index
    %c0_71 = arith.constant 0 : index
    %131 = vector.load %arg9[%c0_70, %c0_71] : memref<1x128xf32, #tpu.memory_space<vmem>>, vector<1x128xf32>
    %132 = vector.broadcast %131 : vector<1x128xf32> to vector<64x128xf32>
    %133 = arith.addf %130, %132 : vector<64x128xf32>
    %134 = arith.addf %115, %133 : vector<64x128xf32>
    %cst_72 = arith.constant 0.000000e+00 : f32
    %135 = vector.broadcast %cst_72 : f32 to vector<64x128xf32>
    %136 = arith.maximumf %134, %135 : vector<64x128xf32>
    %137 = arith.truncf %136 : vector<64x128xf32> to vector<64x128xbf16>
    %c0_73 = arith.constant 0 : index
    %c0_74 = arith.constant 0 : index
    %c0_75 = arith.constant 0 : index
    %138 = vector.load %arg10[%c0_73, %c0_74, %c0_75] : memref<1x64x128xbf16, #tpu.memory_space<vmem>>, vector<1x64x128xbf16>
    %139 = vector.shape_cast %138 : vector<1x64x128xbf16> to vector<64x128xbf16>
    %140 = vector.shape_cast %137 : vector<64x128xbf16> to vector<1x64x128xbf16>
    tpu.vector_store %arg10[%c0_73, %c0_74, %c0_75], %140 {strides = array<i32>} : memref<1x64x128xbf16, #tpu.memory_space<vmem>>, vector<1x64x128xbf16>,
    return
  }
  func.func @transform_0(%arg0: i32) -> (i32, i32, i32) {
    %c0_i32 = arith.constant 0 : i32
    %c0_i32_0 = arith.constant 0 : i32
    %c0_i32_1 = arith.constant 0 : i32
    return %arg0, %c0_i32, %c0_i32_0 : i32, i32, i32
  }
  func.func @transform_1(%arg0: i32) -> (i32, i32) {
    %c0_i32 = arith.constant 0 : i32
    %c0_i32_0 = arith.constant 0 : i32
    %c0_i32_1 = arith.constant 0 : i32
    return %c0_i32, %c0_i32_0 : i32, i32
  }
  func.func @transform_2(%arg0: i32) -> (i32, i32) {
    %c0_i32 = arith.constant 0 : i32
    %c0_i32_0 = arith.constant 0 : i32
    %c0_i32_1 = arith.constant 0 : i32
    return %c0_i32, %c0_i32_0 : i32, i32
  }
  func.func @transform_3(%arg0: i32) -> (i32, i32) {
    %c0_i32 = arith.constant 0 : i32
    %c0_i32_0 = arith.constant 0 : i32
    %c0_i32_1 = arith.constant 0 : i32
    return %c0_i32, %c0_i32_0 : i32, i32
  }
  func.func @transform_4(%arg0: i32) -> (i32, i32) {
    %c0_i32 = arith.constant 0 : i32
    %c0_i32_0 = arith.constant 0 : i32
    %c0_i32_1 = arith.constant 0 : i32
    return %c0_i32, %c0_i32_0 : i32, i32
  }
  func.func @transform_5(%arg0: i32) -> (i32, i32) {
    %c0_i32 = arith.constant 0 : i32
    %c0_i32_0 = arith.constant 0 : i32
    %c0_i32_1 = arith.constant 0 : i32
    return %c0_i32, %c0_i32_0 : i32, i32
  }
  func.func @transform_6(%arg0: i32) -> (i32, i32) {
    %c0_i32 = arith.constant 0 : i32
    %c0_i32_0 = arith.constant 0 : i32
    %c0_i32_1 = arith.constant 0 : i32
    return %c0_i32, %c0_i32_0 : i32, i32
  }
  func.func @transform_7(%arg0: i32) -> (i32, i32) {
    %c0_i32 = arith.constant 0 : i32
    %c0_i32_0 = arith.constant 0 : i32
    %c0_i32_1 = arith.constant 0 : i32
    return %c0_i32, %c0_i32_0 : i32, i32
  }
  func.func @transform_8(%arg0: i32) -> (i32, i32) {
    %c0_i32 = arith.constant 0 : i32
    %c0_i32_0 = arith.constant 0 : i32
    %c0_i32_1 = arith.constant 0 : i32
    return %c0_i32, %c0_i32_0 : i32, i32
  }
  func.func @transform_9(%arg0: i32) -> (i32, i32, i32) {
    %c0_i32 = arith.constant 0 : i32
    %c0_i32_0 = arith.constant 0 : i32
    %c0_i32_1 = arith.constant 0 : i32
    return %arg0, %c0_i32, %c0_i32_0 : i32, i32, i32
  }
}

</mosaic_0001>

<llo_original>
// kernel: tpu_custom_call.1
$region0: #{tpu_custom_call.1}
  #allocation0 [shape = 'u32[]', space=smem, size = 0x4, offset = 0x4, fixed_abs, tag = 'smem constant byte address 0x4 - core index']
  #allocation1 [shape = 'u32[144,128]{1,0:T(1,128)}', space=vmem, size = 0x12000, scoped, tag = 'internal scratch']
  #allocation2 [shape = 'f32[304,128]{1,0:T(8,128)}', space=vmem, size = 0x26000, scoped, tag = 'scratch operand']
  #allocation3 [shape = 'bf16[256,1152]{1,0:T(8,128)(2,1)}', space=vmem, size = 0x90000, scoped, tag = 'scratch operand']
  #allocation4 [shape = 'f32[128,128]{1,0:T(8,128)}', space=vmem, size = 0x10000, scoped, tag = 'scratch operand']
  #allocation5 [shape = 'f32[128,128]{1,0:T(8,128)}', space=vmem, size = 0x10000, scoped, tag = 'scratch operand']
  %s0 = inlined_call_operand.hbm [shape: bf16[2,256,128], index: 0, kind: input, shape index: {}]
  %s1 = inlined_call_operand.hbm [shape: bf16[128,128], index: 1, kind: input, shape index: {}]
  %s2 = inlined_call_operand.vmem [shape: f32[1,128], index: 2, kind: input, shape index: {}]
  %s3 = inlined_call_operand.hbm [shape: bf16[1152,128], index: 3, kind: input, shape index: {}]
  %s4 = inlined_call_operand.vmem [shape: f32[1,128], index: 4, kind: input, shape index: {}]
  %s5 = inlined_call_operand.hbm [shape: bf16[128,128], index: 5, kind: input, shape index: {}]
  %s6 = inlined_call_operand.vmem [shape: f32[1,128], index: 6, kind: input, shape index: {}]
  %s7 = inlined_call_operand.hbm [shape: bf16[128,128], index: 7, kind: input, shape index: {}]
  %s8 = inlined_call_operand.vmem [shape: f32[1,128], index: 8, kind: input, shape index: {}]
  %s9 = inlined_call_operand.hbm [shape: bf16[2,64,128], index: 9, kind: output, shape index: {}]
  %s10 = sld [smem:[#allocation0]]
  $region89: #{tpu_custom_call.1} parent=0
    _
  %s12 = ssub.s32 1, %s10
  %s13 = scalar_select 0, %s12, %s10
  $region1: #{tpu_custom_call.1} parent=0
    #allocation6 [shape = 'u8[131072]{0}', space=vmem, size = 0x20000, scoped, tag = 'input window, operand 0']
    #allocation7 [shape = 's32[2]{0}', space=sflag, size = 0x8, scoped, tag = 'scoped memory for tpu_custom_call.1']
    #allocation8 [shape = 's32[2]{0}', space=sflag, size = 0x8, scoped, tag = 'scoped memory for tpu_custom_call.1']
    #allocation9 [shape = 'u8[32768]{0}', space=vmem, size = 0x8000, scoped, tag = 'input window, operand 1, single buffered']
    #allocation10 [shape = 's32[1]{0}', space=sflag, size = 0x4, scoped, tag = 'scoped memory for tpu_custom_call.1']
    #allocation11 [shape = 'u8[294912]{0}', space=vmem, size = 0x48000, scoped, tag = 'input window, operand 3, single buffered']
    #allocation12 [shape = 'u8[32768]{0}', space=vmem, size = 0x8000, scoped, tag = 'input window, operand 5, single buffered']
    #allocation13 [shape = 's32[1]{0}', space=sflag, size = 0x4, scoped, tag = 'scoped memory for tpu_custom_call.1']
    #allocation14 [shape = 'u8[32768]{0}', space=vmem, size = 0x8000, scoped, tag = 'input window, operand 7, single buffered']
    #allocation15 [shape = 'u8[32768]{0}', space=vmem, size = 0x8000, scoped, tag = 'output window, operand 0']
    %14 = vsyncpa [#allocation7], 0
    %s15 = scalar_lea.sflag [#allocation7], 1
    %16 = vsyncpa %s15, 0
    %17 = vsyncpa [#allocation10], 0
    %18 = vsyncpa [#allocation13], 0
    %19 = vsyncpa [#allocation8], 0
    %s20 = scalar_lea.sflag [#allocation8], 1
    %21 = vsyncpa %s20, 0
    loop: start=0, step=1, limit=4
    $region2: #{tpu_custom_call.1} parent=1 // loop_pre_header
      _
    $region3: #{tpu_custom_call.1} parent=1 // loop_header
      %s23 = sphi 0, %s27
      %p24 = scmp.ge.s32.totalorder %s23, 4
      %s33 = sphi 0, %s35
      %s36 = sphi 0, %s33
      %s37 = sphi 0, %s36
      %s53 = sphi 0, %s37
      %s57 = sphi 0, %s57
      %s59 = sphi 0, %s57
      %s60 = sphi 0, %s59
      %s74 = sphi 0, %s60
      %s78 = sphi 0, %s78
      %s80 = sphi 0, %s78
      %s81 = sphi 0, %s80
      %s95 = sphi 0, %s81
      %s99 = sphi 0, %s99
      %s101 = sphi 0, %s99
      %s102 = sphi 0, %s101
      %s116 = sphi 0, %s102
      %s120 = sphi 0, %s120
      %s122 = sphi 0, %s120
      %s123 = sphi 0, %s122
      %s137 = sphi 0, %s123
      %s141 = sphi 0, %s141
      %s143 = sphi 0, %s141
      %s144 = sphi 0, %s143
      %s158 = sphi 0, %s144
      %s162 = sphi 0, %s162
      %s164 = sphi 0, %s162
      %s165 = sphi 0, %s164
      %s179 = sphi 0, %s165
      %s183 = sphi 0, %s183
      %s185 = sphi 0, %s183
      %s186 = sphi 0, %s185
      %s200 = sphi 0, %s186
      %s204 = sphi 0, %s204
      %s206 = sphi 0, %s204
      %s207 = sphi 0, %s206
      %s221 = sphi 0, %s207
      %s227 = sphi 0, %s229
      %s230 = sphi 0, %s227
      %s231 = sphi 0, %s230
      %s247 = sphi 0, %s231
    $region4: #{tpu_custom_call.1} parent=1 // loop_header_branch
      %26 = sbr.rel (%p24) target = $region8
    $region5: #{tpu_custom_call.1} parent=1 // loop_body
      %s28 = ssub.s32 %s23, 1
      %s29 = ssub.s32 %s23, 2
      %s30 = sadd.s32 %s23, 1
      %s31 = ssub.s32 %s23, %s30
      %p32 = scmp.eq.s32.totalorder %s31, 0
      %s34 = sadd.s32 %s33, 1
      %s35 = scalar_select %p32, %s33, %s34
      %p38 = pneg %p32
      %p39 = scmp.eq.s32.totalorder %s23, 1
      %p40 = por %p38, %p39
      %p41 = scmp.ne.s32.totalorder %s33, %s36
      %p42 = scmp.eq.s32.totalorder %s23, 0
      %p43 = por %p41, %p42
      %p44 = scmp.ne.s32.totalorder %s33, %s36
      %p45 = scmp.eq.s32.totalorder %s28, 1
      %p46 = por %p44, %p45
      %p47 = scmp.ne.s32.totalorder %s36, %s37
      %p48 = scmp.eq.s32.totalorder %s28, 0
      %p49 = por %p47, %p48
      %p50 = scmp.ne.s32.totalorder %s36, %s37
      %p51 = scmp.eq.s32.totalorder %s29, 1
      %p52 = por %p50, %p51
      %p54 = scmp.ne.s32.totalorder %s37, %s53
      %p55 = scmp.eq.s32.totalorder %s29, 0
      %p56 = por %p54, %p55
      %s58 = sadd.s32 %s57, 1
      %p61 = scmp.eq.s32.totalorder %s23, 1
      %p62 = scmp.ne.s32.totalorder %s57, %s59
      %p63 = scmp.eq.s32.totalorder %s23, 0
      %p64 = por %p62, %p63
      %p65 = scmp.ne.s32.totalorder %s57, %s59
      %p66 = scmp.eq.s32.totalorder %s28, 1
      %p67 = por %p65, %p66
      %p68 = scmp.ne.s32.totalorder %s59, %s60
      %p69 = scmp.eq.s32.totalorder %s28, 0
      %p70 = por %p68, %p69
      %p71 = scmp.ne.s32.totalorder %s59, %s60
      %p72 = scmp.eq.s32.totalorder %s29, 1
      %p73 = por %p71, %p72
      %p75 = scmp.ne.s32.totalorder %s60, %s74
      %p76 = scmp.eq.s32.totalorder %s29, 0
      %p77 = por %p75, %p76
      %s79 = sadd.s32 %s78, 1
      %p82 = scmp.eq.s32.totalorder %s23, 1
      %p83 = scmp.ne.s32.totalorder %s78, %s80
      %p84 = scmp.eq.s32.totalorder %s23, 0
      %p85 = por %p83, %p84
      %p86 = scmp.ne.s32.totalorder %s78, %s80
      %p87 = scmp.eq.s32.totalorder %s28, 1
      %p88 = por %p86, %p87
      %p89 = scmp.ne.s32.totalorder %s80, %s81
      %p90 = scmp.eq.s32.totalorder %s28, 0
      %p91 = por %p89, %p90
      %p92 = scmp.ne.s32.totalorder %s80, %s81
      %p93 = scmp.eq.s32.totalorder %s29, 1
      %p94 = por %p92, %p93
      %p96 = scmp.ne.s32.totalorder %s81, %s95
      %p97 = scmp.eq.s32.totalorder %s29, 0
      %p98 = por %p96, %p97
      %s100 = sadd.s32 %s99, 1
      %p103 = scmp.eq.s32.totalorder %s23, 1
      %p104 = scmp.ne.s32.totalorder %s99, %s101
      %p105 = scmp.eq.s32.totalorder %s23, 0
      %p106 = por %p104, %p105
      %p107 = scmp.ne.s32.totalorder %s99, %s101
      %p108 = scmp.eq.s32.totalorder %s28, 1
      %p109 = por %p107, %p108
      %p110 = scmp.ne.s32.totalorder %s101, %s102
      %p111 = scmp.eq.s32.totalorder %s28, 0
      %p112 = por %p110, %p111
      %p113 = scmp.ne.s32.totalorder %s101, %s102
      %p114 = scmp.eq.s32.totalorder %s29, 1
      %p115 = por %p113, %p114
      %p117 = scmp.ne.s32.totalorder %s102, %s116
      %p118 = scmp.eq.s32.totalorder %s29, 0
      %p119 = por %p117, %p118
      %s121 = sadd.s32 %s120, 1
      %p124 = scmp.eq.s32.totalorder %s23, 1
      %p125 = scmp.ne.s32.totalorder %s120, %s122
      %p126 = scmp.eq.s32.totalorder %s23, 0
      %p127 = por %p125, %p126
      %p128 = scmp.ne.s32.totalorder %s120, %s122
      %p129 = scmp.eq.s32.totalorder %s28, 1
      %p130 = por %p128, %p129
      %p131 = scmp.ne.s32.totalorder %s122, %s123
      %p132 = scmp.eq.s32.totalorder %s28, 0
      %p133 = por %p131, %p132
      %p134 = scmp.ne.s32.totalorder %s122, %s123
      %p135 = scmp.eq.s32.totalorder %s29, 1
      %p136 = por %p134, %p135
      %p138 = scmp.ne.s32.totalorder %s123, %s137
      %p139 = scmp.eq.s32.totalorder %s29, 0
      %p140 = por %p138, %p139
      %s142 = sadd.s32 %s141, 1
      %p145 = scmp.eq.s32.totalorder %s23, 1
      %p146 = scmp.ne.s32.totalorder %s141, %s143
      %p147 = scmp.eq.s32.totalorder %s23, 0
      %p148 = por %p146, %p147
      %p149 = scmp.ne.s32.totalorder %s141, %s143
      %p150 = scmp.eq.s32.totalorder %s28, 1
      %p151 = por %p149, %p150
      %p152 = scmp.ne.s32.totalorder %s143, %s144
      %p153 = scmp.eq.s32.totalorder %s28, 0
      %p154 = por %p152, %p153
      %p155 = scmp.ne.s32.totalorder %s143, %s144
      %p156 = scmp.eq.s32.totalorder %s29, 1
      %p157 = por %p155, %p156
      %p159 = scmp.ne.s32.totalorder %s144, %s158
      %p160 = scmp.eq.s32.totalorder %s29, 0
      %p161 = por %p159, %p160
      %s163 = sadd.s32 %s162, 1
      %p166 = scmp.eq.s32.totalorder %s23, 1
      %p167 = scmp.ne.s32.totalorder %s162, %s164
      %p168 = scmp.eq.s32.totalorder %s23, 0
      %p169 = por %p167, %p168
      %p170 = scmp.ne.s32.totalorder %s162, %s164
      %p171 = scmp.eq.s32.totalorder %s28, 1
      %p172 = por %p170, %p171
      %p173 = scmp.ne.s32.totalorder %s164, %s165
      %p174 = scmp.eq.s32.totalorder %s28, 0
      %p175 = por %p173, %p174
      %p176 = scmp.ne.s32.totalorder %s164, %s165
      %p177 = scmp.eq.s32.totalorder %s29, 1
      %p178 = por %p176, %p177
      %p180 = scmp.ne.s32.totalorder %s165, %s179
      %p181 = scmp.eq.s32.totalorder %s29, 0
      %p182 = por %p180, %p181
      %s184 = sadd.s32 %s183, 1
      %p187 = scmp.eq.s32.totalorder %s23, 1
      %p188 = scmp.ne.s32.totalorder %s183, %s185
      %p189 = scmp.eq.s32.totalorder %s23, 0
      %p190 = por %p188, %p189
      %p191 = scmp.ne.s32.totalorder %s183, %s185
      %p192 = scmp.eq.s32.totalorder %s28, 1
      %p193 = por %p191, %p192
      %p194 = scmp.ne.s32.totalorder %s185, %s186
      %p195 = scmp.eq.s32.totalorder %s28, 0
      %p196 = por %p194, %p195
      %p197 = scmp.ne.s32.totalorder %s185, %s186
      %p198 = scmp.eq.s32.totalorder %s29, 1
      %p199 = por %p197, %p198
      %p201 = scmp.ne.s32.totalorder %s186, %s200
      %p202 = scmp.eq.s32.totalorder %s29, 0
      %p203 = por %p201, %p202
      %s205 = sadd.s32 %s204, 1
      %p208 = scmp.eq.s32.totalorder %s23, 1
      %p209 = scmp.ne.s32.totalorder %s204, %s206
      %p210 = scmp.eq.s32.totalorder %s23, 0
      %p211 = por %p209, %p210
      %p212 = scmp.ne.s32.totalorder %s204, %s206
      %p213 = scmp.eq.s32.totalorder %s28, 1
      %p214 = por %p212, %p213
      %p215 = scmp.ne.s32.totalorder %s206, %s207
      %p216 = scmp.eq.s32.totalorder %s28, 0
      %p217 = por %p215, %p216
      %p218 = scmp.ne.s32.totalorder %s206, %s207
      %p219 = scmp.eq.s32.totalorder %s29, 1
      %p220 = por %p218, %p219
      %p222 = scmp.ne.s32.totalorder %s207, %s221
      %p223 = scmp.eq.s32.totalorder %s29, 0
      %p224 = por %p222, %p223
      %s225 = ssub.s32 %s23, %s30
      %p226 = scmp.eq.s32.totalorder %s225, 0
      %s228 = sadd.s32 %s227, 1
      %s229 = scalar_select %p226, %s227, %s228
      %p232 = pneg %p226
      %p233 = scmp.eq.s32.totalorder %s23, 1
      %p234 = por %p232, %p233
      %p235 = scmp.ne.s32.totalorder %s227, %s230
      %p236 = scmp.eq.s32.totalorder %s23, 0
      %p237 = por %p235, %p236
      %p238 = scmp.ne.s32.totalorder %s227, %s230
      %p239 = scmp.eq.s32.totalorder %s28, 1
      %p240 = por %p238, %p239
      %p241 = scmp.ne.s32.totalorder %s230, %s231
      %p242 = scmp.eq.s32.totalorder %s28, 0
      %p243 = por %p241, %p242
      %p244 = scmp.ne.s32.totalorder %s230, %s231
      %p245 = scmp.eq.s32.totalorder %s29, 1
      %p246 = por %p244, %p245
      %p248 = scmp.ne.s32.totalorder %s231, %s247
      %p249 = scmp.eq.s32.totalorder %s29, 0
      %p250 = por %p248, %p249
      %p251 = scmp.le.s32.totalorder 1, %s23
      %p252 = scmp.lt.s32.totalorder %s23, 3
      %p253 = pnand %p251, %p252
      %p254 = pneg %p253
      // Predicated region
      $region9: #{tpu_custom_call.1} parent=5 // pred_check
        _
      $region10: #{tpu_custom_call.1} parent=5 // pred_check_branch
        %256 = sbr.rel (%p253) target = $region12
      $region11: #{tpu_custom_call.1} parent=5 // pred_region
        %s257 = ssub.s32 %s23, 1
        // Predicated region
        $region13: #{tpu_custom_call.1} parent=11 // pred_check
          %p258 = pneg %p70
        $region14: #{tpu_custom_call.1} parent=11 // pred_check_branch
          %260 = sbr.rel (%p258) target = $region16
        $region15: #{tpu_custom_call.1} parent=11 // pred_region
          %s262 = ssub.s32 1024, 1024
          %263 = vsyncadd [#allocation10], %s262
          %s264 = sshll.u32 [#allocation9], 4
          %s265 = int_to_ptr.vmem [resolvable:$true] %s264
          %270 = dma.hbm_to_vmem [thread:$0]  %s1, 1024, %s265, [#allocation10], 64, 64, 4
        $region16: #{tpu_custom_call.1} parent=11 // pred_fallthru
          _
        // Predicated region
        $region17: #{tpu_custom_call.1} parent=11 // pred_check
          %p271 = pneg %p91
        $region18: #{tpu_custom_call.1} parent=11 // pred_check_branch
          %273 = sbr.rel (%p271) target = $region20
        $region19: #{tpu_custom_call.1} parent=11 // pred_region
          _
        $region20: #{tpu_custom_call.1} parent=11 // pred_fallthru
          _
        // Predicated region
        $region21: #{tpu_custom_call.1} parent=11 // pred_check
          %p274 = pneg %p112
        $region22: #{tpu_custom_call.1} parent=11 // pred_check_branch
          %276 = sbr.rel (%p274) target = $region24
        $region23: #{tpu_custom_call.1} parent=11 // pred_region
          %s278 = ssub.s32 9216, 9216
          %279 = vsyncadd [#allocation10], %s278
          %s280 = sshll.u32 [#allocation11], 4
          %s281 = int_to_ptr.vmem [resolvable:$true] %s280
          %286 = dma.hbm_to_vmem [thread:$0]  %s3, 9216, %s281, [#allocation10], 64, 64, 4
        $region24: #{tpu_custom_call.1} parent=11 // pred_fallthru
          _
        // Predicated region
        $region25: #{tpu_custom_call.1} parent=11 // pred_check
          %p287 = pneg %p133
        $region26: #{tpu_custom_call.1} parent=11 // pred_check_branch
          %289 = sbr.rel (%p287) target = $region28
        $region27: #{tpu_custom_call.1} parent=11 // pred_region
          _
        $region28: #{tpu_custom_call.1} parent=11 // pred_fallthru
          _
        // Predicated region
        $region29: #{tpu_custom_call.1} parent=11 // pred_check
          %p290 = pneg %p154
        $region30: #{tpu_custom_call.1} parent=11 // pred_check_branch
          %292 = sbr.rel (%p290) target = $region32
        $region31: #{tpu_custom_call.1} parent=11 // pred_region
          %s294 = ssub.s32 1024, 1024
          %295 = vsyncadd [#allocation13], %s294
          %s296 = sshll.u32 [#allocation12], 4
          %s297 = int_to_ptr.vmem [resolvable:$true] %s296
          %302 = dma.hbm_to_vmem [thread:$0]  %s5, 1024, %s297, [#allocation13], 64, 64, 4
        $region32: #{tpu_custom_call.1} parent=11 // pred_fallthru
          _
        // Predicated region
        $region33: #{tpu_custom_call.1} parent=11 // pred_check
          %p303 = pneg %p175
        $region34: #{tpu_custom_call.1} parent=11 // pred_check_branch
          %305 = sbr.rel (%p303) target = $region36
        $region35: #{tpu_custom_call.1} parent=11 // pred_region
          _
        $region36: #{tpu_custom_call.1} parent=11 // pred_fallthru
          _
        // Predicated region
        $region37: #{tpu_custom_call.1} parent=11 // pred_check
          %p306 = pneg %p196
        $region38: #{tpu_custom_call.1} parent=11 // pred_check_branch
          %308 = sbr.rel (%p306) target = $region40
        $region39: #{tpu_custom_call.1} parent=11 // pred_region
          %s310 = ssub.s32 1024, 1024
          %311 = vsyncadd [#allocation13], %s310
          %s312 = sshll.u32 [#allocation14], 4
          %s313 = int_to_ptr.vmem [resolvable:$true] %s312
          %318 = dma.hbm_to_vmem [thread:$0]  %s7, 1024, %s313, [#allocation13], 64, 64, 4
        $region40: #{tpu_custom_call.1} parent=11 // pred_fallthru
          _
        // Predicated region
        $region41: #{tpu_custom_call.1} parent=11 // pred_check
          %p319 = pneg %p217
        $region42: #{tpu_custom_call.1} parent=11 // pred_check_branch
          %321 = sbr.rel (%p319) target = $region44
        $region43: #{tpu_custom_call.1} parent=11 // pred_region
          _
        $region44: #{tpu_custom_call.1} parent=11 // pred_fallthru
          _
      $region12: #{tpu_custom_call.1} parent=5 // pred_fallthru
        _
      %p322 = scmp.lt.s32.totalorder %s23, 2
      // Predicated region
      $region45: #{tpu_custom_call.1} parent=5 // pred_check
        %p323 = pneg %p322
      $region46: #{tpu_custom_call.1} parent=5 // pred_check_branch
        %325 = sbr.rel (%p323) target = $region48
      $region47: #{tpu_custom_call.1} parent=5 // pred_region
        // Predicated region
        $region49: #{tpu_custom_call.1} parent=47 // pred_check
          %p326 = pneg %p43
        $region50: #{tpu_custom_call.1} parent=47 // pred_check_branch
          %328 = sbr.rel (%p326) target = $region52
        $region51: #{tpu_custom_call.1} parent=47 // pred_region
          %s329 = sand.u32 %s33, 1
          %s330 = scalar_lea.sflag [#allocation7], %s329
          %s331 = sand.u32 %s33, 1
          %s332 = smul.addr %s331, 128
          %s333 = scalar_lea.vmem [#allocation6], %s332
          %s335 = ssub.s32 2048, 2048
          %336 = vsyncadd %s330, %s335
          %s337 = smul.addr %s23, 32
          %s338 = smul.addr %s337, 64
          %s339 = scalar_lea.hbm %s0, %s338
          %s340 = sshll.u32 %s333, 4
          %s341 = int_to_ptr.vmem [resolvable:$true] %s340
          %346 = dma.hbm_to_vmem [thread:$0]  %s339, 2048, %s341, %s330, 64, 64, 4
        $region52: #{tpu_custom_call.1} parent=47 // pred_fallthru
          _
      $region48: #{tpu_custom_call.1} parent=5 // pred_fallthru
        _
      %p347 = scmp.le.s32.totalorder 1, %s23
      %p348 = scmp.lt.s32.totalorder %s23, 3
      %p349 = pnand %p347, %p348
      %p350 = pneg %p349
      // Predicated region
      $region53: #{tpu_custom_call.1} parent=5 // pred_check
        _
      $region54: #{tpu_custom_call.1} parent=5 // pred_check_branch
        %352 = sbr.rel (%p349) target = $region56
      $region55: #{tpu_custom_call.1} parent=5 // pred_region
        %s353 = ssub.s32 %s23, 1
        %s354 = sand.u32 %s36, 1
        %s355 = scalar_lea.sflag [#allocation7], %s354
        %s356 = sand.u32 %s36, 1
        %s357 = smul.addr %s356, 128
        %s358 = scalar_lea.vmem [#allocation6], %s357
        // Predicated region
        $region57: #{tpu_custom_call.1} parent=55 // pred_check
          %p359 = pneg %p49
        $region58: #{tpu_custom_call.1} parent=55 // pred_check_branch
          %361 = sbr.rel (%p359) target = $region60
        $region59: #{tpu_custom_call.1} parent=55 // pred_region
          %362 = dma.done %s355, 2048
        $region60: #{tpu_custom_call.1} parent=55 // pred_fallthru
          _
        // Predicated region
        $region61: #{tpu_custom_call.1} parent=55 // pred_check
          %p363 = pneg %p70
        $region62: #{tpu_custom_call.1} parent=55 // pred_check_branch
          %365 = sbr.rel (%p363) target = $region64
        $region63: #{tpu_custom_call.1} parent=55 // pred_region
          %366 = dma.done [#allocation10], 1024
        $region64: #{tpu_custom_call.1} parent=55 // pred_fallthru
          _
        // Predicated region
        $region65: #{tpu_custom_call.1} parent=55 // pred_check
          %p367 = pneg %p112
        $region66: #{tpu_custom_call.1} parent=55 // pred_check_branch
          %369 = sbr.rel (%p367) target = $region68
        $region67: #{tpu_custom_call.1} parent=55 // pred_region
          %370 = dma.done [#allocation10], 9216
        $region68: #{tpu_custom_call.1} parent=55 // pred_fallthru
          _
        // Predicated region
        $region69: #{tpu_custom_call.1} parent=55 // pred_check
          %p371 = pneg %p154
        $region70: #{tpu_custom_call.1} parent=55 // pred_check_branch
          %373 = sbr.rel (%p371) target = $region72
        $region71: #{tpu_custom_call.1} parent=55 // pred_region
          %374 = dma.done [#allocation13], 1024
        $region72: #{tpu_custom_call.1} parent=55 // pred_fallthru
          _
        // Predicated region
        $region73: #{tpu_custom_call.1} parent=55 // pred_check
          %p375 = pneg %p196
        $region74: #{tpu_custom_call.1} parent=55 // pred_check_branch
          %377 = sbr.rel (%p375) target = $region76
        $region75: #{tpu_custom_call.1} parent=55 // pred_region
          %378 = dma.done [#allocation13], 1024
        $region76: #{tpu_custom_call.1} parent=55 // pred_fallthru
          _
        %s379 = sand.u32 %s36, 1
        %s380 = scalar_lea.sflag [#allocation7], %s379
        %s381 = sand.u32 %s36, 1
        %s382 = smul.addr %s381, 128
        %s383 = scalar_lea.vmem [#allocation6], %s382
        %p384 = pneg %p49
        %p385 = pneg %p46
        %p386 = pneg %p70
        %p387 = pneg %p67
        %p388 = pneg %p91
        %p389 = pneg %p88
        %p390 = pneg %p112
        %p391 = pneg %p109
        %p392 = pneg %p133
        %p393 = pneg %p130
        %p394 = pneg %p154
        %p395 = pneg %p151
        %p396 = pneg %p175
        %p397 = pneg %p172
        %p398 = pneg %p196
        %p399 = pneg %p193
        %p400 = pneg %p217
        %p401 = pneg %p214
        %p402 = pneg %p243
        %p403 = pneg %p240
        %s404 = sand.u32 %s230, 1
        %s405 = scalar_lea.sflag [#allocation8], %s404
        %s406 = sand.u32 %s230, 1
        %s407 = smul.addr %s406, 32
        %s408 = scalar_lea.vmem [#allocation15], %s407
        %v412 = vld [vmem:[%s358] sm:$0xf]
        %v413 = vld [vmem:[%s358 + $0x4] sm:$0xf]
        %v414 = vld [vmem:[%s358 + $0x8] sm:$0xf]
        %v415 = vld [vmem:[%s358 + $0xc] sm:$0xf]
        %v416 = vld [vmem:[%s358 + $0x10] sm:$0xf]
        %v417 = vld [vmem:[%s358 + $0x14] sm:$0xf]
        %v418 = vld [vmem:[%s358 + $0x18] sm:$0xf]
        %v419 = vld [vmem:[%s358 + $0x1c] sm:$0xf]
        %v420 = vld [vmem:[%s358 + $0x20] sm:$0xf]
        %v421 = vld [vmem:[%s358 + $0x24] sm:$0xf]
        %v422 = vld [vmem:[%s358 + $0x28] sm:$0xf]
        %v423 = vld [vmem:[%s358 + $0x2c] sm:$0xf]
        %v424 = vld [vmem:[%s358 + $0x30] sm:$0xf]
        %v425 = vld [vmem:[%s358 + $0x34] sm:$0xf]
        %v426 = vld [vmem:[%s358 + $0x38] sm:$0xf]
        %v427 = vld [vmem:[%s358 + $0x3c] sm:$0xf]
        %v428 = vld [vmem:[%s358 + $0x40] sm:$0xf]
        %v429 = vld [vmem:[%s358 + $0x44] sm:$0xf]
        %v430 = vld [vmem:[%s358 + $0x48] sm:$0xf]
        %v431 = vld [vmem:[%s358 + $0x4c] sm:$0xf]
        %v432 = vld [vmem:[%s358 + $0x50] sm:$0xf]
        %v433 = vld [vmem:[%s358 + $0x54] sm:$0xf]
        %v434 = vld [vmem:[%s358 + $0x58] sm:$0xf]
        %v435 = vld [vmem:[%s358 + $0x5c] sm:$0xf]
        %v436 = vld [vmem:[%s358 + $0x60] sm:$0xf]
        %v437 = vld [vmem:[%s358 + $0x64] sm:$0xf]
        %v438 = vld [vmem:[%s358 + $0x68] sm:$0xf]
        %v439 = vld [vmem:[%s358 + $0x6c] sm:$0xf]
        %v440 = vld [vmem:[%s358 + $0x70] sm:$0xf]
        %v441 = vld [vmem:[%s358 + $0x74] sm:$0xf]
        %v442 = vld [vmem:[%s358 + $0x78] sm:$0xf]
        %v443 = vld [vmem:[%s358 + $0x7c] sm:$0xf]
        %v444 = vld [vmem:[#allocation9] sm:$0xf]
        %v445 = vld [vmem:[#allocation9 + $0x4] sm:$0xf]
        %v446 = vld [vmem:[#allocation9 + $0x8] sm:$0xf]
        %v447 = vld [vmem:[#allocation9 + $0xc] sm:$0xf]
        %v448 = vld [vmem:[#allocation9 + $0x10] sm:$0xf]
        %v449 = vld [vmem:[#allocation9 + $0x14] sm:$0xf]
        %v450 = vld [vmem:[#allocation9 + $0x18] sm:$0xf]
        %v451 = vld [vmem:[#allocation9 + $0x1c] sm:$0xf]
        %v452 = vld [vmem:[#allocation9 + $0x20] sm:$0xf]
        %v453 = vld [vmem:[#allocation9 + $0x24] sm:$0xf]
        %v454 = vld [vmem:[#allocation9 + $0x28] sm:$0xf]
        %v455 = vld [vmem:[#allocation9 + $0x2c] sm:$0xf]
        %v456 = vld [vmem:[#allocation9 + $0x30] sm:$0xf]
        %v457 = vld [vmem:[#allocation9 + $0x34] sm:$0xf]
        %v458 = vld [vmem:[#allocation9 + $0x38] sm:$0xf]
        %v459 = vld [vmem:[#allocation9 + $0x3c] sm:$0xf]
        %v460 = vld [vmem:[%s2] sm:$0x1]
        %v462 = vlaneseq
        %v463 = vshrl.u32 %v462, 7
        %v464 = vsub.s32 0, %v463
        %v465 = vrot.slane %v460, %v464
        %v499 = vunpack.c.l.b16 %v412
        %v500 = vunpack.c.l.b16 %v413
        %v501 = vunpack.c.l.b16 %v414
        %v502 = vunpack.c.l.b16 %v415
        %v503 = vunpack.c.l.b16 %v416
        %v504 = vunpack.c.l.b16 %v417
        %v505 = vunpack.c.l.b16 %v418
        %v506 = vunpack.c.l.b16 %v419
        %v507 = vunpack.c.l.b16 %v420
        %v508 = vunpack.c.l.b16 %v421
        %v509 = vunpack.c.l.b16 %v422
        %v510 = vunpack.c.l.b16 %v423
        %v511 = vunpack.c.l.b16 %v424
        %v512 = vunpack.c.l.b16 %v425
        %v513 = vunpack.c.l.b16 %v426
        %v514 = vunpack.c.l.b16 %v427
        %v515 = vunpack.c.l.b16 %v428
        %v516 = vunpack.c.l.b16 %v429
        %v517 = vunpack.c.l.b16 %v430
        %v518 = vunpack.c.l.b16 %v431
        %v519 = vunpack.c.l.b16 %v432
        %v520 = vunpack.c.l.b16 %v433
        %v521 = vunpack.c.l.b16 %v434
        %v522 = vunpack.c.l.b16 %v435
        %v523 = vunpack.c.l.b16 %v436
        %v524 = vunpack.c.l.b16 %v437
        %v525 = vunpack.c.l.b16 %v438
        %v526 = vunpack.c.l.b16 %v439
        %v527 = vunpack.c.l.b16 %v440
        %v528 = vunpack.c.l.b16 %v441
        %v529 = vunpack.c.l.b16 %v442
        %v530 = vunpack.c.l.b16 %v443
        %v531 = vpack.c.b16 %v500, %v499
        %v532 = vpack.c.b16 %v502, %v501
        %v533 = vpack.c.b16 %v504, %v503
        %v534 = vpack.c.b16 %v506, %v505
        %v535 = vpack.c.b16 %v508, %v507
        %v536 = vpack.c.b16 %v510, %v509
        %v537 = vpack.c.b16 %v512, %v511
        %v538 = vpack.c.b16 %v514, %v513
        %v539 = vpack.c.b16 %v516, %v515
        %v540 = vpack.c.b16 %v518, %v517
        %v541 = vpack.c.b16 %v520, %v519
        %v542 = vpack.c.b16 %v522, %v521
        %v543 = vpack.c.b16 %v524, %v523
        %v544 = vpack.c.b16 %v526, %v525
        %v545 = vpack.c.b16 %v528, %v527
        %v546 = vpack.c.b16 %v530, %v529
        %v579 = vunpack.c.l.b16 %v444
        %v580 = vunpack.c.l.b16 %v445
        %v581 = vunpack.c.l.b16 %v446
        %v582 = vunpack.c.l.b16 %v447
        %v583 = vunpack.c.l.b16 %v448
        %v584 = vunpack.c.l.b16 %v449
        %v585 = vunpack.c.l.b16 %v450
        %v586 = vunpack.c.l.b16 %v451
        %v587 = vunpack.c.l.b16 %v452
        %v588 = vunpack.c.l.b16 %v453
        %v589 = vunpack.c.l.b16 %v454
        %v590 = vunpack.c.l.b16 %v455
        %v591 = vunpack.c.l.b16 %v456
        %v592 = vunpack.c.l.b16 %v457
        %v593 = vunpack.c.l.b16 %v458
        %v594 = vunpack.c.l.b16 %v459
        %v595 = vpack.c.b16 %v580, %v579
        %v596 = vpack.c.b16 %v582, %v581
        %v597 = vpack.c.b16 %v584, %v583
        %v598 = vpack.c.b16 %v586, %v585
        %v599 = vpack.c.b16 %v588, %v587
        %v600 = vpack.c.b16 %v590, %v589
        %v601 = vpack.c.b16 %v592, %v591
        %v602 = vpack.c.b16 %v594, %v593
        %611 = vmatprep.subr.bf16.mxu0 0
        %612 = vmatpush1.bf16.msra.mxu0 %v602
        %613 = vmatprep.subr.bf16.mxu0 0
        %614 = vmatpush1.bf16.msra.mxu0 %v601
        %615 = vmatprep.subr.bf16.mxu0 0
        %616 = vmatpush1.bf16.msra.mxu0 %v600
        %617 = vmatprep.subr.bf16.mxu0 0
        %618 = vmatpush1.bf16.msra.mxu0 %v599
        %619 = vmatprep.subr.bf16.mxu0 0
        %620 = vmatpush1.bf16.msra.mxu0 %v598
        %621 = vmatprep.subr.bf16.mxu0 0
        %622 = vmatpush1.bf16.msra.mxu0 %v597
        %623 = vmatprep.subr.bf16.mxu0 0
        %624 = vmatpush1.bf16.msra.mxu0 %v596
        %625 = vmatprep.subr.bf16.mxu0 0
        %626 = vmatpush1.bf16.msra.mxu0 %v595
        %627 = vmatprep.subr.bf16.mxu0 0
        %628 = vmatpush2.bf16.msra.mxu0 0
        %629 = vmatprep.subr.bf16.mxu0 0
        %630 = vmatpush2.bf16.msra.mxu0 0
        %631 = vmatprep.subr.bf16.mxu0 0
        %632 = vmatpush2.bf16.msra.mxu0 0
        %633 = vmatprep.subr.bf16.mxu0 0
        %634 = vmatpush2.bf16.msra.mxu0 0
        %635 = vmatprep.subr.bf16.mxu0 0
        %636 = vmatpush2.bf16.msra.mxu0 0
        %637 = vmatprep.subr.bf16.mxu0 0
        %638 = vmatpush2.bf16.msra.mxu0 0
        %639 = vmatprep.subr.bf16.mxu0 0
        %640 = vmatpush2.bf16.msra.mxu0 0
        %641 = vmatprep.subr.bf16.mxu0 0
        %642 = vmatpush2.bf16.msra.mxu0 0
        %643 = vmatprep.mubr.bf16.mxu0 0
        %644 = vmatmul.mubr.bf16.gmra.mxu0 %v531
        %v645 = vpop.f32.mrf.mxu0
        %v646 = vadd.f32 %v465, %v645
        %v647 = vpop.f32.mrf.mxu0
        %v648 = vpop.f32.mrf.mxu0
        %v649 = vadd.f32 %v465, %v648
        %v650 = vpop.f32.mrf.mxu0
        %651 = vmatprep.mubr.bf16.mxu0 0
        %652 = vmatmul.mubr.bf16.gmra.mxu0 %v532
        %v653 = vpop.f32.mrf.mxu0
        %v654 = vadd.f32 %v465, %v653
        %v655 = vpop.f32.mrf.mxu0
        %v656 = vpop.f32.mrf.mxu0
        %v657 = vadd.f32 %v465, %v656
        %v658 = vpop.f32.mrf.mxu0
        %659 = vmatprep.mubr.bf16.mxu0 0
        %660 = vmatmul.mubr.bf16.gmra.mxu0 %v533
        %v661 = vpop.f32.mrf.mxu0
        %v662 = vadd.f32 %v465, %v661
        %v663 = vpop.f32.mrf.mxu0
        %v664 = vpop.f32.mrf.mxu0
        %v665 = vadd.f32 %v465, %v664
        %v666 = vpop.f32.mrf.mxu0
        %667 = vmatprep.mubr.bf16.mxu0 0
        %668 = vmatmul.mubr.bf16.gmra.mxu0 %v534
        %v669 = vpop.f32.mrf.mxu0
        %v670 = vadd.f32 %v465, %v669
        %v671 = vpop.f32.mrf.mxu0
        %v672 = vpop.f32.mrf.mxu0
        %v673 = vadd.f32 %v465, %v672
        %v674 = vpop.f32.mrf.mxu0
        %675 = vmatprep.mubr.bf16.mxu0 0
        %676 = vmatmul.mubr.bf16.gmra.mxu0 %v535
        %v677 = vpop.f32.mrf.mxu0
        %v678 = vadd.f32 %v465, %v677
        %v679 = vpop.f32.mrf.mxu0
        %v680 = vpop.f32.mrf.mxu0
        %v681 = vadd.f32 %v465, %v680
        %v682 = vpop.f32.mrf.mxu0
        %683 = vmatprep.mubr.bf16.mxu0 0
        %684 = vmatmul.mubr.bf16.gmra.mxu0 %v536
        %v685 = vpop.f32.mrf.mxu0
        %v686 = vadd.f32 %v465, %v685
        %v687 = vpop.f32.mrf.mxu0
        %v688 = vpop.f32.mrf.mxu0
        %v689 = vadd.f32 %v465, %v688
        %v690 = vpop.f32.mrf.mxu0
        %691 = vmatprep.mubr.bf16.mxu0 0
        %692 = vmatmul.mubr.bf16.gmra.mxu0 %v537
        %v693 = vpop.f32.mrf.mxu0
        %v694 = vadd.f32 %v465, %v693
        %v695 = vpop.f32.mrf.mxu0
        %v696 = vpop.f32.mrf.mxu0
        %v697 = vadd.f32 %v465, %v696
        %v698 = vpop.f32.mrf.mxu0
        %699 = vmatprep.mubr.bf16.mxu0 0
        %700 = vmatmul.mubr.bf16.gmra.mxu0 %v538
        %v701 = vpop.f32.mrf.mxu0
        %v702 = vadd.f32 %v465, %v701
        %v703 = vpop.f32.mrf.mxu0
        %v704 = vpop.f32.mrf.mxu0
        %v705 = vadd.f32 %v465, %v704
        %v706 = vpop.f32.mrf.mxu0
        %707 = vmatprep.mubr.bf16.mxu0 0
        %708 = vmatmul.mubr.bf16.gmra.mxu0 %v539
        %v709 = vpop.f32.mrf.mxu0
        %v710 = vadd.f32 %v465, %v709
        %v711 = vpop.f32.mrf.mxu0
        %v712 = vpop.f32.mrf.mxu0
        %v713 = vadd.f32 %v465, %v712
        %v714 = vpop.f32.mrf.mxu0
        %715 = vmatprep.mubr.bf16.mxu0 0
        %716 = vmatmul.mubr.bf16.gmra.mxu0 %v540
        %v717 = vpop.f32.mrf.mxu0
        %v718 = vadd.f32 %v465, %v717
        %v719 = vpop.f32.mrf.mxu0
        %v720 = vpop.f32.mrf.mxu0
        %v721 = vadd.f32 %v465, %v720
        %v722 = vpop.f32.mrf.mxu0
        %723 = vmatprep.mubr.bf16.mxu0 0
        %724 = vmatmul.mubr.bf16.gmra.mxu0 %v541
        %v725 = vpop.f32.mrf.mxu0
        %v726 = vadd.f32 %v465, %v725
        %v727 = vpop.f32.mrf.mxu0
        %v728 = vpop.f32.mrf.mxu0
        %v729 = vadd.f32 %v465, %v728
        %v730 = vpop.f32.mrf.mxu0
        %731 = vmatprep.mubr.bf16.mxu0 0
        %732 = vmatmul.mubr.bf16.gmra.mxu0 %v542
        %v733 = vpop.f32.mrf.mxu0
        %v734 = vadd.f32 %v465, %v733
        %v735 = vpop.f32.mrf.mxu0
        %v736 = vpop.f32.mrf.mxu0
        %v737 = vadd.f32 %v465, %v736
        %v738 = vpop.f32.mrf.mxu0
        %739 = vmatprep.mubr.bf16.mxu0 0
        %740 = vmatmul.mubr.bf16.gmra.mxu0 %v543
        %v741 = vpop.f32.mrf.mxu0
        %v742 = vadd.f32 %v465, %v741
        %v743 = vpop.f32.mrf.mxu0
        %v744 = vpop.f32.mrf.mxu0
        %v745 = vadd.f32 %v465, %v744
        %v746 = vpop.f32.mrf.mxu0
        %747 = vmatprep.mubr.bf16.mxu0 0
        %748 = vmatmul.mubr.bf16.gmra.mxu0 %v544
        %v749 = vpop.f32.mrf.mxu0
        %v750 = vadd.f32 %v465, %v749
        %v751 = vpop.f32.mrf.mxu0
        %v752 = vpop.f32.mrf.mxu0
        %v753 = vadd.f32 %v465, %v752
        %v754 = vpop.f32.mrf.mxu0
        %755 = vmatprep.mubr.bf16.mxu0 0
        %756 = vmatmul.mubr.bf16.gmra.mxu0 %v545
        %v757 = vpop.f32.mrf.mxu0
        %v758 = vadd.f32 %v465, %v757
        %v759 = vpop.f32.mrf.mxu0
        %v760 = vpop.f32.mrf.mxu0
        %v761 = vadd.f32 %v465, %v760
        %v762 = vpop.f32.mrf.mxu0
        %763 = vmatprep.mubr.bf16.mxu0 0
        %764 = vmatmul.mubr.bf16.gmra.mxu0 %v546
        %v765 = vpop.f32.mrf.mxu0
        %v766 = vadd.f32 %v465, %v765
        %v767 = vpop.f32.mrf.mxu0
        %v768 = vpop.f32.mrf.mxu0
        %v769 = vadd.f32 %v465, %v768
        %v770 = vpop.f32.mrf.mxu0
        %771 = vdwg.mxu0
        %v772 = vmax.f32 %v646, 0.0
        %v773 = vmax.f32 %v649, 0.0
        %v774 = vmax.f32 %v654, 0.0
        %v775 = vmax.f32 %v657, 0.0
        %v776 = vmax.f32 %v662, 0.0
        %v777 = vmax.f32 %v665, 0.0
        %v778 = vmax.f32 %v670, 0.0
        %v779 = vmax.f32 %v673, 0.0
        %v780 = vmax.f32 %v678, 0.0
        %v781 = vmax.f32 %v681, 0.0
        %v782 = vmax.f32 %v686, 0.0
        %v783 = vmax.f32 %v689, 0.0
        %v784 = vmax.f32 %v694, 0.0
        %v785 = vmax.f32 %v697, 0.0
        %v786 = vmax.f32 %v702, 0.0
        %v787 = vmax.f32 %v705, 0.0
        %v788 = vmax.f32 %v710, 0.0
        %v789 = vmax.f32 %v713, 0.0
        %v790 = vmax.f32 %v718, 0.0
        %v791 = vmax.f32 %v721, 0.0
        %v792 = vmax.f32 %v726, 0.0
        %v793 = vmax.f32 %v729, 0.0
        %v794 = vmax.f32 %v734, 0.0
        %v795 = vmax.f32 %v737, 0.0
        %v796 = vmax.f32 %v742, 0.0
        %v797 = vmax.f32 %v745, 0.0
        %v798 = vmax.f32 %v750, 0.0
        %v799 = vmax.f32 %v753, 0.0
        %v800 = vmax.f32 %v758, 0.0
        %v801 = vmax.f32 %v761, 0.0
        %v802 = vmax.f32 %v766, 0.0
        %v803 = vmax.f32 %v769, 0.0
        %804 = vst [vmem:[#allocation2] sm:$0xff] 0.0
        %805 = vst [vmem:[#allocation2 + $0x8] sm:$0xff] 0.0
        %806 = vst [vmem:[#allocation2 + $0x10] sm:$0xff] 0.0
        %807 = vst [vmem:[#allocation2 + $0x118] sm:$0xff] 0.0
        %808 = vst [vmem:[#allocation2 + $0x120] sm:$0xff] 0.0
        %809 = vst [vmem:[#allocation2 + $0x128] sm:$0xff] 0.0
        %810 = vst [vmem:[#allocation2 + $0x18] sm:$0xff] %v772
        %811 = vst [vmem:[#allocation2 + $0x20] sm:$0xff] %v773
        %812 = vst [vmem:[#allocation2 + $0x28] sm:$0xff] %v774
        %813 = vst [vmem:[#allocation2 + $0x30] sm:$0xff] %v775
        %814 = vst [vmem:[#allocation2 + $0x38] sm:$0xff] %v776
        %815 = vst [vmem:[#allocation2 + $0x40] sm:$0xff] %v777
        %816 = vst [vmem:[#allocation2 + $0x48] sm:$0xff] %v778
        %817 = vst [vmem:[#allocation2 + $0x50] sm:$0xff] %v779
        %818 = vst [vmem:[#allocation2 + $0x58] sm:$0xff] %v780
        %819 = vst [vmem:[#allocation2 + $0x60] sm:$0xff] %v781
        %820 = vst [vmem:[#allocation2 + $0x68] sm:$0xff] %v782
        %821 = vst [vmem:[#allocation2 + $0x70] sm:$0xff] %v783
        %822 = vst [vmem:[#allocation2 + $0x78] sm:$0xff] %v784
        %823 = vst [vmem:[#allocation2 + $0x80] sm:$0xff] %v785
        %824 = vst [vmem:[#allocation2 + $0x88] sm:$0xff] %v786
        %825 = vst [vmem:[#allocation2 + $0x90] sm:$0xff] %v787
        %826 = vst [vmem:[#allocation2 + $0x98] sm:$0xff] %v788
        %827 = vst [vmem:[#allocation2 + $0xa0] sm:$0xff] %v789
        %828 = vst [vmem:[#allocation2 + $0xa8] sm:$0xff] %v790
        %829 = vst [vmem:[#allocation2 + $0xb0] sm:$0xff] %v791
        %830 = vst [vmem:[#allocation2 + $0xb8] sm:$0xff] %v792
        %831 = vst [vmem:[#allocation2 + $0xc0] sm:$0xff] %v793
        %832 = vst [vmem:[#allocation2 + $0xc8] sm:$0xff] %v794
        %833 = vst [vmem:[#allocation2 + $0xd0] sm:$0xff] %v795
        %834 = vst [vmem:[#allocation2 + $0xd8] sm:$0xff] %v796
        %835 = vst [vmem:[#allocation2 + $0xe0] sm:$0xff] %v797
        %836 = vst [vmem:[#allocation2 + $0xe8] sm:$0xff] %v798
        %837 = vst [vmem:[#allocation2 + $0xf0] sm:$0xff] %v799
        %838 = vst [vmem:[#allocation2 + $0xf8] sm:$0xff] %v800
        %839 = vst [vmem:[#allocation2 + $0x100] sm:$0xff] %v801
        %840 = vst [vmem:[#allocation2 + $0x108] sm:$0xff] %v802
        %841 = vst [vmem:[#allocation2 + $0x110] sm:$0xff] %v803
        %v842 = vlaneseq
        %v843 = vshrl.u32 %v842, 7
        %v844 = vadd.s32 %v843, 8
        %v845 = vadd.s32 %v843, 16
        %v846 = vadd.s32 %v843, 24
        %v847 = vadd.s32 %v843, 32
        %v848 = vadd.s32 %v843, 40
        %v849 = vadd.s32 %v843, 48
        %v850 = vadd.s32 %v843, 56
        %v851 = vadd.s32 %v843, 64
        %v852 = vadd.s32 %v843, 72
        %v853 = vadd.s32 %v843, 80
        %v854 = vadd.s32 %v843, 88
        %v855 = vadd.s32 %v843, 96
        %v856 = vadd.s32 %v843, 104
        %v857 = vadd.s32 %v843, 112
        %v858 = vadd.s32 %v843, 120
        %v859 = vadd.s32 %v843, 128
        %v860 = vadd.s32 %v843, 136
        %v861 = vadd.s32 %v843, 144
        %v862 = vadd.s32 %v843, 152
        %v863 = vadd.s32 %v843, 160
        %v864 = vadd.s32 %v843, 168
        %v865 = vadd.s32 %v843, 176
        %v866 = vadd.s32 %v843, 184
        %v867 = vadd.s32 %v843, 192
        %v868 = vadd.s32 %v843, 200
        %v869 = vadd.s32 %v843, 208
        %v870 = vadd.s32 %v843, 216
        %v871 = vadd.s32 %v843, 224
        %v872 = vadd.s32 %v843, 232
        %v873 = vadd.s32 %v843, 240
        %v874 = vadd.s32 %v843, 248
        %vm875 = vcmp.lt.s32.totalorder %v843, 0
        %v876 = vsub.s32 0, %v843
        %v877 = vsel %vm875, %v876, %v843
        %v878 = vshrl.u32 %v877, 4
        %v879 = vand.u32 %v877, 15
        %v880 = vsub.s32 0, %v879
        %v881 = vsel %vm875, %v880, %v879
        %vm882 = vcmp.lt.s32.totalorder %v844, 0
        %v883 = vsub.s32 0, %v844
        %v884 = vsel %vm882, %v883, %v844
        %v885 = vshrl.u32 %v884, 4
        %v886 = vand.u32 %v884, 15
        %v887 = vsub.s32 0, %v886
        %v888 = vsel %vm882, %v887, %v886
        %vm889 = vcmp.lt.s32.totalorder %v845, 0
        %v890 = vsub.s32 0, %v845
        %v891 = vsel %vm889, %v890, %v845
        %v892 = vshrl.u32 %v891, 4
        %v893 = vand.u32 %v891, 15
        %v894 = vsub.s32 0, %v893
        %v895 = vsel %vm889, %v894, %v893
        %vm896 = vcmp.lt.s32.totalorder %v846, 0
        %v897 = vsub.s32 0, %v846
        %v898 = vsel %vm896, %v897, %v846
        %v899 = vshrl.u32 %v898, 4
        %v900 = vand.u32 %v898, 15
        %v901 = vsub.s32 0, %v900
        %v902 = vsel %vm896, %v901, %v900
        %vm903 = vcmp.lt.s32.totalorder %v847, 0
        %v904 = vsub.s32 0, %v847
        %v905 = vsel %vm903, %v904, %v847
        %v906 = vshrl.u32 %v905, 4
        %v907 = vand.u32 %v905, 15
        %v908 = vsub.s32 0, %v907
        %v909 = vsel %vm903, %v908, %v907
        %vm910 = vcmp.lt.s32.totalorder %v848, 0
        %v911 = vsub.s32 0, %v848
        %v912 = vsel %vm910, %v911, %v848
        %v913 = vshrl.u32 %v912, 4
        %v914 = vand.u32 %v912, 15
        %v915 = vsub.s32 0, %v914
        %v916 = vsel %vm910, %v915, %v914
        %vm917 = vcmp.lt.s32.totalorder %v849, 0
        %v918 = vsub.s32 0, %v849
        %v919 = vsel %vm917, %v918, %v849
        %v920 = vshrl.u32 %v919, 4
        %v921 = vand.u32 %v919, 15
        %v922 = vsub.s32 0, %v921
        %v923 = vsel %vm917, %v922, %v921
        %vm924 = vcmp.lt.s32.totalorder %v850, 0
        %v925 = vsub.s32 0, %v850
        %v926 = vsel %vm924, %v925, %v850
        %v927 = vshrl.u32 %v926, 4
        %v928 = vand.u32 %v926, 15
        %v929 = vsub.s32 0, %v928
        %v930 = vsel %vm924, %v929, %v928
        %vm931 = vcmp.lt.s32.totalorder %v851, 0
        %v932 = vsub.s32 0, %v851
        %v933 = vsel %vm931, %v932, %v851
        %v934 = vshrl.u32 %v933, 4
        %v935 = vand.u32 %v933, 15
        %v936 = vsub.s32 0, %v935
        %v937 = vsel %vm931, %v936, %v935
        %vm938 = vcmp.lt.s32.totalorder %v852, 0
        %v939 = vsub.s32 0, %v852
        %v940 = vsel %vm938, %v939, %v852
        %v941 = vshrl.u32 %v940, 4
        %v942 = vand.u32 %v940, 15
        %v943 = vsub.s32 0, %v942
        %v944 = vsel %vm938, %v943, %v942
        %vm945 = vcmp.lt.s32.totalorder %v853, 0
        %v946 = vsub.s32 0, %v853
        %v947 = vsel %vm945, %v946, %v853
        %v948 = vshrl.u32 %v947, 4
        %v949 = vand.u32 %v947, 15
        %v950 = vsub.s32 0, %v949
        %v951 = vsel %vm945, %v950, %v949
        %vm952 = vcmp.lt.s32.totalorder %v854, 0
        %v953 = vsub.s32 0, %v854
        %v954 = vsel %vm952, %v953, %v854
        %v955 = vshrl.u32 %v954, 4
        %v956 = vand.u32 %v954, 15
        %v957 = vsub.s32 0, %v956
        %v958 = vsel %vm952, %v957, %v956
        %vm959 = vcmp.lt.s32.totalorder %v855, 0
        %v960 = vsub.s32 0, %v855
        %v961 = vsel %vm959, %v960, %v855
        %v962 = vshrl.u32 %v961, 4
        %v963 = vand.u32 %v961, 15
        %v964 = vsub.s32 0, %v963
        %v965 = vsel %vm959, %v964, %v963
        %vm966 = vcmp.lt.s32.totalorder %v856, 0
        %v967 = vsub.s32 0, %v856
        %v968 = vsel %vm966, %v967, %v856
        %v969 = vshrl.u32 %v968, 4
        %v970 = vand.u32 %v968, 15
        %v971 = vsub.s32 0, %v970
        %v972 = vsel %vm966, %v971, %v970
        %vm973 = vcmp.lt.s32.totalorder %v857, 0
        %v974 = vsub.s32 0, %v857
        %v975 = vsel %vm973, %v974, %v857
        %v976 = vshrl.u32 %v975, 4
        %v977 = vand.u32 %v975, 15
        %v978 = vsub.s32 0, %v977
        %v979 = vsel %vm973, %v978, %v977
        %vm980 = vcmp.lt.s32.totalorder %v858, 0
        %v981 = vsub.s32 0, %v858
        %v982 = vsel %vm980, %v981, %v858
        %v983 = vshrl.u32 %v982, 4
        %v984 = vand.u32 %v982, 15
        %v985 = vsub.s32 0, %v984
        %v986 = vsel %vm980, %v985, %v984
        %vm987 = vcmp.lt.s32.totalorder %v859, 0
        %v988 = vsub.s32 0, %v859
        %v989 = vsel %vm987, %v988, %v859
        %v990 = vshrl.u32 %v989, 4
        %v991 = vand.u32 %v989, 15
        %v992 = vsub.s32 0, %v991
        %v993 = vsel %vm987, %v992, %v991
        %vm994 = vcmp.lt.s32.totalorder %v860, 0
        %v995 = vsub.s32 0, %v860
        %v996 = vsel %vm994, %v995, %v860
        %v997 = vshrl.u32 %v996, 4
        %v998 = vand.u32 %v996, 15
        %v999 = vsub.s32 0, %v998
        %v1000 = vsel %vm994, %v999, %v998
        %vm1001 = vcmp.lt.s32.totalorder %v861, 0
        %v1002 = vsub.s32 0, %v861
        %v1003 = vsel %vm1001, %v1002, %v861
        %v1004 = vshrl.u32 %v1003, 4
        %v1005 = vand.u32 %v1003, 15
        %v1006 = vsub.s32 0, %v1005
        %v1007 = vsel %vm1001, %v1006, %v1005
        %vm1008 = vcmp.lt.s32.totalorder %v862, 0
        %v1009 = vsub.s32 0, %v862
        %v1010 = vsel %vm1008, %v1009, %v862
        %v1011 = vshrl.u32 %v1010, 4
        %v1012 = vand.u32 %v1010, 15
        %v1013 = vsub.s32 0, %v1012
        %v1014 = vsel %vm1008, %v1013, %v1012
        %vm1015 = vcmp.lt.s32.totalorder %v863, 0
        %v1016 = vsub.s32 0, %v863
        %v1017 = vsel %vm1015, %v1016, %v863
        %v1018 = vshrl.u32 %v1017, 4
        %v1019 = vand.u32 %v1017, 15
        %v1020 = vsub.s32 0, %v1019
        %v1021 = vsel %vm1015, %v1020, %v1019
        %vm1022 = vcmp.lt.s32.totalorder %v864, 0
        %v1023 = vsub.s32 0, %v864
        %v1024 = vsel %vm1022, %v1023, %v864
        %v1025 = vshrl.u32 %v1024, 4
        %v1026 = vand.u32 %v1024, 15
        %v1027 = vsub.s32 0, %v1026
        %v1028 = vsel %vm1022, %v1027, %v1026
        %vm1029 = vcmp.lt.s32.totalorder %v865, 0
        %v1030 = vsub.s32 0, %v865
        %v1031 = vsel %vm1029, %v1030, %v865
        %v1032 = vshrl.u32 %v1031, 4
        %v1033 = vand.u32 %v1031, 15
        %v1034 = vsub.s32 0, %v1033
        %v1035 = vsel %vm1029, %v1034, %v1033
        %vm1036 = vcmp.lt.s32.totalorder %v866, 0
        %v1037 = vsub.s32 0, %v866
        %v1038 = vsel %vm1036, %v1037, %v866
        %v1039 = vshrl.u32 %v1038, 4
        %v1040 = vand.u32 %v1038, 15
        %v1041 = vsub.s32 0, %v1040
        %v1042 = vsel %vm1036, %v1041, %v1040
        %vm1043 = vcmp.lt.s32.totalorder %v867, 0
        %v1044 = vsub.s32 0, %v867
        %v1045 = vsel %vm1043, %v1044, %v867
        %v1046 = vshrl.u32 %v1045, 4
        %v1047 = vand.u32 %v1045, 15
        %v1048 = vsub.s32 0, %v1047
        %v1049 = vsel %vm1043, %v1048, %v1047
        %vm1050 = vcmp.lt.s32.totalorder %v868, 0
        %v1051 = vsub.s32 0, %v868
        %v1052 = vsel %vm1050, %v1051, %v868
        %v1053 = vshrl.u32 %v1052, 4
        %v1054 = vand.u32 %v1052, 15
        %v1055 = vsub.s32 0, %v1054
        %v1056 = vsel %vm1050, %v1055, %v1054
        %vm1057 = vcmp.lt.s32.totalorder %v869, 0
        %v1058 = vsub.s32 0, %v869
        %v1059 = vsel %vm1057, %v1058, %v869
        %v1060 = vshrl.u32 %v1059, 4
        %v1061 = vand.u32 %v1059, 15
        %v1062 = vsub.s32 0, %v1061
        %v1063 = vsel %vm1057, %v1062, %v1061
        %vm1064 = vcmp.lt.s32.totalorder %v870, 0
        %v1065 = vsub.s32 0, %v870
        %v1066 = vsel %vm1064, %v1065, %v870
        %v1067 = vshrl.u32 %v1066, 4
        %v1068 = vand.u32 %v1066, 15
        %v1069 = vsub.s32 0, %v1068
        %v1070 = vsel %vm1064, %v1069, %v1068
        %vm1071 = vcmp.lt.s32.totalorder %v871, 0
        %v1072 = vsub.s32 0, %v871
        %v1073 = vsel %vm1071, %v1072, %v871
        %v1074 = vshrl.u32 %v1073, 4
        %v1075 = vand.u32 %v1073, 15
        %v1076 = vsub.s32 0, %v1075
        %v1077 = vsel %vm1071, %v1076, %v1075
        %vm1078 = vcmp.lt.s32.totalorder %v872, 0
        %v1079 = vsub.s32 0, %v872
        %v1080 = vsel %vm1078, %v1079, %v872
        %v1081 = vshrl.u32 %v1080, 4
        %v1082 = vand.u32 %v1080, 15
        %v1083 = vsub.s32 0, %v1082
        %v1084 = vsel %vm1078, %v1083, %v1082
        %vm1085 = vcmp.lt.s32.totalorder %v873, 0
        %v1086 = vsub.s32 0, %v873
        %v1087 = vsel %vm1085, %v1086, %v873
        %v1088 = vshrl.u32 %v1087, 4
        %v1089 = vand.u32 %v1087, 15
        %v1090 = vsub.s32 0, %v1089
        %v1091 = vsel %vm1085, %v1090, %v1089
        %vm1092 = vcmp.lt.s32.totalorder %v874, 0
        %v1093 = vsub.s32 0, %v874
        %v1094 = vsel %vm1092, %v1093, %v874
        %v1095 = vshrl.u32 %v1094, 4
        %v1096 = vand.u32 %v1094, 15
        %v1097 = vsub.s32 0, %v1096
        %v1098 = vsel %vm1092, %v1097, %v1096
        %vm1099 = vcmp.ne.s32.totalorder %v881, 0
        %vm1100 = vcmp.ne.s32.totalorder %v888, 0
        %vm1101 = vcmp.ne.s32.totalorder %v895, 0
        %vm1102 = vcmp.ne.s32.totalorder %v902, 0
        %vm1103 = vcmp.ne.s32.totalorder %v909, 0
        %vm1104 = vcmp.ne.s32.totalorder %v916, 0
        %vm1105 = vcmp.ne.s32.totalorder %v923, 0
        %vm1106 = vcmp.ne.s32.totalorder %v930, 0
        %vm1107 = vcmp.ne.s32.totalorder %v937, 0
        %vm1108 = vcmp.ne.s32.totalorder %v944, 0
        %vm1109 = vcmp.ne.s32.totalorder %v951, 0
        %vm1110 = vcmp.ne.s32.totalorder %v958, 0
        %vm1111 = vcmp.ne.s32.totalorder %v965, 0
        %vm1112 = vcmp.ne.s32.totalorder %v972, 0
        %vm1113 = vcmp.ne.s32.totalorder %v979, 0
        %vm1114 = vcmp.ne.s32.totalorder %v986, 0
        %vm1115 = vcmp.ne.s32.totalorder %v993, 0
        %vm1116 = vcmp.ne.s32.totalorder %v1000, 0
        %vm1117 = vcmp.ne.s32.totalorder %v1007, 0
        %vm1118 = vcmp.ne.s32.totalorder %v1014, 0
        %vm1119 = vcmp.ne.s32.totalorder %v1021, 0
        %vm1120 = vcmp.ne.s32.totalorder %v1028, 0
        %vm1121 = vcmp.ne.s32.totalorder %v1035, 0
        %vm1122 = vcmp.ne.s32.totalorder %v1042, 0
        %vm1123 = vcmp.ne.s32.totalorder %v1049, 0
        %vm1124 = vcmp.ne.s32.totalorder %v1056, 0
        %vm1125 = vcmp.ne.s32.totalorder %v1063, 0
        %vm1126 = vcmp.ne.s32.totalorder %v1070, 0
        %vm1127 = vcmp.ne.s32.totalorder %v1077, 0
        %vm1128 = vcmp.ne.s32.totalorder %v1084, 0
        %vm1129 = vcmp.ne.s32.totalorder %v1091, 0
        %vm1130 = vcmp.ne.s32.totalorder %v1098, 0
        %vm1131 = vcmp.lt.s32.totalorder %v881, 0
        %vm1132 = vcmp.lt.s32.totalorder %v888, 0
        %vm1133 = vcmp.lt.s32.totalorder %v895, 0
        %vm1134 = vcmp.lt.s32.totalorder %v902, 0
        %vm1135 = vcmp.lt.s32.totalorder %v909, 0
        %vm1136 = vcmp.lt.s32.totalorder %v916, 0
        %vm1137 = vcmp.lt.s32.totalorder %v923, 0
        %vm1138 = vcmp.lt.s32.totalorder %v930, 0
        %vm1139 = vcmp.lt.s32.totalorder %v937, 0
        %vm1140 = vcmp.lt.s32.totalorder %v944, 0
        %vm1141 = vcmp.lt.s32.totalorder %v951, 0
        %vm1142 = vcmp.lt.s32.totalorder %v958, 0
        %vm1143 = vcmp.lt.s32.totalorder %v965, 0
        %vm1144 = vcmp.lt.s32.totalorder %v972, 0
        %vm1145 = vcmp.lt.s32.totalorder %v979, 0
        %vm1146 = vcmp.lt.s32.totalorder %v986, 0
        %vm1147 = vcmp.lt.s32.totalorder %v993, 0
        %vm1148 = vcmp.lt.s32.totalorder %v1000, 0
        %vm1149 = vcmp.lt.s32.totalorder %v1007, 0
        %vm1150 = vcmp.lt.s32.totalorder %v1014, 0
        %vm1151 = vcmp.lt.s32.totalorder %v1021, 0
        %vm1152 = vcmp.lt.s32.totalorder %v1028, 0
        %vm1153 = vcmp.lt.s32.totalorder %v1035, 0
        %vm1154 = vcmp.lt.s32.totalorder %v1042, 0
        %vm1155 = vcmp.lt.s32.totalorder %v1049, 0
        %vm1156 = vcmp.lt.s32.totalorder %v1056, 0
        %vm1157 = vcmp.lt.s32.totalorder %v1063, 0
        %vm1158 = vcmp.lt.s32.totalorder %v1070, 0
        %vm1159 = vcmp.lt.s32.totalorder %v1077, 0
        %vm1160 = vcmp.lt.s32.totalorder %v1084, 0
        %vm1161 = vcmp.lt.s32.totalorder %v1091, 0
        %vm1162 = vcmp.lt.s32.totalorder %v1098, 0
        %vm1163 = vmand %vm1131, %vm1099
        %vm1164 = vmand %vm1132, %vm1100
        %vm1165 = vmand %vm1133, %vm1101
        %vm1166 = vmand %vm1134, %vm1102
        %vm1167 = vmand %vm1135, %vm1103
        %vm1168 = vmand %vm1136, %vm1104
        %vm1169 = vmand %vm1137, %vm1105
        %vm1170 = vmand %vm1138, %vm1106
        %vm1171 = vmand %vm1139, %vm1107
        %vm1172 = vmand %vm1140, %vm1108
        %vm1173 = vmand %vm1141, %vm1109
        %vm1174 = vmand %vm1142, %vm1110
        %vm1175 = vmand %vm1143, %vm1111
        %vm1176 = vmand %vm1144, %vm1112
        %vm1177 = vmand %vm1145, %vm1113
        %vm1178 = vmand %vm1146, %vm1114
        %vm1179 = vmand %vm1147, %vm1115
        %vm1180 = vmand %vm1148, %vm1116
        %vm1181 = vmand %vm1149, %vm1117
        %vm1182 = vmand %vm1150, %vm1118
        %vm1183 = vmand %vm1151, %vm1119
        %vm1184 = vmand %vm1152, %vm1120
        %vm1185 = vmand %vm1153, %vm1121
        %vm1186 = vmand %vm1154, %vm1122
        %vm1187 = vmand %vm1155, %vm1123
        %vm1188 = vmand %vm1156, %vm1124
        %vm1189 = vmand %vm1157, %vm1125
        %vm1190 = vmand %vm1158, %vm1126
        %vm1191 = vmand %vm1159, %vm1127
        %vm1192 = vmand %vm1160, %vm1128
        %vm1193 = vmand %vm1161, %vm1129
        %vm1194 = vmand %vm1162, %vm1130
        %v1195 = vadd.s32 %v881, 16
        %v1196 = vadd.s32 %v888, 16
        %v1197 = vadd.s32 %v895, 16
        %v1198 = vadd.s32 %v902, 16
        %v1199 = vadd.s32 %v909, 16
        %v1200 = vadd.s32 %v916, 16
        %v1201 = vadd.s32 %v923, 16
        %v1202 = vadd.s32 %v930, 16
        %v1203 = vadd.s32 %v937, 16
        %v1204 = vadd.s32 %v944, 16
        %v1205 = vadd.s32 %v951, 16
        %v1206 = vadd.s32 %v958, 16
        %v1207 = vadd.s32 %v965, 16
        %v1208 = vadd.s32 %v972, 16
        %v1209 = vadd.s32 %v979, 16
        %v1210 = vadd.s32 %v986, 16
        %v1211 = vadd.s32 %v993, 16
        %v1212 = vadd.s32 %v1000, 16
        %v1213 = vadd.s32 %v1007, 16
        %v1214 = vadd.s32 %v1014, 16
        %v1215 = vadd.s32 %v1021, 16
        %v1216 = vadd.s32 %v1028, 16
        %v1217 = vadd.s32 %v1035, 16
        %v1218 = vadd.s32 %v1042, 16
        %v1219 = vadd.s32 %v1049, 16
        %v1220 = vadd.s32 %v1056, 16
        %v1221 = vadd.s32 %v1063, 16
        %v1222 = vadd.s32 %v1070, 16
        %v1223 = vadd.s32 %v1077, 16
        %v1224 = vadd.s32 %v1084, 16
        %v1225 = vadd.s32 %v1091, 16
        %v1226 = vadd.s32 %v1098, 16
        %v1227 = vsel %vm1163, %v1195, %v881
        %v1228 = vsel %vm1164, %v1196, %v888
        %v1229 = vsel %vm1165, %v1197, %v895
        %v1230 = vsel %vm1166, %v1198, %v902
        %v1231 = vsel %vm1167, %v1199, %v909
        %v1232 = vsel %vm1168, %v1200, %v916
        %v1233 = vsel %vm1169, %v1201, %v923
        %v1234 = vsel %vm1170, %v1202, %v930
        %v1235 = vsel %vm1171, %v1203, %v937
        %v1236 = vsel %vm1172, %v1204, %v944
        %v1237 = vsel %vm1173, %v1205, %v951
        %v1238 = vsel %vm1174, %v1206, %v958
        %v1239 = vsel %vm1175, %v1207, %v965
        %v1240 = vsel %vm1176, %v1208, %v972
        %v1241 = vsel %vm1177, %v1209, %v979
        %v1242 = vsel %vm1178, %v1210, %v986
        %v1243 = vsel %vm1179, %v1211, %v993
        %v1244 = vsel %vm1180, %v1212, %v1000
        %v1245 = vsel %vm1181, %v1213, %v1007
        %v1246 = vsel %vm1182, %v1214, %v1014
        %v1247 = vsel %vm1183, %v1215, %v1021
        %v1248 = vsel %vm1184, %v1216, %v1028
        %v1249 = vsel %vm1185, %v1217, %v1035
        %v1250 = vsel %vm1186, %v1218, %v1042
        %v1251 = vsel %vm1187, %v1219, %v1049
        %v1252 = vsel %vm1188, %v1220, %v1056
        %v1253 = vsel %vm1189, %v1221, %v1063
        %v1254 = vsel %vm1190, %v1222, %v1070
        %v1255 = vsel %vm1191, %v1223, %v1077
        %v1256 = vsel %vm1192, %v1224, %v1084
        %v1257 = vsel %vm1193, %v1225, %v1091
        %v1258 = vsel %vm1194, %v1226, %v1098
        %vm1259 = vcmp.ge.s32.totalorder %v1227, 1
        %vm1260 = vcmp.ge.s32.totalorder %v1228, 1
        %vm1261 = vcmp.ge.s32.totalorder %v1229, 1
        %vm1262 = vcmp.ge.s32.totalorder %v1230, 1
        %vm1263 = vcmp.ge.s32.totalorder %v1231, 1
        %vm1264 = vcmp.ge.s32.totalorder %v1232, 1
        %vm1265 = vcmp.ge.s32.totalorder %v1233, 1
        %vm1266 = vcmp.ge.s32.totalorder %v1234, 1
        %vm1267 = vcmp.ge.s32.totalorder %v1235, 1
        %vm1268 = vcmp.ge.s32.totalorder %v1236, 1
        %vm1269 = vcmp.ge.s32.totalorder %v1237, 1
        %vm1270 = vcmp.ge.s32.totalorder %v1238, 1
        %vm1271 = vcmp.ge.s32.totalorder %v1239, 1
        %vm1272 = vcmp.ge.s32.totalorder %v1240, 1
        %vm1273 = vcmp.ge.s32.totalorder %v1241, 1
        %vm1274 = vcmp.ge.s32.totalorder %v1242, 1
        %vm1275 = vcmp.ge.s32.totalorder %v1243, 1
        %vm1276 = vcmp.ge.s32.totalorder %v1244, 1
        %vm1277 = vcmp.ge.s32.totalorder %v1245, 1
        %vm1278 = vcmp.ge.s32.totalorder %v1246, 1
        %vm1279 = vcmp.ge.s32.totalorder %v1247, 1
        %vm1280 = vcmp.ge.s32.totalorder %v1248, 1
        %vm1281 = vcmp.ge.s32.totalorder %v1249, 1
        %vm1282 = vcmp.ge.s32.totalorder %v1250, 1
        %vm1283 = vcmp.ge.s32.totalorder %v1251, 1
        %vm1284 = vcmp.ge.s32.totalorder %v1252, 1
        %vm1285 = vcmp.ge.s32.totalorder %v1253, 1
        %vm1286 = vcmp.ge.s32.totalorder %v1254, 1
        %vm1287 = vcmp.ge.s32.totalorder %v1255, 1
        %vm1288 = vcmp.ge.s32.totalorder %v1256, 1
        %vm1289 = vcmp.ge.s32.totalorder %v1257, 1
        %vm1290 = vcmp.ge.s32.totalorder %v1258, 1
        %vm1291 = vcmp.lt.s32.totalorder %v1227, 15
        %vm1292 = vcmp.lt.s32.totalorder %v1228, 15
        %vm1293 = vcmp.lt.s32.totalorder %v1229, 15
        %vm1294 = vcmp.lt.s32.totalorder %v1230, 15
        %vm1295 = vcmp.lt.s32.totalorder %v1231, 15
        %vm1296 = vcmp.lt.s32.totalorder %v1232, 15
        %vm1297 = vcmp.lt.s32.totalorder %v1233, 15
        %vm1298 = vcmp.lt.s32.totalorder %v1234, 15
        %vm1299 = vcmp.lt.s32.totalorder %v1235, 15
        %vm1300 = vcmp.lt.s32.totalorder %v1236, 15
        %vm1301 = vcmp.lt.s32.totalorder %v1237, 15
        %vm1302 = vcmp.lt.s32.totalorder %v1238, 15
        %vm1303 = vcmp.lt.s32.totalorder %v1239, 15
        %vm1304 = vcmp.lt.s32.totalorder %v1240, 15
        %vm1305 = vcmp.lt.s32.totalorder %v1241, 15
        %vm1306 = vcmp.lt.s32.totalorder %v1242, 15
        %vm1307 = vcmp.lt.s32.totalorder %v1243, 15
        %vm1308 = vcmp.lt.s32.totalorder %v1244, 15
        %vm1309 = vcmp.lt.s32.totalorder %v1245, 15
        %vm1310 = vcmp.lt.s32.totalorder %v1246, 15
        %vm1311 = vcmp.lt.s32.totalorder %v1247, 15
        %vm1312 = vcmp.lt.s32.totalorder %v1248, 15
        %vm1313 = vcmp.lt.s32.totalorder %v1249, 15
        %vm1314 = vcmp.lt.s32.totalorder %v1250, 15
        %vm1315 = vcmp.lt.s32.totalorder %v1251, 15
        %vm1316 = vcmp.lt.s32.totalorder %v1252, 15
        %vm1317 = vcmp.lt.s32.totalorder %v1253, 15
        %vm1318 = vcmp.lt.s32.totalorder %v1254, 15
        %vm1319 = vcmp.lt.s32.totalorder %v1255, 15
        %vm1320 = vcmp.lt.s32.totalorder %v1256, 15
        %vm1321 = vcmp.lt.s32.totalorder %v1257, 15
        %vm1322 = vcmp.lt.s32.totalorder %v1258, 15
        %v1323 = vld [vmem:[#allocation2 + $0x7] sm:$0xff]
        %v1324 = vld [vmem:[#allocation2 + $0xf] sm:$0xff]
        %v1325 = vld [vmem:[#allocation2 + $0x17] sm:$0xff]
        %v1326 = vld [vmem:[#allocation2 + $0x1f] sm:$0xff]
        %v1327 = vld [vmem:[#allocation2 + $0x27] sm:$0xff]
        %v1328 = vld [vmem:[#allocation2 + $0x2f] sm:$0xff]
        %v1329 = vld [vmem:[#allocation2 + $0x37] sm:$0xff]
        %v1330 = vld [vmem:[#allocation2 + $0x3f] sm:$0xff]
        %v1331 = vld [vmem:[#allocation2 + $0x47] sm:$0xff]
        %v1332 = vld [vmem:[#allocation2 + $0x4f] sm:$0xff]
        %v1333 = vld [vmem:[#allocation2 + $0x57] sm:$0xff]
        %v1334 = vld [vmem:[#allocation2 + $0x5f] sm:$0xff]
        %v1335 = vld [vmem:[#allocation2 + $0x67] sm:$0xff]
        %v1336 = vld [vmem:[#allocation2 + $0x6f] sm:$0xff]
        %v1337 = vld [vmem:[#allocation2 + $0x77] sm:$0xff]
        %v1338 = vld [vmem:[#allocation2 + $0x7f] sm:$0xff]
        %v1339 = vld [vmem:[#allocation2 + $0x87] sm:$0xff]
        %v1340 = vld [vmem:[#allocation2 + $0x8f] sm:$0xff]
        %v1341 = vld [vmem:[#allocation2 + $0x97] sm:$0xff]
        %v1342 = vld [vmem:[#allocation2 + $0x9f] sm:$0xff]
        %v1343 = vld [vmem:[#allocation2 + $0xa7] sm:$0xff]
        %v1344 = vld [vmem:[#allocation2 + $0xaf] sm:$0xff]
        %v1345 = vld [vmem:[#allocation2 + $0xb7] sm:$0xff]
        %v1346 = vld [vmem:[#allocation2 + $0xbf] sm:$0xff]
        %v1347 = vld [vmem:[#allocation2 + $0xc7] sm:$0xff]
        %v1348 = vld [vmem:[#allocation2 + $0xcf] sm:$0xff]
        %v1349 = vld [vmem:[#allocation2 + $0xd7] sm:$0xff]
        %v1350 = vld [vmem:[#allocation2 + $0xdf] sm:$0xff]
        %v1351 = vld [vmem:[#allocation2 + $0xe7] sm:$0xff]
        %v1352 = vld [vmem:[#allocation2 + $0xef] sm:$0xff]
        %v1353 = vld [vmem:[#allocation2 + $0xf7] sm:$0xff]
        %v1354 = vld [vmem:[#allocation2 + $0xff] sm:$0xff]
        %v1355 = vpack.c.bf16 %v1324, %v1323
        %v1356 = vpack.c.bf16 %v1326, %v1325
        %v1357 = vpack.c.bf16 %v1328, %v1327
        %v1358 = vpack.c.bf16 %v1330, %v1329
        %v1359 = vpack.c.bf16 %v1332, %v1331
        %v1360 = vpack.c.bf16 %v1334, %v1333
        %v1361 = vpack.c.bf16 %v1336, %v1335
        %v1362 = vpack.c.bf16 %v1338, %v1337
        %v1363 = vpack.c.bf16 %v1340, %v1339
        %v1364 = vpack.c.bf16 %v1342, %v1341
        %v1365 = vpack.c.bf16 %v1344, %v1343
        %v1366 = vpack.c.bf16 %v1346, %v1345
        %v1367 = vpack.c.bf16 %v1348, %v1347
        %v1368 = vpack.c.bf16 %v1350, %v1349
        %v1369 = vpack.c.bf16 %v1352, %v1351
        %v1370 = vpack.c.bf16 %v1354, %v1353
        %v1371 = vsel %vm1259, 1, 0
        %v1372 = vsel %vm1260, 1, 0
        %v1373 = vsel %vm1261, 1, 0
        %v1374 = vsel %vm1262, 1, 0
        %v1375 = vsel %vm1263, 1, 0
        %v1376 = vsel %vm1264, 1, 0
        %v1377 = vsel %vm1265, 1, 0
        %v1378 = vsel %vm1266, 1, 0
        %v1379 = vsel %vm1267, 1, 0
        %v1380 = vsel %vm1268, 1, 0
        %v1381 = vsel %vm1269, 1, 0
        %v1382 = vsel %vm1270, 1, 0
        %v1383 = vsel %vm1271, 1, 0
        %v1384 = vsel %vm1272, 1, 0
        %v1385 = vsel %vm1273, 1, 0
        %v1386 = vsel %vm1274, 1, 0
        %v1387 = vsel %vm1275, 1, 0
        %v1388 = vsel %vm1276, 1, 0
        %v1389 = vsel %vm1277, 1, 0
        %v1390 = vsel %vm1278, 1, 0
        %v1391 = vsel %vm1279, 1, 0
        %v1392 = vsel %vm1280, 1, 0
        %v1393 = vsel %vm1281, 1, 0
        %v1394 = vsel %vm1282, 1, 0
        %v1395 = vsel %vm1283, 1, 0
        %v1396 = vsel %vm1284, 1, 0
        %v1397 = vsel %vm1285, 1, 0
        %v1398 = vsel %vm1286, 1, 0
        %v1399 = vsel %vm1287, 1, 0
        %v1400 = vsel %vm1288, 1, 0
        %v1401 = vsel %vm1289, 1, 0
        %v1402 = vsel %vm1290, 1, 0
        %vm1403 = vcmp.eq.s32.totalorder %v1371, 1
        %vm1404 = vcmp.eq.s32.totalorder %v1372, 1
        %vm1405 = vcmp.eq.s32.totalorder %v1373, 1
        %vm1406 = vcmp.eq.s32.totalorder %v1374, 1
        %vm1407 = vcmp.eq.s32.totalorder %v1375, 1
        %vm1408 = vcmp.eq.s32.totalorder %v1376, 1
        %vm1409 = vcmp.eq.s32.totalorder %v1377, 1
        %vm1410 = vcmp.eq.s32.totalorder %v1378, 1
        %vm1411 = vcmp.eq.s32.totalorder %v1379, 1
        %vm1412 = vcmp.eq.s32.totalorder %v1380, 1
        %vm1413 = vcmp.eq.s32.totalorder %v1381, 1
        %vm1414 = vcmp.eq.s32.totalorder %v1382, 1
        %vm1415 = vcmp.eq.s32.totalorder %v1383, 1
        %vm1416 = vcmp.eq.s32.totalorder %v1384, 1
        %vm1417 = vcmp.eq.s32.totalorder %v1385, 1
        %vm1418 = vcmp.eq.s32.totalorder %v1386, 1
        %vm1419 = vcmp.eq.s32.totalorder %v1387, 1
        %vm1420 = vcmp.eq.s32.totalorder %v1388, 1
        %vm1421 = vcmp.eq.s32.totalorder %v1389, 1
        %vm1422 = vcmp.eq.s32.totalorder %v1390, 1
        %vm1423 = vcmp.eq.s32.totalorder %v1391, 1
        %vm1424 = vcmp.eq.s32.totalorder %v1392, 1
        %vm1425 = vcmp.eq.s32.totalorder %v1393, 1
        %vm1426 = vcmp.eq.s32.totalorder %v1394, 1
        %vm1427 = vcmp.eq.s32.totalorder %v1395, 1
        %vm1428 = vcmp.eq.s32.totalorder %v1396, 1
        %vm1429 = vcmp.eq.s32.totalorder %v1397, 1
        %vm1430 = vcmp.eq.s32.totalorder %v1398, 1
        %vm1431 = vcmp.eq.s32.totalorder %v1399, 1
        %vm1432 = vcmp.eq.s32.totalorder %v1400, 1
        %vm1433 = vcmp.eq.s32.totalorder %v1401, 1
        %vm1434 = vcmp.eq.s32.totalorder %v1402, 1
        %vm1435 = vmpackc.low %vm1403, %vm1403
        %vm1436 = vmpackc.low %vm1404, %vm1404
        %vm1437 = vmpackc.low %vm1405, %vm1405
        %vm1438 = vmpackc.low %vm1406, %vm1406
        %vm1439 = vmpackc.low %vm1407, %vm1407
        %vm1440 = vmpackc.low %vm1408, %vm1408
        %vm1441 = vmpackc.low %vm1409, %vm1409
        %vm1442 = vmpackc.low %vm1410, %vm1410
        %vm1443 = vmpackc.low %vm1411, %vm1411
        %vm1444 = vmpackc.low %vm1412, %vm1412
        %vm1445 = vmpackc.low %vm1413, %vm1413
        %vm1446 = vmpackc.low %vm1414, %vm1414
        %vm1447 = vmpackc.low %vm1415, %vm1415
        %vm1448 = vmpackc.low %vm1416, %vm1416
        %vm1449 = vmpackc.low %vm1417, %vm1417
        %vm1450 = vmpackc.low %vm1418, %vm1418
        %vm1451 = vmpackc.low %vm1419, %vm1419
        %vm1452 = vmpackc.low %vm1420, %vm1420
        %vm1453 = vmpackc.low %vm1421, %vm1421
        %vm1454 = vmpackc.low %vm1422, %vm1422
        %vm1455 = vmpackc.low %vm1423, %vm1423
        %vm1456 = vmpackc.low %vm1424, %vm1424
        %vm1457 = vmpackc.low %vm1425, %vm1425
        %vm1458 = vmpackc.low %vm1426, %vm1426
        %vm1459 = vmpackc.low %vm1427, %vm1427
        %vm1460 = vmpackc.low %vm1428, %vm1428
        %vm1461 = vmpackc.low %vm1429, %vm1429
        %vm1462 = vmpackc.low %vm1430, %vm1430
        %vm1463 = vmpackc.low %vm1431, %vm1431
        %vm1464 = vmpackc.low %vm1432, %vm1432
        %vm1465 = vmpackc.low %vm1433, %vm1433
        %vm1466 = vmpackc.low %vm1434, %vm1434
        %v1467 = vsel %vm1435, 65537, 0
        %v1468 = vsel %vm1436, 65537, 0
        %v1469 = vsel %vm1437, 65537, 0
        %v1470 = vsel %vm1438, 65537, 0
        %v1471 = vsel %vm1439, 65537, 0
        %v1472 = vsel %vm1440, 65537, 0
        %v1473 = vsel %vm1441, 65537, 0
        %v1474 = vsel %vm1442, 65537, 0
        %v1475 = vsel %vm1443, 65537, 0
        %v1476 = vsel %vm1444, 65537, 0
        %v1477 = vsel %vm1445, 65537, 0
        %v1478 = vsel %vm1446, 65537, 0
        %v1479 = vsel %vm1447, 65537, 0
        %v1480 = vsel %vm1448, 65537, 0
        %v1481 = vsel %vm1449, 65537, 0
        %v1482 = vsel %vm1450, 65537, 0
        %v1483 = vsel %vm1451, 65537, 0
        %v1484 = vsel %vm1452, 65537, 0
        %v1485 = vsel %vm1453, 65537, 0
        %v1486 = vsel %vm1454, 65537, 0
        %v1487 = vsel %vm1455, 65537, 0
        %v1488 = vsel %vm1456, 65537, 0
        %v1489 = vsel %vm1457, 65537, 0
        %v1490 = vsel %vm1458, 65537, 0
        %v1491 = vsel %vm1459, 65537, 0
        %v1492 = vsel %vm1460, 65537, 0
        %v1493 = vsel %vm1461, 65537, 0
        %v1494 = vsel %vm1462, 65537, 0
        %v1495 = vsel %vm1463, 65537, 0
        %v1496 = vsel %vm1464, 65537, 0
        %v1497 = vsel %vm1465, 65537, 0
        %v1498 = vsel %vm1466, 65537, 0
        %v1499 = vunpack.c.l.b16 %v1467
        %v1500 = vunpack.c.l.b16 %v1468
        %v1501 = vunpack.c.l.b16 %v1469
        %v1502 = vunpack.c.l.b16 %v1470
        %v1503 = vunpack.c.l.b16 %v1471
        %v1504 = vunpack.c.l.b16 %v1472
        %v1505 = vunpack.c.l.b16 %v1473
        %v1506 = vunpack.c.l.b16 %v1474
        %v1507 = vunpack.c.l.b16 %v1475
        %v1508 = vunpack.c.l.b16 %v1476
        %v1509 = vunpack.c.l.b16 %v1477
        %v1510 = vunpack.c.l.b16 %v1478
        %v1511 = vunpack.c.l.b16 %v1479
        %v1512 = vunpack.c.l.b16 %v1480
        %v1513 = vunpack.c.l.b16 %v1481
        %v1514 = vunpack.c.l.b16 %v1482
        %v1515 = vunpack.c.l.b16 %v1483
        %v1516 = vunpack.c.l.b16 %v1484
        %v1517 = vunpack.c.l.b16 %v1485
        %v1518 = vunpack.c.l.b16 %v1486
        %v1519 = vunpack.c.l.b16 %v1487
        %v1520 = vunpack.c.l.b16 %v1488
        %v1521 = vunpack.c.l.b16 %v1489
        %v1522 = vunpack.c.l.b16 %v1490
        %v1523 = vunpack.c.l.b16 %v1491
        %v1524 = vunpack.c.l.b16 %v1492
        %v1525 = vunpack.c.l.b16 %v1493
        %v1526 = vunpack.c.l.b16 %v1494
        %v1527 = vunpack.c.l.b16 %v1495
        %v1528 = vunpack.c.l.b16 %v1496
        %v1529 = vunpack.c.l.b16 %v1497
        %v1530 = vunpack.c.l.b16 %v1498
        %v1531 = vpack.c.b16 %v1500, %v1499
        %v1532 = vpack.c.b16 %v1502, %v1501
        %v1533 = vpack.c.b16 %v1504, %v1503
        %v1534 = vpack.c.b16 %v1506, %v1505
        %v1535 = vpack.c.b16 %v1508, %v1507
        %v1536 = vpack.c.b16 %v1510, %v1509
        %v1537 = vpack.c.b16 %v1512, %v1511
        %v1538 = vpack.c.b16 %v1514, %v1513
        %v1539 = vpack.c.b16 %v1516, %v1515
        %v1540 = vpack.c.b16 %v1518, %v1517
        %v1541 = vpack.c.b16 %v1520, %v1519
        %v1542 = vpack.c.b16 %v1522, %v1521
        %v1543 = vpack.c.b16 %v1524, %v1523
        %v1544 = vpack.c.b16 %v1526, %v1525
        %v1545 = vpack.c.b16 %v1528, %v1527
        %v1546 = vpack.c.b16 %v1530, %v1529
        %vm1547 = vcmp.ne.s16.totalorder %v1531, 0
        %vm1548 = vcmp.ne.s16.totalorder %v1532, 0
        %vm1549 = vcmp.ne.s16.totalorder %v1533, 0
        %vm1550 = vcmp.ne.s16.totalorder %v1534, 0
        %vm1551 = vcmp.ne.s16.totalorder %v1535, 0
        %vm1552 = vcmp.ne.s16.totalorder %v1536, 0
        %vm1553 = vcmp.ne.s16.totalorder %v1537, 0
        %vm1554 = vcmp.ne.s16.totalorder %v1538, 0
        %vm1555 = vcmp.ne.s16.totalorder %v1539, 0
        %vm1556 = vcmp.ne.s16.totalorder %v1540, 0
        %vm1557 = vcmp.ne.s16.totalorder %v1541, 0
        %vm1558 = vcmp.ne.s16.totalorder %v1542, 0
        %vm1559 = vcmp.ne.s16.totalorder %v1543, 0
        %vm1560 = vcmp.ne.s16.totalorder %v1544, 0
        %vm1561 = vcmp.ne.s16.totalorder %v1545, 0
        %vm1562 = vcmp.ne.s16.totalorder %v1546, 0
        %v1563 = vsel %vm1547, %v1355, 0
        %v1564 = vsel %vm1548, %v1356, 0
        %v1565 = vsel %vm1549, %v1357, 0
        %v1566 = vsel %vm1550, %v1358, 0
        %v1567 = vsel %vm1551, %v1359, 0
        %v1568 = vsel %vm1552, %v1360, 0
        %v1569 = vsel %vm1553, %v1361, 0
        %v1570 = vsel %vm1554, %v1362, 0
        %v1571 = vsel %vm1555, %v1363, 0
        %v1572 = vsel %vm1556, %v1364, 0
        %v1573 = vsel %vm1557, %v1365, 0
        %v1574 = vsel %vm1558, %v1366, 0
        %v1575 = vsel %vm1559, %v1367, 0
        %v1576 = vsel %vm1560, %v1368, 0
        %v1577 = vsel %vm1561, %v1369, 0
        %v1578 = vsel %vm1562, %v1370, 0
        %v1595 = vunpack.c.l.b16 %v1563
        %v1596 = vunpack.c.h.b16 %v1563
        %v1597 = vunpack.c.l.b16 %v1564
        %v1598 = vunpack.c.h.b16 %v1564
        %v1599 = vunpack.c.l.b16 %v1565
        %v1600 = vunpack.c.h.b16 %v1565
        %v1601 = vunpack.c.l.b16 %v1566
        %v1602 = vunpack.c.h.b16 %v1566
        %v1603 = vunpack.c.l.b16 %v1567
        %v1604 = vunpack.c.h.b16 %v1567
        %v1605 = vunpack.c.l.b16 %v1568
        %v1606 = vunpack.c.h.b16 %v1568
        %v1607 = vunpack.c.l.b16 %v1569
        %v1608 = vunpack.c.h.b16 %v1569
        %v1609 = vunpack.c.l.b16 %v1570
        %v1610 = vunpack.c.h.b16 %v1570
        %v1611 = vunpack.c.l.b16 %v1571
        %v1612 = vunpack.c.h.b16 %v1571
        %v1613 = vunpack.c.l.b16 %v1572
        %v1614 = vunpack.c.h.b16 %v1572
        %v1615 = vunpack.c.l.b16 %v1573
        %v1616 = vunpack.c.h.b16 %v1573
        %v1617 = vunpack.c.l.b16 %v1574
        %v1618 = vunpack.c.h.b16 %v1574
        %v1619 = vunpack.c.l.b16 %v1575
        %v1620 = vunpack.c.h.b16 %v1575
        %v1621 = vunpack.c.l.b16 %v1576
        %v1622 = vunpack.c.h.b16 %v1576
        %v1623 = vunpack.c.l.b16 %v1577
        %v1624 = vunpack.c.h.b16 %v1577
        %v1625 = vunpack.c.l.b16 %v1578
        %v1626 = vunpack.c.h.b16 %v1578
        %v1627 = vpack.c.b16 %v1595, %v1595
        %v1628 = vpack.c.b16 %v1596, %v1596
        %v1629 = vpack.c.b16 %v1597, %v1597
        %v1630 = vpack.c.b16 %v1598, %v1598
        %v1631 = vpack.c.b16 %v1599, %v1599
        %v1632 = vpack.c.b16 %v1600, %v1600
        %v1633 = vpack.c.b16 %v1601, %v1601
        %v1634 = vpack.c.b16 %v1602, %v1602
        %v1635 = vpack.c.b16 %v1603, %v1603
        %v1636 = vpack.c.b16 %v1604, %v1604
        %v1637 = vpack.c.b16 %v1605, %v1605
        %v1638 = vpack.c.b16 %v1606, %v1606
        %v1639 = vpack.c.b16 %v1607, %v1607
        %v1640 = vpack.c.b16 %v1608, %v1608
        %v1641 = vpack.c.b16 %v1609, %v1609
        %v1642 = vpack.c.b16 %v1610, %v1610
        %v1643 = vpack.c.b16 %v1611, %v1611
        %v1644 = vpack.c.b16 %v1612, %v1612
        %v1645 = vpack.c.b16 %v1613, %v1613
        %v1646 = vpack.c.b16 %v1614, %v1614
        %v1647 = vpack.c.b16 %v1615, %v1615
        %v1648 = vpack.c.b16 %v1616, %v1616
        %v1649 = vpack.c.b16 %v1617, %v1617
        %v1650 = vpack.c.b16 %v1618, %v1618
        %v1651 = vpack.c.b16 %v1619, %v1619
        %v1652 = vpack.c.b16 %v1620, %v1620
        %v1653 = vpack.c.b16 %v1621, %v1621
        %v1654 = vpack.c.b16 %v1622, %v1622
        %v1655 = vpack.c.b16 %v1623, %v1623
        %v1656 = vpack.c.b16 %v1624, %v1624
        %v1657 = vpack.c.b16 %v1625, %v1625
        %v1658 = vpack.c.b16 %v1626, %v1626
        %1691 = vst [vmem:[#allocation3] sm:$0xf] %v1627
        %1692 = vst [vmem:[#allocation3 + $0x24] sm:$0xf] %v1628
        %1693 = vst [vmem:[#allocation3 + $0x48] sm:$0xf] %v1629
        %1694 = vst [vmem:[#allocation3 + $0x6c] sm:$0xf] %v1630
        %1695 = vst [vmem:[#allocation3 + $0x90] sm:$0xf] %v1631
        %1696 = vst [vmem:[#allocation3 + $0xb4] sm:$0xf] %v1632
        %1697 = vst [vmem:[#allocation3 + $0xd8] sm:$0xf] %v1633
        %1698 = vst [vmem:[#allocation3 + $0xfc] sm:$0xf] %v1634
        %1699 = vst [vmem:[#allocation3 + $0x120] sm:$0xf] %v1635
        %1700 = vst [vmem:[#allocation3 + $0x144] sm:$0xf] %v1636
        %1701 = vst [vmem:[#allocation3 + $0x168] sm:$0xf] %v1637
        %1702 = vst [vmem:[#allocation3 + $0x18c] sm:$0xf] %v1638
        %1703 = vst [vmem:[#allocation3 + $0x1b0] sm:$0xf] %v1639
        %1704 = vst [vmem:[#allocation3 + $0x1d4] sm:$0xf] %v1640
        %1705 = vst [vmem:[#allocation3 + $0x1f8] sm:$0xf] %v1641
        %1706 = vst [vmem:[#allocation3 + $0x21c] sm:$0xf] %v1642
        %1707 = vst [vmem:[#allocation3 + $0x240] sm:$0xf] %v1643
        %1708 = vst [vmem:[#allocation3 + $0x264] sm:$0xf] %v1644
        %1709 = vst [vmem:[#allocation3 + $0x288] sm:$0xf] %v1645
        %1710 = vst [vmem:[#allocation3 + $0x2ac] sm:$0xf] %v1646
        %1711 = vst [vmem:[#allocation3 + $0x2d0] sm:$0xf] %v1647
        %1712 = vst [vmem:[#allocation3 + $0x2f4] sm:$0xf] %v1648
        %1713 = vst [vmem:[#allocation3 + $0x318] sm:$0xf] %v1649
        %1714 = vst [vmem:[#allocation3 + $0x33c] sm:$0xf] %v1650
        %1715 = vst [vmem:[#allocation3 + $0x360] sm:$0xf] %v1651
        %1716 = vst [vmem:[#allocation3 + $0x384] sm:$0xf] %v1652
        %1717 = vst [vmem:[#allocation3 + $0x3a8] sm:$0xf] %v1653
        %1718 = vst [vmem:[#allocation3 + $0x3cc] sm:$0xf] %v1654
        %1719 = vst [vmem:[#allocation3 + $0x3f0] sm:$0xf] %v1655
        %1720 = vst [vmem:[#allocation3 + $0x414] sm:$0xf] %v1656
        %1721 = vst [vmem:[#allocation3 + $0x438] sm:$0xf] %v1657
        %1722 = vst [vmem:[#allocation3 + $0x45c] sm:$0xf] %v1658
        %v1723 = vld [vmem:[#allocation2 + $0x8] sm:$0xff]
        %v1724 = vld [vmem:[#allocation2 + $0x10] sm:$0xff]
        %v1725 = vld [vmem:[#allocation2 + $0x18] sm:$0xff]
        %v1726 = vld [vmem:[#allocation2 + $0x20] sm:$0xff]
        %v1727 = vld [vmem:[#allocation2 + $0x28] sm:$0xff]
        %v1728 = vld [vmem:[#allocation2 + $0x30] sm:$0xff]
        %v1729 = vld [vmem:[#allocation2 + $0x38] sm:$0xff]
        %v1730 = vld [vmem:[#allocation2 + $0x40] sm:$0xff]
        %v1731 = vld [vmem:[#allocation2 + $0x48] sm:$0xff]
        %v1732 = vld [vmem:[#allocation2 + $0x50] sm:$0xff]
        %v1733 = vld [vmem:[#allocation2 + $0x58] sm:$0xff]
        %v1734 = vld [vmem:[#allocation2 + $0x60] sm:$0xff]
        %v1735 = vld [vmem:[#allocation2 + $0x68] sm:$0xff]
        %v1736 = vld [vmem:[#allocation2 + $0x70] sm:$0xff]
        %v1737 = vld [vmem:[#allocation2 + $0x78] sm:$0xff]
        %v1738 = vld [vmem:[#allocation2 + $0x80] sm:$0xff]
        %v1739 = vld [vmem:[#allocation2 + $0x88] sm:$0xff]
        %v1740 = vld [vmem:[#allocation2 + $0x90] sm:$0xff]
        %v1741 = vld [vmem:[#allocation2 + $0x98] sm:$0xff]
        %v1742 = vld [vmem:[#allocation2 + $0xa0] sm:$0xff]
        %v1743 = vld [vmem:[#allocation2 + $0xa8] sm:$0xff]
        %v1744 = vld [vmem:[#allocation2 + $0xb0] sm:$0xff]
        %v1745 = vld [vmem:[#allocation2 + $0xb8] sm:$0xff]
        %v1746 = vld [vmem:[#allocation2 + $0xc0] sm:$0xff]
        %v1747 = vld [vmem:[#allocation2 + $0xc8] sm:$0xff]
        %v1748 = vld [vmem:[#allocation2 + $0xd0] sm:$0xff]
        %v1749 = vld [vmem:[#allocation2 + $0xd8] sm:$0xff]
        %v1750 = vld [vmem:[#allocation2 + $0xe0] sm:$0xff]
        %v1751 = vld [vmem:[#allocation2 + $0xe8] sm:$0xff]
        %v1752 = vld [vmem:[#allocation2 + $0xf0] sm:$0xff]
        %v1753 = vld [vmem:[#allocation2 + $0xf8] sm:$0xff]
        %v1754 = vld [vmem:[#allocation2 + $0x100] sm:$0xff]
        %v1755 = vpack.c.bf16 %v1724, %v1723
        %v1756 = vpack.c.bf16 %v1726, %v1725
        %v1757 = vpack.c.bf16 %v1728, %v1727
        %v1758 = vpack.c.bf16 %v1730, %v1729
        %v1759 = vpack.c.bf16 %v1732, %v1731
        %v1760 = vpack.c.bf16 %v1734, %v1733
        %v1761 = vpack.c.bf16 %v1736, %v1735
        %v1762 = vpack.c.bf16 %v1738, %v1737
        %v1763 = vpack.c.bf16 %v1740, %v1739
        %v1764 = vpack.c.bf16 %v1742, %v1741
        %v1765 = vpack.c.bf16 %v1744, %v1743
        %v1766 = vpack.c.bf16 %v1746, %v1745
        %v1767 = vpack.c.bf16 %v1748, %v1747
        %v1768 = vpack.c.bf16 %v1750, %v1749
        %v1769 = vpack.c.bf16 %v1752, %v1751
        %v1770 = vpack.c.bf16 %v1754, %v1753
        %v1787 = vunpack.c.l.b16 %v1755
        %v1788 = vunpack.c.h.b16 %v1755
        %v1789 = vunpack.c.l.b16 %v1756
        %v1790 = vunpack.c.h.b16 %v1756
        %v1791 = vunpack.c.l.b16 %v1757
        %v1792 = vunpack.c.h.b16 %v1757
        %v1793 = vunpack.c.l.b16 %v1758
        %v1794 = vunpack.c.h.b16 %v1758
        %v1795 = vunpack.c.l.b16 %v1759
        %v1796 = vunpack.c.h.b16 %v1759
        %v1797 = vunpack.c.l.b16 %v1760
        %v1798 = vunpack.c.h.b16 %v1760
        %v1799 = vunpack.c.l.b16 %v1761
        %v1800 = vunpack.c.h.b16 %v1761
        %v1801 = vunpack.c.l.b16 %v1762
        %v1802 = vunpack.c.h.b16 %v1762
        %v1803 = vunpack.c.l.b16 %v1763
        %v1804 = vunpack.c.h.b16 %v1763
        %v1805 = vunpack.c.l.b16 %v1764
        %v1806 = vunpack.c.h.b16 %v1764
        %v1807 = vunpack.c.l.b16 %v1765
        %v1808 = vunpack.c.h.b16 %v1765
        %v1809 = vunpack.c.l.b16 %v1766
        %v1810 = vunpack.c.h.b16 %v1766
        %v1811 = vunpack.c.l.b16 %v1767
        %v1812 = vunpack.c.h.b16 %v1767
        %v1813 = vunpack.c.l.b16 %v1768
        %v1814 = vunpack.c.h.b16 %v1768
        %v1815 = vunpack.c.l.b16 %v1769
        %v1816 = vunpack.c.h.b16 %v1769
        %v1817 = vunpack.c.l.b16 %v1770
        %v1818 = vunpack.c.h.b16 %v1770
        %v1819 = vpack.c.b16 %v1787, %v1787
        %v1820 = vpack.c.b16 %v1788, %v1788
        %v1821 = vpack.c.b16 %v1789, %v1789
        %v1822 = vpack.c.b16 %v1790, %v1790
        %v1823 = vpack.c.b16 %v1791, %v1791
        %v1824 = vpack.c.b16 %v1792, %v1792
        %v1825 = vpack.c.b16 %v1793, %v1793
        %v1826 = vpack.c.b16 %v1794, %v1794
        %v1827 = vpack.c.b16 %v1795, %v1795
        %v1828 = vpack.c.b16 %v1796, %v1796
        %v1829 = vpack.c.b16 %v1797, %v1797
        %v1830 = vpack.c.b16 %v1798, %v1798
        %v1831 = vpack.c.b16 %v1799, %v1799
        %v1832 = vpack.c.b16 %v1800, %v1800
        %v1833 = vpack.c.b16 %v1801, %v1801
        %v1834 = vpack.c.b16 %v1802, %v1802
        %v1835 = vpack.c.b16 %v1803, %v1803
        %v1836 = vpack.c.b16 %v1804, %v1804
        %v1837 = vpack.c.b16 %v1805, %v1805
        %v1838 = vpack.c.b16 %v1806, %v1806
        %v1839 = vpack.c.b16 %v1807, %v1807
        %v1840 = vpack.c.b16 %v1808, %v1808
        %v1841 = vpack.c.b16 %v1809, %v1809
        %v1842 = vpack.c.b16 %v1810, %v1810
        %v1843 = vpack.c.b16 %v1811, %v1811
        %v1844 = vpack.c.b16 %v1812, %v1812
        %v1845 = vpack.c.b16 %v1813, %v1813
        %v1846 = vpack.c.b16 %v1814, %v1814
        %v1847 = vpack.c.b16 %v1815, %v1815
        %v1848 = vpack.c.b16 %v1816, %v1816
        %v1849 = vpack.c.b16 %v1817, %v1817
        %v1850 = vpack.c.b16 %v1818, %v1818
        %1883 = vst [vmem:[#allocation3 + $0x4] sm:$0xf] %v1819
        %1884 = vst [vmem:[#allocation3 + $0x28] sm:$0xf] %v1820
        %1885 = vst [vmem:[#allocation3 + $0x4c] sm:$0xf] %v1821
        %1886 = vst [vmem:[#allocation3 + $0x70] sm:$0xf] %v1822
        %1887 = vst [vmem:[#allocation3 + $0x94] sm:$0xf] %v1823
        %1888 = vst [vmem:[#allocation3 + $0xb8] sm:$0xf] %v1824
        %1889 = vst [vmem:[#allocation3 + $0xdc] sm:$0xf] %v1825
        %1890 = vst [vmem:[#allocation3 + $0x100] sm:$0xf] %v1826
        %1891 = vst [vmem:[#allocation3 + $0x124] sm:$0xf] %v1827
        %1892 = vst [vmem:[#allocation3 + $0x148] sm:$0xf] %v1828
        %1893 = vst [vmem:[#allocation3 + $0x16c] sm:$0xf] %v1829
        %1894 = vst [vmem:[#allocation3 + $0x190] sm:$0xf] %v1830
        %1895 = vst [vmem:[#allocation3 + $0x1b4] sm:$0xf] %v1831
        %1896 = vst [vmem:[#allocation3 + $0x1d8] sm:$0xf] %v1832
        %1897 = vst [vmem:[#allocation3 + $0x1fc] sm:$0xf] %v1833
        %1898 = vst [vmem:[#allocation3 + $0x220] sm:$0xf] %v1834
        %1899 = vst [vmem:[#allocation3 + $0x244] sm:$0xf] %v1835
        %1900 = vst [vmem:[#allocation3 + $0x268] sm:$0xf] %v1836
        %1901 = vst [vmem:[#allocation3 + $0x28c] sm:$0xf] %v1837
        %1902 = vst [vmem:[#allocation3 + $0x2b0] sm:$0xf] %v1838
        %1903 = vst [vmem:[#allocation3 + $0x2d4] sm:$0xf] %v1839
        %1904 = vst [vmem:[#allocation3 + $0x2f8] sm:$0xf] %v1840
        %1905 = vst [vmem:[#allocation3 + $0x31c] sm:$0xf] %v1841
        %1906 = vst [vmem:[#allocation3 + $0x340] sm:$0xf] %v1842
        %1907 = vst [vmem:[#allocation3 + $0x364] sm:$0xf] %v1843
        %1908 = vst [vmem:[#allocation3 + $0x388] sm:$0xf] %v1844
        %1909 = vst [vmem:[#allocation3 + $0x3ac] sm:$0xf] %v1845
        %1910 = vst [vmem:[#allocation3 + $0x3d0] sm:$0xf] %v1846
        %1911 = vst [vmem:[#allocation3 + $0x3f4] sm:$0xf] %v1847
        %1912 = vst [vmem:[#allocation3 + $0x418] sm:$0xf] %v1848
        %1913 = vst [vmem:[#allocation3 + $0x43c] sm:$0xf] %v1849
        %1914 = vst [vmem:[#allocation3 + $0x460] sm:$0xf] %v1850
        %v1915 = vld [vmem:[#allocation2 + $0x9] sm:$0xff]
        %v1916 = vld [vmem:[#allocation2 + $0x11] sm:$0xff]
        %v1917 = vld [vmem:[#allocation2 + $0x19] sm:$0xff]
        %v1918 = vld [vmem:[#allocation2 + $0x21] sm:$0xff]
        %v1919 = vld [vmem:[#allocation2 + $0x29] sm:$0xff]
        %v1920 = vld [vmem:[#allocation2 + $0x31] sm:$0xff]
        %v1921 = vld [vmem:[#allocation2 + $0x39] sm:$0xff]
        %v1922 = vld [vmem:[#allocation2 + $0x41] sm:$0xff]
        %v1923 = vld [vmem:[#allocation2 + $0x49] sm:$0xff]
        %v1924 = vld [vmem:[#allocation2 + $0x51] sm:$0xff]
        %v1925 = vld [vmem:[#allocation2 + $0x59] sm:$0xff]
        %v1926 = vld [vmem:[#allocation2 + $0x61] sm:$0xff]
        %v1927 = vld [vmem:[#allocation2 + $0x69] sm:$0xff]
        %v1928 = vld [vmem:[#allocation2 + $0x71] sm:$0xff]
        %v1929 = vld [vmem:[#allocation2 + $0x79] sm:$0xff]
        %v1930 = vld [vmem:[#allocation2 + $0x81] sm:$0xff]
        %v1931 = vld [vmem:[#allocation2 + $0x89] sm:$0xff]
        %v1932 = vld [vmem:[#allocation2 + $0x91] sm:$0xff]
        %v1933 = vld [vmem:[#allocation2 + $0x99] sm:$0xff]
        %v1934 = vld [vmem:[#allocation2 + $0xa1] sm:$0xff]
        %v1935 = vld [vmem:[#allocation2 + $0xa9] sm:$0xff]
        %v1936 = vld [vmem:[#allocation2 + $0xb1] sm:$0xff]
        %v1937 = vld [vmem:[#allocation2 + $0xb9] sm:$0xff]
        %v1938 = vld [vmem:[#allocation2 + $0xc1] sm:$0xff]
        %v1939 = vld [vmem:[#allocation2 + $0xc9] sm:$0xff]
        %v1940 = vld [vmem:[#allocation2 + $0xd1] sm:$0xff]
        %v1941 = vld [vmem:[#allocation2 + $0xd9] sm:$0xff]
        %v1942 = vld [vmem:[#allocation2 + $0xe1] sm:$0xff]
        %v1943 = vld [vmem:[#allocation2 + $0xe9] sm:$0xff]
        %v1944 = vld [vmem:[#allocation2 + $0xf1] sm:$0xff]
        %v1945 = vld [vmem:[#allocation2 + $0xf9] sm:$0xff]
        %v1946 = vld [vmem:[#allocation2 + $0x101] sm:$0xff]
        %v1947 = vpack.c.bf16 %v1916, %v1915
        %v1948 = vpack.c.bf16 %v1918, %v1917
        %v1949 = vpack.c.bf16 %v1920, %v1919
        %v1950 = vpack.c.bf16 %v1922, %v1921
        %v1951 = vpack.c.bf16 %v1924, %v1923
        %v1952 = vpack.c.bf16 %v1926, %v1925
        %v1953 = vpack.c.bf16 %v1928, %v1927
        %v1954 = vpack.c.bf16 %v1930, %v1929
        %v1955 = vpack.c.bf16 %v1932, %v1931
        %v1956 = vpack.c.bf16 %v1934, %v1933
        %v1957 = vpack.c.bf16 %v1936, %v1935
        %v1958 = vpack.c.bf16 %v1938, %v1937
        %v1959 = vpack.c.bf16 %v1940, %v1939
        %v1960 = vpack.c.bf16 %v1942, %v1941
        %v1961 = vpack.c.bf16 %v1944, %v1943
        %v1962 = vpack.c.bf16 %v1946, %v1945
        %v1963 = vsel %vm1291, 1, 0
        %v1964 = vsel %vm1292, 1, 0
        %v1965 = vsel %vm1293, 1, 0
        %v1966 = vsel %vm1294, 1, 0
        %v1967 = vsel %vm1295, 1, 0
        %v1968 = vsel %vm1296, 1, 0
        %v1969 = vsel %vm1297, 1, 0
        %v1970 = vsel %vm1298, 1, 0
        %v1971 = vsel %vm1299, 1, 0
        %v1972 = vsel %vm1300, 1, 0
        %v1973 = vsel %vm1301, 1, 0
        %v1974 = vsel %vm1302, 1, 0
        %v1975 = vsel %vm1303, 1, 0
        %v1976 = vsel %vm1304, 1, 0
        %v1977 = vsel %vm1305, 1, 0
        %v1978 = vsel %vm1306, 1, 0
        %v1979 = vsel %vm1307, 1, 0
        %v1980 = vsel %vm1308, 1, 0
        %v1981 = vsel %vm1309, 1, 0
        %v1982 = vsel %vm1310, 1, 0
        %v1983 = vsel %vm1311, 1, 0
        %v1984 = vsel %vm1312, 1, 0
        %v1985 = vsel %vm1313, 1, 0
        %v1986 = vsel %vm1314, 1, 0
        %v1987 = vsel %vm1315, 1, 0
        %v1988 = vsel %vm1316, 1, 0
        %v1989 = vsel %vm1317, 1, 0
        %v1990 = vsel %vm1318, 1, 0
        %v1991 = vsel %vm1319, 1, 0
        %v1992 = vsel %vm1320, 1, 0
        %v1993 = vsel %vm1321, 1, 0
        %v1994 = vsel %vm1322, 1, 0
        %vm1995 = vcmp.eq.s32.totalorder %v1963, 1
        %vm1996 = vcmp.eq.s32.totalorder %v1964, 1
        %vm1997 = vcmp.eq.s32.totalorder %v1965, 1
        %vm1998 = vcmp.eq.s32.totalorder %v1966, 1
        %vm1999 = vcmp.eq.s32.totalorder %v1967, 1
        %vm2000 = vcmp.eq.s32.totalorder %v1968, 1
        %vm2001 = vcmp.eq.s32.totalorder %v1969, 1
        %vm2002 = vcmp.eq.s32.totalorder %v1970, 1
        %vm2003 = vcmp.eq.s32.totalorder %v1971, 1
        %vm2004 = vcmp.eq.s32.totalorder %v1972, 1
        %vm2005 = vcmp.eq.s32.totalorder %v1973, 1
        %vm2006 = vcmp.eq.s32.totalorder %v1974, 1
        %vm2007 = vcmp.eq.s32.totalorder %v1975, 1
        %vm2008 = vcmp.eq.s32.totalorder %v1976, 1
        %vm2009 = vcmp.eq.s32.totalorder %v1977, 1
        %vm2010 = vcmp.eq.s32.totalorder %v1978, 1
        %vm2011 = vcmp.eq.s32.totalorder %v1979, 1
        %vm2012 = vcmp.eq.s32.totalorder %v1980, 1
        %vm2013 = vcmp.eq.s32.totalorder %v1981, 1
        %vm2014 = vcmp.eq.s32.totalorder %v1982, 1
        %vm2015 = vcmp.eq.s32.totalorder %v1983, 1
        %vm2016 = vcmp.eq.s32.totalorder %v1984, 1
        %vm2017 = vcmp.eq.s32.totalorder %v1985, 1
        %vm2018 = vcmp.eq.s32.totalorder %v1986, 1
        %vm2019 = vcmp.eq.s32.totalorder %v1987, 1
        %vm2020 = vcmp.eq.s32.totalorder %v1988, 1
        %vm2021 = vcmp.eq.s32.totalorder %v1989, 1
        %vm2022 = vcmp.eq.s32.totalorder %v1990, 1
        %vm2023 = vcmp.eq.s32.totalorder %v1991, 1
        %vm2024 = vcmp.eq.s32.totalorder %v1992, 1
        %vm2025 = vcmp.eq.s32.totalorder %v1993, 1
        %vm2026 = vcmp.eq.s32.totalorder %v1994, 1
        %vm2027 = vmpackc.low %vm1995, %vm1995
        %vm2028 = vmpackc.low %vm1996, %vm1996
        %vm2029 = vmpackc.low %vm1997, %vm1997
        %vm2030 = vmpackc.low %vm1998, %vm1998
        %vm2031 = vmpackc.low %vm1999, %vm1999
        %vm2032 = vmpackc.low %vm2000, %vm2000
        %vm2033 = vmpackc.low %vm2001, %vm2001
        %vm2034 = vmpackc.low %vm2002, %vm2002
        %vm2035 = vmpackc.low %vm2003, %vm2003
        %vm2036 = vmpackc.low %vm2004, %vm2004
        %vm2037 = vmpackc.low %vm2005, %vm2005
        %vm2038 = vmpackc.low %vm2006, %vm2006
        %vm2039 = vmpackc.low %vm2007, %vm2007
        %vm2040 = vmpackc.low %vm2008, %vm2008
        %vm2041 = vmpackc.low %vm2009, %vm2009
        %vm2042 = vmpackc.low %vm2010, %vm2010
        %vm2043 = vmpackc.low %vm2011, %vm2011
        %vm2044 = vmpackc.low %vm2012, %vm2012
        %vm2045 = vmpackc.low %vm2013, %vm2013
        %vm2046 = vmpackc.low %vm2014, %vm2014
        %vm2047 = vmpackc.low %vm2015, %vm2015
        %vm2048 = vmpackc.low %vm2016, %vm2016
        %vm2049 = vmpackc.low %vm2017, %vm2017
        %vm2050 = vmpackc.low %vm2018, %vm2018
        %vm2051 = vmpackc.low %vm2019, %vm2019
        %vm2052 = vmpackc.low %vm2020, %vm2020
        %vm2053 = vmpackc.low %vm2021, %vm2021
        %vm2054 = vmpackc.low %vm2022, %vm2022
        %vm2055 = vmpackc.low %vm2023, %vm2023
        %vm2056 = vmpackc.low %vm2024, %vm2024
        %vm2057 = vmpackc.low %vm2025, %vm2025
        %vm2058 = vmpackc.low %vm2026, %vm2026
        %v2059 = vsel %vm2027, 65537, 0
        %v2060 = vsel %vm2028, 65537, 0
        %v2061 = vsel %vm2029, 65537, 0
        %v2062 = vsel %vm2030, 65537, 0
        %v2063 = vsel %vm2031, 65537, 0
        %v2064 = vsel %vm2032, 65537, 0
        %v2065 = vsel %vm2033, 65537, 0
        %v2066 = vsel %vm2034, 65537, 0
        %v2067 = vsel %vm2035, 65537, 0
        %v2068 = vsel %vm2036, 65537, 0
        %v2069 = vsel %vm2037, 65537, 0
        %v2070 = vsel %vm2038, 65537, 0
        %v2071 = vsel %vm2039, 65537, 0
        %v2072 = vsel %vm2040, 65537, 0
        %v2073 = vsel %vm2041, 65537, 0
        %v2074 = vsel %vm2042, 65537, 0
        %v2075 = vsel %vm2043, 65537, 0
        %v2076 = vsel %vm2044, 65537, 0
        %v2077 = vsel %vm2045, 65537, 0
        %v2078 = vsel %vm2046, 65537, 0
        %v2079 = vsel %vm2047, 65537, 0
        %v2080 = vsel %vm2048, 65537, 0
        %v2081 = vsel %vm2049, 65537, 0
        %v2082 = vsel %vm2050, 65537, 0
        %v2083 = vsel %vm2051, 65537, 0
        %v2084 = vsel %vm2052, 65537, 0
        %v2085 = vsel %vm2053, 65537, 0
        %v2086 = vsel %vm2054, 65537, 0
        %v2087 = vsel %vm2055, 65537, 0
        %v2088 = vsel %vm2056, 65537, 0
        %v2089 = vsel %vm2057, 65537, 0
        %v2090 = vsel %vm2058, 65537, 0
        %v2091 = vunpack.c.l.b16 %v2059
        %v2092 = vunpack.c.l.b16 %v2060
        %v2093 = vunpack.c.l.b16 %v2061
        %v2094 = vunpack.c.l.b16 %v2062
        %v2095 = vunpack.c.l.b16 %v2063
        %v2096 = vunpack.c.l.b16 %v2064
        %v2097 = vunpack.c.l.b16 %v2065
        %v2098 = vunpack.c.l.b16 %v2066
        %v2099 = vunpack.c.l.b16 %v2067
        %v2100 = vunpack.c.l.b16 %v2068
        %v2101 = vunpack.c.l.b16 %v2069
        %v2102 = vunpack.c.l.b16 %v2070
        %v2103 = vunpack.c.l.b16 %v2071
        %v2104 = vunpack.c.l.b16 %v2072
        %v2105 = vunpack.c.l.b16 %v2073
        %v2106 = vunpack.c.l.b16 %v2074
        %v2107 = vunpack.c.l.b16 %v2075
        %v2108 = vunpack.c.l.b16 %v2076
        %v2109 = vunpack.c.l.b16 %v2077
        %v2110 = vunpack.c.l.b16 %v2078
        %v2111 = vunpack.c.l.b16 %v2079
        %v2112 = vunpack.c.l.b16 %v2080
        %v2113 = vunpack.c.l.b16 %v2081
        %v2114 = vunpack.c.l.b16 %v2082
        %v2115 = vunpack.c.l.b16 %v2083
        %v2116 = vunpack.c.l.b16 %v2084
        %v2117 = vunpack.c.l.b16 %v2085
        %v2118 = vunpack.c.l.b16 %v2086
        %v2119 = vunpack.c.l.b16 %v2087
        %v2120 = vunpack.c.l.b16 %v2088
        %v2121 = vunpack.c.l.b16 %v2089
        %v2122 = vunpack.c.l.b16 %v2090
        %v2123 = vpack.c.b16 %v2092, %v2091
        %v2124 = vpack.c.b16 %v2094, %v2093
        %v2125 = vpack.c.b16 %v2096, %v2095
        %v2126 = vpack.c.b16 %v2098, %v2097
        %v2127 = vpack.c.b16 %v2100, %v2099
        %v2128 = vpack.c.b16 %v2102, %v2101
        %v2129 = vpack.c.b16 %v2104, %v2103
        %v2130 = vpack.c.b16 %v2106, %v2105
        %v2131 = vpack.c.b16 %v2108, %v2107
        %v2132 = vpack.c.b16 %v2110, %v2109
        %v2133 = vpack.c.b16 %v2112, %v2111
        %v2134 = vpack.c.b16 %v2114, %v2113
        %v2135 = vpack.c.b16 %v2116, %v2115
        %v2136 = vpack.c.b16 %v2118, %v2117
        %v2137 = vpack.c.b16 %v2120, %v2119
        %v2138 = vpack.c.b16 %v2122, %v2121
        %vm2139 = vcmp.ne.s16.totalorder %v2123, 0
        %vm2140 = vcmp.ne.s16.totalorder %v2124, 0
        %vm2141 = vcmp.ne.s16.totalorder %v2125, 0
        %vm2142 = vcmp.ne.s16.totalorder %v2126, 0
        %vm2143 = vcmp.ne.s16.totalorder %v2127, 0
        %vm2144 = vcmp.ne.s16.totalorder %v2128, 0
        %vm2145 = vcmp.ne.s16.totalorder %v2129, 0
        %vm2146 = vcmp.ne.s16.totalorder %v2130, 0
        %vm2147 = vcmp.ne.s16.totalorder %v2131, 0
        %vm2148 = vcmp.ne.s16.totalorder %v2132, 0
        %vm2149 = vcmp.ne.s16.totalorder %v2133, 0
        %vm2150 = vcmp.ne.s16.totalorder %v2134, 0
        %vm2151 = vcmp.ne.s16.totalorder %v2135, 0
        %vm2152 = vcmp.ne.s16.totalorder %v2136, 0
        %vm2153 = vcmp.ne.s16.totalorder %v2137, 0
        %vm2154 = vcmp.ne.s16.totalorder %v2138, 0
        %v2155 = vsel %vm2139, %v1947, 0
        %v2156 = vsel %vm2140, %v1948, 0
        %v2157 = vsel %vm2141, %v1949, 0
        %v2158 = vsel %vm2142, %v1950, 0
        %v2159 = vsel %vm2143, %v1951, 0
        %v2160 = vsel %vm2144, %v1952, 0
        %v2161 = vsel %vm2145, %v1953, 0
        %v2162 = vsel %vm2146, %v1954, 0
        %v2163 = vsel %vm2147, %v1955, 0
        %v2164 = vsel %vm2148, %v1956, 0
        %v2165 = vsel %vm2149, %v1957, 0
        %v2166 = vsel %vm2150, %v1958, 0
        %v2167 = vsel %vm2151, %v1959, 0
        %v2168 = vsel %vm2152, %v1960, 0
        %v2169 = vsel %vm2153, %v1961, 0
        %v2170 = vsel %vm2154, %v1962, 0
        %v2187 = vunpack.c.l.b16 %v2155
        %v2188 = vunpack.c.h.b16 %v2155
        %v2189 = vunpack.c.l.b16 %v2156
        %v2190 = vunpack.c.h.b16 %v2156
        %v2191 = vunpack.c.l.b16 %v2157
        %v2192 = vunpack.c.h.b16 %v2157
        %v2193 = vunpack.c.l.b16 %v2158
        %v2194 = vunpack.c.h.b16 %v2158
        %v2195 = vunpack.c.l.b16 %v2159
        %v2196 = vunpack.c.h.b16 %v2159
        %v2197 = vunpack.c.l.b16 %v2160
        %v2198 = vunpack.c.h.b16 %v2160
        %v2199 = vunpack.c.l.b16 %v2161
        %v2200 = vunpack.c.h.b16 %v2161
        %v2201 = vunpack.c.l.b16 %v2162
        %v2202 = vunpack.c.h.b16 %v2162
        %v2203 = vunpack.c.l.b16 %v2163
        %v2204 = vunpack.c.h.b16 %v2163
        %v2205 = vunpack.c.l.b16 %v2164
        %v2206 = vunpack.c.h.b16 %v2164
        %v2207 = vunpack.c.l.b16 %v2165
        %v2208 = vunpack.c.h.b16 %v2165
        %v2209 = vunpack.c.l.b16 %v2166
        %v2210 = vunpack.c.h.b16 %v2166
        %v2211 = vunpack.c.l.b16 %v2167
        %v2212 = vunpack.c.h.b16 %v2167
        %v2213 = vunpack.c.l.b16 %v2168
        %v2214 = vunpack.c.h.b16 %v2168
        %v2215 = vunpack.c.l.b16 %v2169
        %v2216 = vunpack.c.h.b16 %v2169
        %v2217 = vunpack.c.l.b16 %v2170
        %v2218 = vunpack.c.h.b16 %v2170
        %v2219 = vpack.c.b16 %v2187, %v2187
        %v2220 = vpack.c.b16 %v2188, %v2188
        %v2221 = vpack.c.b16 %v2189, %v2189
        %v2222 = vpack.c.b16 %v2190, %v2190
        %v2223 = vpack.c.b16 %v2191, %v2191
        %v2224 = vpack.c.b16 %v2192, %v2192
        %v2225 = vpack.c.b16 %v2193, %v2193
        %v2226 = vpack.c.b16 %v2194, %v2194
        %v2227 = vpack.c.b16 %v2195, %v2195
        %v2228 = vpack.c.b16 %v2196, %v2196
        %v2229 = vpack.c.b16 %v2197, %v2197
        %v2230 = vpack.c.b16 %v2198, %v2198
        %v2231 = vpack.c.b16 %v2199, %v2199
        %v2232 = vpack.c.b16 %v2200, %v2200
        %v2233 = vpack.c.b16 %v2201, %v2201
        %v2234 = vpack.c.b16 %v2202, %v2202
        %v2235 = vpack.c.b16 %v2203, %v2203
        %v2236 = vpack.c.b16 %v2204, %v2204
        %v2237 = vpack.c.b16 %v2205, %v2205
        %v2238 = vpack.c.b16 %v2206, %v2206
        %v2239 = vpack.c.b16 %v2207, %v2207
        %v2240 = vpack.c.b16 %v2208, %v2208
        %v2241 = vpack.c.b16 %v2209, %v2209
        %v2242 = vpack.c.b16 %v2210, %v2210
        %v2243 = vpack.c.b16 %v2211, %v2211
        %v2244 = vpack.c.b16 %v2212, %v2212
        %v2245 = vpack.c.b16 %v2213, %v2213
        %v2246 = vpack.c.b16 %v2214, %v2214
        %v2247 = vpack.c.b16 %v2215, %v2215
        %v2248 = vpack.c.b16 %v2216, %v2216
        %v2249 = vpack.c.b16 %v2217, %v2217
        %v2250 = vpack.c.b16 %v2218, %v2218
        %2283 = vst [vmem:[#allocation3 + $0x8] sm:$0xf] %v2219
        %2284 = vst [vmem:[#allocation3 + $0x2c] sm:$0xf] %v2220
        %2285 = vst [vmem:[#allocation3 + $0x50] sm:$0xf] %v2221
        %2286 = vst [vmem:[#allocation3 + $0x74] sm:$0xf] %v2222
        %2287 = vst [vmem:[#allocation3 + $0x98] sm:$0xf] %v2223
        %2288 = vst [vmem:[#allocation3 + $0xbc] sm:$0xf] %v2224
        %2289 = vst [vmem:[#allocation3 + $0xe0] sm:$0xf] %v2225
        %2290 = vst [vmem:[#allocation3 + $0x104] sm:$0xf] %v2226
        %2291 = vst [vmem:[#allocation3 + $0x128] sm:$0xf] %v2227
        %2292 = vst [vmem:[#allocation3 + $0x14c] sm:$0xf] %v2228
        %2293 = vst [vmem:[#allocation3 + $0x170] sm:$0xf] %v2229
        %2294 = vst [vmem:[#allocation3 + $0x194] sm:$0xf] %v2230
        %2295 = vst [vmem:[#allocation3 + $0x1b8] sm:$0xf] %v2231
        %2296 = vst [vmem:[#allocation3 + $0x1dc] sm:$0xf] %v2232
        %2297 = vst [vmem:[#allocation3 + $0x200] sm:$0xf] %v2233
        %2298 = vst [vmem:[#allocation3 + $0x224] sm:$0xf] %v2234
        %2299 = vst [vmem:[#allocation3 + $0x248] sm:$0xf] %v2235
        %2300 = vst [vmem:[#allocation3 + $0x26c] sm:$0xf] %v2236
        %2301 = vst [vmem:[#allocation3 + $0x290] sm:$0xf] %v2237
        %2302 = vst [vmem:[#allocation3 + $0x2b4] sm:$0xf] %v2238
        %2303 = vst [vmem:[#allocation3 + $0x2d8] sm:$0xf] %v2239
        %2304 = vst [vmem:[#allocation3 + $0x2fc] sm:$0xf] %v2240
        %2305 = vst [vmem:[#allocation3 + $0x320] sm:$0xf] %v2241
        %2306 = vst [vmem:[#allocation3 + $0x344] sm:$0xf] %v2242
        %2307 = vst [vmem:[#allocation3 + $0x368] sm:$0xf] %v2243
        %2308 = vst [vmem:[#allocation3 + $0x38c] sm:$0xf] %v2244
        %2309 = vst [vmem:[#allocation3 + $0x3b0] sm:$0xf] %v2245
        %2310 = vst [vmem:[#allocation3 + $0x3d4] sm:$0xf] %v2246
        %2311 = vst [vmem:[#allocation3 + $0x3f8] sm:$0xf] %v2247
        %2312 = vst [vmem:[#allocation3 + $0x41c] sm:$0xf] %v2248
        %2313 = vst [vmem:[#allocation3 + $0x440] sm:$0xf] %v2249
        %2314 = vst [vmem:[#allocation3 + $0x464] sm:$0xf] %v2250
        %v2315 = vld [vmem:[#allocation2 + $0x17] sm:$0xff]
        %v2316 = vld [vmem:[#allocation2 + $0x1f] sm:$0xff]
        %v2317 = vld [vmem:[#allocation2 + $0x27] sm:$0xff]
        %v2318 = vld [vmem:[#allocation2 + $0x2f] sm:$0xff]
        %v2319 = vld [vmem:[#allocation2 + $0x37] sm:$0xff]
        %v2320 = vld [vmem:[#allocation2 + $0x3f] sm:$0xff]
        %v2321 = vld [vmem:[#allocation2 + $0x47] sm:$0xff]
        %v2322 = vld [vmem:[#allocation2 + $0x4f] sm:$0xff]
        %v2323 = vld [vmem:[#allocation2 + $0x57] sm:$0xff]
        %v2324 = vld [vmem:[#allocation2 + $0x5f] sm:$0xff]
        %v2325 = vld [vmem:[#allocation2 + $0x67] sm:$0xff]
        %v2326 = vld [vmem:[#allocation2 + $0x6f] sm:$0xff]
        %v2327 = vld [vmem:[#allocation2 + $0x77] sm:$0xff]
        %v2328 = vld [vmem:[#allocation2 + $0x7f] sm:$0xff]
        %v2329 = vld [vmem:[#allocation2 + $0x87] sm:$0xff]
        %v2330 = vld [vmem:[#allocation2 + $0x8f] sm:$0xff]
        %v2331 = vld [vmem:[#allocation2 + $0x97] sm:$0xff]
        %v2332 = vld [vmem:[#allocation2 + $0x9f] sm:$0xff]
        %v2333 = vld [vmem:[#allocation2 + $0xa7] sm:$0xff]
        %v2334 = vld [vmem:[#allocation2 + $0xaf] sm:$0xff]
        %v2335 = vld [vmem:[#allocation2 + $0xb7] sm:$0xff]
        %v2336 = vld [vmem:[#allocation2 + $0xbf] sm:$0xff]
        %v2337 = vld [vmem:[#allocation2 + $0xc7] sm:$0xff]
        %v2338 = vld [vmem:[#allocation2 + $0xcf] sm:$0xff]
        %v2339 = vld [vmem:[#allocation2 + $0xd7] sm:$0xff]
        %v2340 = vld [vmem:[#allocation2 + $0xdf] sm:$0xff]
        %v2341 = vld [vmem:[#allocation2 + $0xe7] sm:$0xff]
        %v2342 = vld [vmem:[#allocation2 + $0xef] sm:$0xff]
        %v2343 = vld [vmem:[#allocation2 + $0xf7] sm:$0xff]
        %v2344 = vld [vmem:[#allocation2 + $0xff] sm:$0xff]
        %v2345 = vld [vmem:[#allocation2 + $0x107] sm:$0xff]
        %v2346 = vld [vmem:[#allocation2 + $0x10f] sm:$0xff]
        %v2347 = vpack.c.bf16 %v2316, %v2315
        %v2348 = vpack.c.bf16 %v2318, %v2317
        %v2349 = vpack.c.bf16 %v2320, %v2319
        %v2350 = vpack.c.bf16 %v2322, %v2321
        %v2351 = vpack.c.bf16 %v2324, %v2323
        %v2352 = vpack.c.bf16 %v2326, %v2325
        %v2353 = vpack.c.bf16 %v2328, %v2327
        %v2354 = vpack.c.bf16 %v2330, %v2329
        %v2355 = vpack.c.bf16 %v2332, %v2331
        %v2356 = vpack.c.bf16 %v2334, %v2333
        %v2357 = vpack.c.bf16 %v2336, %v2335
        %v2358 = vpack.c.bf16 %v2338, %v2337
        %v2359 = vpack.c.bf16 %v2340, %v2339
        %v2360 = vpack.c.bf16 %v2342, %v2341
        %v2361 = vpack.c.bf16 %v2344, %v2343
        %v2362 = vpack.c.bf16 %v2346, %v2345
        %v2363 = vsel %vm1547, %v2347, 0
        %v2364 = vsel %vm1548, %v2348, 0
        %v2365 = vsel %vm1549, %v2349, 0
        %v2366 = vsel %vm1550, %v2350, 0
        %v2367 = vsel %vm1551, %v2351, 0
        %v2368 = vsel %vm1552, %v2352, 0
        %v2369 = vsel %vm1553, %v2353, 0
        %v2370 = vsel %vm1554, %v2354, 0
        %v2371 = vsel %vm1555, %v2355, 0
        %v2372 = vsel %vm1556, %v2356, 0
        %v2373 = vsel %vm1557, %v2357, 0
        %v2374 = vsel %vm1558, %v2358, 0
        %v2375 = vsel %vm1559, %v2359, 0
        %v2376 = vsel %vm1560, %v2360, 0
        %v2377 = vsel %vm1561, %v2361, 0
        %v2378 = vsel %vm1562, %v2362, 0
        %v2395 = vunpack.c.l.b16 %v2363
        %v2396 = vunpack.c.h.b16 %v2363
        %v2397 = vunpack.c.l.b16 %v2364
        %v2398 = vunpack.c.h.b16 %v2364
        %v2399 = vunpack.c.l.b16 %v2365
        %v2400 = vunpack.c.h.b16 %v2365
        %v2401 = vunpack.c.l.b16 %v2366
        %v2402 = vunpack.c.h.b16 %v2366
        %v2403 = vunpack.c.l.b16 %v2367
        %v2404 = vunpack.c.h.b16 %v2367
        %v2405 = vunpack.c.l.b16 %v2368
        %v2406 = vunpack.c.h.b16 %v2368
        %v2407 = vunpack.c.l.b16 %v2369
        %v2408 = vunpack.c.h.b16 %v2369
        %v2409 = vunpack.c.l.b16 %v2370
        %v2410 = vunpack.c.h.b16 %v2370
        %v2411 = vunpack.c.l.b16 %v2371
        %v2412 = vunpack.c.h.b16 %v2371
        %v2413 = vunpack.c.l.b16 %v2372
        %v2414 = vunpack.c.h.b16 %v2372
        %v2415 = vunpack.c.l.b16 %v2373
        %v2416 = vunpack.c.h.b16 %v2373
        %v2417 = vunpack.c.l.b16 %v2374
        %v2418 = vunpack.c.h.b16 %v2374
        %v2419 = vunpack.c.l.b16 %v2375
        %v2420 = vunpack.c.h.b16 %v2375
        %v2421 = vunpack.c.l.b16 %v2376
        %v2422 = vunpack.c.h.b16 %v2376
        %v2423 = vunpack.c.l.b16 %v2377
        %v2424 = vunpack.c.h.b16 %v2377
        %v2425 = vunpack.c.l.b16 %v2378
        %v2426 = vunpack.c.h.b16 %v2378
        %v2427 = vpack.c.b16 %v2395, %v2395
        %v2428 = vpack.c.b16 %v2396, %v2396
        %v2429 = vpack.c.b16 %v2397, %v2397
        %v2430 = vpack.c.b16 %v2398, %v2398
        %v2431 = vpack.c.b16 %v2399, %v2399
        %v2432 = vpack.c.b16 %v2400, %v2400
        %v2433 = vpack.c.b16 %v2401, %v2401
        %v2434 = vpack.c.b16 %v2402, %v2402
        %v2435 = vpack.c.b16 %v2403, %v2403
        %v2436 = vpack.c.b16 %v2404, %v2404
        %v2437 = vpack.c.b16 %v2405, %v2405
        %v2438 = vpack.c.b16 %v2406, %v2406
        %v2439 = vpack.c.b16 %v2407, %v2407
        %v2440 = vpack.c.b16 %v2408, %v2408
        %v2441 = vpack.c.b16 %v2409, %v2409
        %v2442 = vpack.c.b16 %v2410, %v2410
        %v2443 = vpack.c.b16 %v2411, %v2411
        %v2444 = vpack.c.b16 %v2412, %v2412
        %v2445 = vpack.c.b16 %v2413, %v2413
        %v2446 = vpack.c.b16 %v2414, %v2414
        %v2447 = vpack.c.b16 %v2415, %v2415
        %v2448 = vpack.c.b16 %v2416, %v2416
        %v2449 = vpack.c.b16 %v2417, %v2417
        %v2450 = vpack.c.b16 %v2418, %v2418
        %v2451 = vpack.c.b16 %v2419, %v2419
        %v2452 = vpack.c.b16 %v2420, %v2420
        %v2453 = vpack.c.b16 %v2421, %v2421
        %v2454 = vpack.c.b16 %v2422, %v2422
        %v2455 = vpack.c.b16 %v2423, %v2423
        %v2456 = vpack.c.b16 %v2424, %v2424
        %v2457 = vpack.c.b16 %v2425, %v2425
        %v2458 = vpack.c.b16 %v2426, %v2426
        %2491 = vst [vmem:[#allocation3 + $0xc] sm:$0xf] %v2427
        %2492 = vst [vmem:[#allocation3 + $0x30] sm:$0xf] %v2428
        %2493 = vst [vmem:[#allocation3 + $0x54] sm:$0xf] %v2429
        %2494 = vst [vmem:[#allocation3 + $0x78] sm:$0xf] %v2430
        %2495 = vst [vmem:[#allocation3 + $0x9c] sm:$0xf] %v2431
        %2496 = vst [vmem:[#allocation3 + $0xc0] sm:$0xf] %v2432
        %2497 = vst [vmem:[#allocation3 + $0xe4] sm:$0xf] %v2433
        %2498 = vst [vmem:[#allocation3 + $0x108] sm:$0xf] %v2434
        %2499 = vst [vmem:[#allocation3 + $0x12c] sm:$0xf] %v2435
        %2500 = vst [vmem:[#allocation3 + $0x150] sm:$0xf] %v2436
        %2501 = vst [vmem:[#allocation3 + $0x174] sm:$0xf] %v2437
        %2502 = vst [vmem:[#allocation3 + $0x198] sm:$0xf] %v2438
        %2503 = vst [vmem:[#allocation3 + $0x1bc] sm:$0xf] %v2439
        %2504 = vst [vmem:[#allocation3 + $0x1e0] sm:$0xf] %v2440
        %2505 = vst [vmem:[#allocation3 + $0x204] sm:$0xf] %v2441
        %2506 = vst [vmem:[#allocation3 + $0x228] sm:$0xf] %v2442
        %2507 = vst [vmem:[#allocation3 + $0x24c] sm:$0xf] %v2443
        %2508 = vst [vmem:[#allocation3 + $0x270] sm:$0xf] %v2444
        %2509 = vst [vmem:[#allocation3 + $0x294] sm:$0xf] %v2445
        %2510 = vst [vmem:[#allocation3 + $0x2b8] sm:$0xf] %v2446
        %2511 = vst [vmem:[#allocation3 + $0x2dc] sm:$0xf] %v2447
        %2512 = vst [vmem:[#allocation3 + $0x300] sm:$0xf] %v2448
        %2513 = vst [vmem:[#allocation3 + $0x324] sm:$0xf] %v2449
        %2514 = vst [vmem:[#allocation3 + $0x348] sm:$0xf] %v2450
        %2515 = vst [vmem:[#allocation3 + $0x36c] sm:$0xf] %v2451
        %2516 = vst [vmem:[#allocation3 + $0x390] sm:$0xf] %v2452
        %2517 = vst [vmem:[#allocation3 + $0x3b4] sm:$0xf] %v2453
        %2518 = vst [vmem:[#allocation3 + $0x3d8] sm:$0xf] %v2454
        %2519 = vst [vmem:[#allocation3 + $0x3fc] sm:$0xf] %v2455
        %2520 = vst [vmem:[#allocation3 + $0x420] sm:$0xf] %v2456
        %2521 = vst [vmem:[#allocation3 + $0x444] sm:$0xf] %v2457
        %2522 = vst [vmem:[#allocation3 + $0x468] sm:$0xf] %v2458
        %v2523 = vpack.c.bf16 %v773, %v772
        %v2524 = vpack.c.bf16 %v775, %v774
        %v2525 = vpack.c.bf16 %v777, %v776
        %v2526 = vpack.c.bf16 %v779, %v778
        %v2527 = vpack.c.bf16 %v781, %v780
        %v2528 = vpack.c.bf16 %v783, %v782
        %v2529 = vpack.c.bf16 %v785, %v784
        %v2530 = vpack.c.bf16 %v787, %v786
        %v2531 = vpack.c.bf16 %v789, %v788
        %v2532 = vpack.c.bf16 %v791, %v790
        %v2533 = vpack.c.bf16 %v793, %v792
        %v2534 = vpack.c.bf16 %v795, %v794
        %v2535 = vpack.c.bf16 %v797, %v796
        %v2536 = vpack.c.bf16 %v799, %v798
        %v2537 = vpack.c.bf16 %v801, %v800
        %v2538 = vpack.c.bf16 %v803, %v802
        %v2555 = vunpack.c.l.b16 %v2523
        %v2556 = vunpack.c.h.b16 %v2523
        %v2557 = vunpack.c.l.b16 %v2524
        %v2558 = vunpack.c.h.b16 %v2524
        %v2559 = vunpack.c.l.b16 %v2525
        %v2560 = vunpack.c.h.b16 %v2525
        %v2561 = vunpack.c.l.b16 %v2526
        %v2562 = vunpack.c.h.b16 %v2526
        %v2563 = vunpack.c.l.b16 %v2527
        %v2564 = vunpack.c.h.b16 %v2527
        %v2565 = vunpack.c.l.b16 %v2528
        %v2566 = vunpack.c.h.b16 %v2528
        %v2567 = vunpack.c.l.b16 %v2529
        %v2568 = vunpack.c.h.b16 %v2529
        %v2569 = vunpack.c.l.b16 %v2530
        %v2570 = vunpack.c.h.b16 %v2530
        %v2571 = vunpack.c.l.b16 %v2531
        %v2572 = vunpack.c.h.b16 %v2531
        %v2573 = vunpack.c.l.b16 %v2532
        %v2574 = vunpack.c.h.b16 %v2532
        %v2575 = vunpack.c.l.b16 %v2533
        %v2576 = vunpack.c.h.b16 %v2533
        %v2577 = vunpack.c.l.b16 %v2534
        %v2578 = vunpack.c.h.b16 %v2534
        %v2579 = vunpack.c.l.b16 %v2535
        %v2580 = vunpack.c.h.b16 %v2535
        %v2581 = vunpack.c.l.b16 %v2536
        %v2582 = vunpack.c.h.b16 %v2536
        %v2583 = vunpack.c.l.b16 %v2537
        %v2584 = vunpack.c.h.b16 %v2537
        %v2585 = vunpack.c.l.b16 %v2538
        %v2586 = vunpack.c.h.b16 %v2538
        %v2587 = vpack.c.b16 %v2555, %v2555
        %v2588 = vpack.c.b16 %v2556, %v2556
        %v2589 = vpack.c.b16 %v2557, %v2557
        %v2590 = vpack.c.b16 %v2558, %v2558
        %v2591 = vpack.c.b16 %v2559, %v2559
        %v2592 = vpack.c.b16 %v2560, %v2560
        %v2593 = vpack.c.b16 %v2561, %v2561
        %v2594 = vpack.c.b16 %v2562, %v2562
        %v2595 = vpack.c.b16 %v2563, %v2563
        %v2596 = vpack.c.b16 %v2564, %v2564
        %v2597 = vpack.c.b16 %v2565, %v2565
        %v2598 = vpack.c.b16 %v2566, %v2566
        %v2599 = vpack.c.b16 %v2567, %v2567
        %v2600 = vpack.c.b16 %v2568, %v2568
        %v2601 = vpack.c.b16 %v2569, %v2569
        %v2602 = vpack.c.b16 %v2570, %v2570
        %v2603 = vpack.c.b16 %v2571, %v2571
        %v2604 = vpack.c.b16 %v2572, %v2572
        %v2605 = vpack.c.b16 %v2573, %v2573
        %v2606 = vpack.c.b16 %v2574, %v2574
        %v2607 = vpack.c.b16 %v2575, %v2575
        %v2608 = vpack.c.b16 %v2576, %v2576
        %v2609 = vpack.c.b16 %v2577, %v2577
        %v2610 = vpack.c.b16 %v2578, %v2578
        %v2611 = vpack.c.b16 %v2579, %v2579
        %v2612 = vpack.c.b16 %v2580, %v2580
        %v2613 = vpack.c.b16 %v2581, %v2581
        %v2614 = vpack.c.b16 %v2582, %v2582
        %v2615 = vpack.c.b16 %v2583, %v2583
        %v2616 = vpack.c.b16 %v2584, %v2584
        %v2617 = vpack.c.b16 %v2585, %v2585
        %v2618 = vpack.c.b16 %v2586, %v2586
        %2651 = vst [vmem:[#allocation3 + $0x10] sm:$0xf] %v2587
        %2652 = vst [vmem:[#allocation3 + $0x34] sm:$0xf] %v2588
        %2653 = vst [vmem:[#allocation3 + $0x58] sm:$0xf] %v2589
        %2654 = vst [vmem:[#allocation3 + $0x7c] sm:$0xf] %v2590
        %2655 = vst [vmem:[#allocation3 + $0xa0] sm:$0xf] %v2591
        %2656 = vst [vmem:[#allocation3 + $0xc4] sm:$0xf] %v2592
        %2657 = vst [vmem:[#allocation3 + $0xe8] sm:$0xf] %v2593
        %2658 = vst [vmem:[#allocation3 + $0x10c] sm:$0xf] %v2594
        %2659 = vst [vmem:[#allocation3 + $0x130] sm:$0xf] %v2595
        %2660 = vst [vmem:[#allocation3 + $0x154] sm:$0xf] %v2596
        %2661 = vst [vmem:[#allocation3 + $0x178] sm:$0xf] %v2597
        %2662 = vst [vmem:[#allocation3 + $0x19c] sm:$0xf] %v2598
        %2663 = vst [vmem:[#allocation3 + $0x1c0] sm:$0xf] %v2599
        %2664 = vst [vmem:[#allocation3 + $0x1e4] sm:$0xf] %v2600
        %2665 = vst [vmem:[#allocation3 + $0x208] sm:$0xf] %v2601
        %2666 = vst [vmem:[#allocation3 + $0x22c] sm:$0xf] %v2602
        %2667 = vst [vmem:[#allocation3 + $0x250] sm:$0xf] %v2603
        %2668 = vst [vmem:[#allocation3 + $0x274] sm:$0xf] %v2604
        %2669 = vst [vmem:[#allocation3 + $0x298] sm:$0xf] %v2605
        %2670 = vst [vmem:[#allocation3 + $0x2bc] sm:$0xf] %v2606
        %2671 = vst [vmem:[#allocation3 + $0x2e0] sm:$0xf] %v2607
        %2672 = vst [vmem:[#allocation3 + $0x304] sm:$0xf] %v2608
        %2673 = vst [vmem:[#allocation3 + $0x328] sm:$0xf] %v2609
        %2674 = vst [vmem:[#allocation3 + $0x34c] sm:$0xf] %v2610
        %2675 = vst [vmem:[#allocation3 + $0x370] sm:$0xf] %v2611
        %2676 = vst [vmem:[#allocation3 + $0x394] sm:$0xf] %v2612
        %2677 = vst [vmem:[#allocation3 + $0x3b8] sm:$0xf] %v2613
        %2678 = vst [vmem:[#allocation3 + $0x3dc] sm:$0xf] %v2614
        %2679 = vst [vmem:[#allocation3 + $0x400] sm:$0xf] %v2615
        %2680 = vst [vmem:[#allocation3 + $0x424] sm:$0xf] %v2616
        %2681 = vst [vmem:[#allocation3 + $0x448] sm:$0xf] %v2617
        %2682 = vst [vmem:[#allocation3 + $0x46c] sm:$0xf] %v2618
        %v2683 = vld [vmem:[#allocation2 + $0x19] sm:$0xff]
        %v2684 = vld [vmem:[#allocation2 + $0x21] sm:$0xff]
        %v2685 = vld [vmem:[#allocation2 + $0x29] sm:$0xff]
        %v2686 = vld [vmem:[#allocation2 + $0x31] sm:$0xff]
        %v2687 = vld [vmem:[#allocation2 + $0x39] sm:$0xff]
        %v2688 = vld [vmem:[#allocation2 + $0x41] sm:$0xff]
        %v2689 = vld [vmem:[#allocation2 + $0x49] sm:$0xff]
        %v2690 = vld [vmem:[#allocation2 + $0x51] sm:$0xff]
        %v2691 = vld [vmem:[#allocation2 + $0x59] sm:$0xff]
        %v2692 = vld [vmem:[#allocation2 + $0x61] sm:$0xff]
        %v2693 = vld [vmem:[#allocation2 + $0x69] sm:$0xff]
        %v2694 = vld [vmem:[#allocation2 + $0x71] sm:$0xff]
        %v2695 = vld [vmem:[#allocation2 + $0x79] sm:$0xff]
        %v2696 = vld [vmem:[#allocation2 + $0x81] sm:$0xff]
        %v2697 = vld [vmem:[#allocation2 + $0x89] sm:$0xff]
        %v2698 = vld [vmem:[#allocation2 + $0x91] sm:$0xff]
        %v2699 = vld [vmem:[#allocation2 + $0x99] sm:$0xff]
        %v2700 = vld [vmem:[#allocation2 + $0xa1] sm:$0xff]
        %v2701 = vld [vmem:[#allocation2 + $0xa9] sm:$0xff]
        %v2702 = vld [vmem:[#allocation2 + $0xb1] sm:$0xff]
        %v2703 = vld [vmem:[#allocation2 + $0xb9] sm:$0xff]
        %v2704 = vld [vmem:[#allocation2 + $0xc1] sm:$0xff]
        %v2705 = vld [vmem:[#allocation2 + $0xc9] sm:$0xff]
        %v2706 = vld [vmem:[#allocation2 + $0xd1] sm:$0xff]
        %v2707 = vld [vmem:[#allocation2 + $0xd9] sm:$0xff]
        %v2708 = vld [vmem:[#allocation2 + $0xe1] sm:$0xff]
        %v2709 = vld [vmem:[#allocation2 + $0xe9] sm:$0xff]
        %v2710 = vld [vmem:[#allocation2 + $0xf1] sm:$0xff]
        %v2711 = vld [vmem:[#allocation2 + $0xf9] sm:$0xff]
        %v2712 = vld [vmem:[#allocation2 + $0x101] sm:$0xff]
        %v2713 = vld [vmem:[#allocation2 + $0x109] sm:$0xff]
        %v2714 = vld [vmem:[#allocation2 + $0x111] sm:$0xff]
        %v2715 = vpack.c.bf16 %v2684, %v2683
        %v2716 = vpack.c.bf16 %v2686, %v2685
        %v2717 = vpack.c.bf16 %v2688, %v2687
        %v2718 = vpack.c.bf16 %v2690, %v2689
        %v2719 = vpack.c.bf16 %v2692, %v2691
        %v2720 = vpack.c.bf16 %v2694, %v2693
        %v2721 = vpack.c.bf16 %v2696, %v2695
        %v2722 = vpack.c.bf16 %v2698, %v2697
        %v2723 = vpack.c.bf16 %v2700, %v2699
        %v2724 = vpack.c.bf16 %v2702, %v2701
        %v2725 = vpack.c.bf16 %v2704, %v2703
        %v2726 = vpack.c.bf16 %v2706, %v2705
        %v2727 = vpack.c.bf16 %v2708, %v2707
        %v2728 = vpack.c.bf16 %v2710, %v2709
        %v2729 = vpack.c.bf16 %v2712, %v2711
        %v2730 = vpack.c.bf16 %v2714, %v2713
        %v2731 = vsel %vm2139, %v2715, 0
        %v2732 = vsel %vm2140, %v2716, 0
        %v2733 = vsel %vm2141, %v2717, 0
        %v2734 = vsel %vm2142, %v2718, 0
        %v2735 = vsel %vm2143, %v2719, 0
        %v2736 = vsel %vm2144, %v2720, 0
        %v2737 = vsel %vm2145, %v2721, 0
        %v2738 = vsel %vm2146, %v2722, 0
        %v2739 = vsel %vm2147, %v2723, 0
        %v2740 = vsel %vm2148, %v2724, 0
        %v2741 = vsel %vm2149, %v2725, 0
        %v2742 = vsel %vm2150, %v2726, 0
        %v2743 = vsel %vm2151, %v2727, 0
        %v2744 = vsel %vm2152, %v2728, 0
        %v2745 = vsel %vm2153, %v2729, 0
        %v2746 = vsel %vm2154, %v2730, 0
        %v2763 = vunpack.c.l.b16 %v2731
        %v2764 = vunpack.c.h.b16 %v2731
        %v2765 = vunpack.c.l.b16 %v2732
        %v2766 = vunpack.c.h.b16 %v2732
        %v2767 = vunpack.c.l.b16 %v2733
        %v2768 = vunpack.c.h.b16 %v2733
        %v2769 = vunpack.c.l.b16 %v2734
        %v2770 = vunpack.c.h.b16 %v2734
        %v2771 = vunpack.c.l.b16 %v2735
        %v2772 = vunpack.c.h.b16 %v2735
        %v2773 = vunpack.c.l.b16 %v2736
        %v2774 = vunpack.c.h.b16 %v2736
        %v2775 = vunpack.c.l.b16 %v2737
        %v2776 = vunpack.c.h.b16 %v2737
        %v2777 = vunpack.c.l.b16 %v2738
        %v2778 = vunpack.c.h.b16 %v2738
        %v2779 = vunpack.c.l.b16 %v2739
        %v2780 = vunpack.c.h.b16 %v2739
        %v2781 = vunpack.c.l.b16 %v2740
        %v2782 = vunpack.c.h.b16 %v2740
        %v2783 = vunpack.c.l.b16 %v2741
        %v2784 = vunpack.c.h.b16 %v2741
        %v2785 = vunpack.c.l.b16 %v2742
        %v2786 = vunpack.c.h.b16 %v2742
        %v2787 = vunpack.c.l.b16 %v2743
        %v2788 = vunpack.c.h.b16 %v2743
        %v2789 = vunpack.c.l.b16 %v2744
        %v2790 = vunpack.c.h.b16 %v2744
        %v2791 = vunpack.c.l.b16 %v2745
        %v2792 = vunpack.c.h.b16 %v2745
        %v2793 = vunpack.c.l.b16 %v2746
        %v2794 = vunpack.c.h.b16 %v2746
        %v2795 = vpack.c.b16 %v2763, %v2763
        %v2796 = vpack.c.b16 %v2764, %v2764
        %v2797 = vpack.c.b16 %v2765, %v2765
        %v2798 = vpack.c.b16 %v2766, %v2766
        %v2799 = vpack.c.b16 %v2767, %v2767
        %v2800 = vpack.c.b16 %v2768, %v2768
        %v2801 = vpack.c.b16 %v2769, %v2769
        %v2802 = vpack.c.b16 %v2770, %v2770
        %v2803 = vpack.c.b16 %v2771, %v2771
        %v2804 = vpack.c.b16 %v2772, %v2772
        %v2805 = vpack.c.b16 %v2773, %v2773
        %v2806 = vpack.c.b16 %v2774, %v2774
        %v2807 = vpack.c.b16 %v2775, %v2775
        %v2808 = vpack.c.b16 %v2776, %v2776
        %v2809 = vpack.c.b16 %v2777, %v2777
        %v2810 = vpack.c.b16 %v2778, %v2778
        %v2811 = vpack.c.b16 %v2779, %v2779
        %v2812 = vpack.c.b16 %v2780, %v2780
        %v2813 = vpack.c.b16 %v2781, %v2781
        %v2814 = vpack.c.b16 %v2782, %v2782
        %v2815 = vpack.c.b16 %v2783, %v2783
        %v2816 = vpack.c.b16 %v2784, %v2784
        %v2817 = vpack.c.b16 %v2785, %v2785
        %v2818 = vpack.c.b16 %v2786, %v2786
        %v2819 = vpack.c.b16 %v2787, %v2787
        %v2820 = vpack.c.b16 %v2788, %v2788
        %v2821 = vpack.c.b16 %v2789, %v2789
        %v2822 = vpack.c.b16 %v2790, %v2790
        %v2823 = vpack.c.b16 %v2791, %v2791
        %v2824 = vpack.c.b16 %v2792, %v2792
        %v2825 = vpack.c.b16 %v2793, %v2793
        %v2826 = vpack.c.b16 %v2794, %v2794
        %2859 = vst [vmem:[#allocation3 + $0x14] sm:$0xf] %v2795
        %2860 = vst [vmem:[#allocation3 + $0x38] sm:$0xf] %v2796
        %2861 = vst [vmem:[#allocation3 + $0x5c] sm:$0xf] %v2797
        %2862 = vst [vmem:[#allocation3 + $0x80] sm:$0xf] %v2798
        %2863 = vst [vmem:[#allocation3 + $0xa4] sm:$0xf] %v2799
        %2864 = vst [vmem:[#allocation3 + $0xc8] sm:$0xf] %v2800
        %2865 = vst [vmem:[#allocation3 + $0xec] sm:$0xf] %v2801
        %2866 = vst [vmem:[#allocation3 + $0x110] sm:$0xf] %v2802
        %2867 = vst [vmem:[#allocation3 + $0x134] sm:$0xf] %v2803
        %2868 = vst [vmem:[#allocation3 + $0x158] sm:$0xf] %v2804
        %2869 = vst [vmem:[#allocation3 + $0x17c] sm:$0xf] %v2805
        %2870 = vst [vmem:[#allocation3 + $0x1a0] sm:$0xf] %v2806
        %2871 = vst [vmem:[#allocation3 + $0x1c4] sm:$0xf] %v2807
        %2872 = vst [vmem:[#allocation3 + $0x1e8] sm:$0xf] %v2808
        %2873 = vst [vmem:[#allocation3 + $0x20c] sm:$0xf] %v2809
        %2874 = vst [vmem:[#allocation3 + $0x230] sm:$0xf] %v2810
        %2875 = vst [vmem:[#allocation3 + $0x254] sm:$0xf] %v2811
        %2876 = vst [vmem:[#allocation3 + $0x278] sm:$0xf] %v2812
        %2877 = vst [vmem:[#allocation3 + $0x29c] sm:$0xf] %v2813
        %2878 = vst [vmem:[#allocation3 + $0x2c0] sm:$0xf] %v2814
        %2879 = vst [vmem:[#allocation3 + $0x2e4] sm:$0xf] %v2815
        %2880 = vst [vmem:[#allocation3 + $0x308] sm:$0xf] %v2816
        %2881 = vst [vmem:[#allocation3 + $0x32c] sm:$0xf] %v2817
        %2882 = vst [vmem:[#allocation3 + $0x350] sm:$0xf] %v2818
        %2883 = vst [vmem:[#allocation3 + $0x374] sm:$0xf] %v2819
        %2884 = vst [vmem:[#allocation3 + $0x398] sm:$0xf] %v2820
        %2885 = vst [vmem:[#allocation3 + $0x3bc] sm:$0xf] %v2821
        %2886 = vst [vmem:[#allocation3 + $0x3e0] sm:$0xf] %v2822
        %2887 = vst [vmem:[#allocation3 + $0x404] sm:$0xf] %v2823
        %2888 = vst [vmem:[#allocation3 + $0x428] sm:$0xf] %v2824
        %2889 = vst [vmem:[#allocation3 + $0x44c] sm:$0xf] %v2825
        %2890 = vst [vmem:[#allocation3 + $0x470] sm:$0xf] %v2826
        %v2891 = vld [vmem:[#allocation2 + $0x27] sm:$0xff]
        %v2892 = vld [vmem:[#allocation2 + $0x2f] sm:$0xff]
        %v2893 = vld [vmem:[#allocation2 + $0x37] sm:$0xff]
        %v2894 = vld [vmem:[#allocation2 + $0x3f] sm:$0xff]
        %v2895 = vld [vmem:[#allocation2 + $0x47] sm:$0xff]
        %v2896 = vld [vmem:[#allocation2 + $0x4f] sm:$0xff]
        %v2897 = vld [vmem:[#allocation2 + $0x57] sm:$0xff]
        %v2898 = vld [vmem:[#allocation2 + $0x5f] sm:$0xff]
        %v2899 = vld [vmem:[#allocation2 + $0x67] sm:$0xff]
        %v2900 = vld [vmem:[#allocation2 + $0x6f] sm:$0xff]
        %v2901 = vld [vmem:[#allocation2 + $0x77] sm:$0xff]
        %v2902 = vld [vmem:[#allocation2 + $0x7f] sm:$0xff]
        %v2903 = vld [vmem:[#allocation2 + $0x87] sm:$0xff]
        %v2904 = vld [vmem:[#allocation2 + $0x8f] sm:$0xff]
        %v2905 = vld [vmem:[#allocation2 + $0x97] sm:$0xff]
        %v2906 = vld [vmem:[#allocation2 + $0x9f] sm:$0xff]
        %v2907 = vld [vmem:[#allocation2 + $0xa7] sm:$0xff]
        %v2908 = vld [vmem:[#allocation2 + $0xaf] sm:$0xff]
        %v2909 = vld [vmem:[#allocation2 + $0xb7] sm:$0xff]
        %v2910 = vld [vmem:[#allocation2 + $0xbf] sm:$0xff]
        %v2911 = vld [vmem:[#allocation2 + $0xc7] sm:$0xff]
        %v2912 = vld [vmem:[#allocation2 + $0xcf] sm:$0xff]
        %v2913 = vld [vmem:[#allocation2 + $0xd7] sm:$0xff]
        %v2914 = vld [vmem:[#allocation2 + $0xdf] sm:$0xff]
        %v2915 = vld [vmem:[#allocation2 + $0xe7] sm:$0xff]
        %v2916 = vld [vmem:[#allocation2 + $0xef] sm:$0xff]
        %v2917 = vld [vmem:[#allocation2 + $0xf7] sm:$0xff]
        %v2918 = vld [vmem:[#allocation2 + $0xff] sm:$0xff]
        %v2919 = vld [vmem:[#allocation2 + $0x107] sm:$0xff]
        %v2920 = vld [vmem:[#allocation2 + $0x10f] sm:$0xff]
        %v2921 = vld [vmem:[#allocation2 + $0x117] sm:$0xff]
        %v2922 = vld [vmem:[#allocation2 + $0x11f] sm:$0xff]
        %v2923 = vpack.c.bf16 %v2892, %v2891
        %v2924 = vpack.c.bf16 %v2894, %v2893
        %v2925 = vpack.c.bf16 %v2896, %v2895
        %v2926 = vpack.c.bf16 %v2898, %v2897
        %v2927 = vpack.c.bf16 %v2900, %v2899
        %v2928 = vpack.c.bf16 %v2902, %v2901
        %v2929 = vpack.c.bf16 %v2904, %v2903
        %v2930 = vpack.c.bf16 %v2906, %v2905
        %v2931 = vpack.c.bf16 %v2908, %v2907
        %v2932 = vpack.c.bf16 %v2910, %v2909
        %v2933 = vpack.c.bf16 %v2912, %v2911
        %v2934 = vpack.c.bf16 %v2914, %v2913
        %v2935 = vpack.c.bf16 %v2916, %v2915
        %v2936 = vpack.c.bf16 %v2918, %v2917
        %v2937 = vpack.c.bf16 %v2920, %v2919
        %v2938 = vpack.c.bf16 %v2922, %v2921
        %v2939 = vsel %vm1547, %v2923, 0
        %v2940 = vsel %vm1548, %v2924, 0
        %v2941 = vsel %vm1549, %v2925, 0
        %v2942 = vsel %vm1550, %v2926, 0
        %v2943 = vsel %vm1551, %v2927, 0
        %v2944 = vsel %vm1552, %v2928, 0
        %v2945 = vsel %vm1553, %v2929, 0
        %v2946 = vsel %vm1554, %v2930, 0
        %v2947 = vsel %vm1555, %v2931, 0
        %v2948 = vsel %vm1556, %v2932, 0
        %v2949 = vsel %vm1557, %v2933, 0
        %v2950 = vsel %vm1558, %v2934, 0
        %v2951 = vsel %vm1559, %v2935, 0
        %v2952 = vsel %vm1560, %v2936, 0
        %v2953 = vsel %vm1561, %v2937, 0
        %v2954 = vsel %vm1562, %v2938, 0
        %v2971 = vunpack.c.l.b16 %v2939
        %v2972 = vunpack.c.h.b16 %v2939
        %v2973 = vunpack.c.l.b16 %v2940
        %v2974 = vunpack.c.h.b16 %v2940
        %v2975 = vunpack.c.l.b16 %v2941
        %v2976 = vunpack.c.h.b16 %v2941
        %v2977 = vunpack.c.l.b16 %v2942
        %v2978 = vunpack.c.h.b16 %v2942
        %v2979 = vunpack.c.l.b16 %v2943
        %v2980 = vunpack.c.h.b16 %v2943
        %v2981 = vunpack.c.l.b16 %v2944
        %v2982 = vunpack.c.h.b16 %v2944
        %v2983 = vunpack.c.l.b16 %v2945
        %v2984 = vunpack.c.h.b16 %v2945
        %v2985 = vunpack.c.l.b16 %v2946
        %v2986 = vunpack.c.h.b16 %v2946
        %v2987 = vunpack.c.l.b16 %v2947
        %v2988 = vunpack.c.h.b16 %v2947
        %v2989 = vunpack.c.l.b16 %v2948
        %v2990 = vunpack.c.h.b16 %v2948
        %v2991 = vunpack.c.l.b16 %v2949
        %v2992 = vunpack.c.h.b16 %v2949
        %v2993 = vunpack.c.l.b16 %v2950
        %v2994 = vunpack.c.h.b16 %v2950
        %v2995 = vunpack.c.l.b16 %v2951
        %v2996 = vunpack.c.h.b16 %v2951
        %v2997 = vunpack.c.l.b16 %v2952
        %v2998 = vunpack.c.h.b16 %v2952
        %v2999 = vunpack.c.l.b16 %v2953
        %v3000 = vunpack.c.h.b16 %v2953
        %v3001 = vunpack.c.l.b16 %v2954
        %v3002 = vunpack.c.h.b16 %v2954
        %v3003 = vpack.c.b16 %v2971, %v2971
        %v3004 = vpack.c.b16 %v2972, %v2972
        %v3005 = vpack.c.b16 %v2973, %v2973
        %v3006 = vpack.c.b16 %v2974, %v2974
        %v3007 = vpack.c.b16 %v2975, %v2975
        %v3008 = vpack.c.b16 %v2976, %v2976
        %v3009 = vpack.c.b16 %v2977, %v2977
        %v3010 = vpack.c.b16 %v2978, %v2978
        %v3011 = vpack.c.b16 %v2979, %v2979
        %v3012 = vpack.c.b16 %v2980, %v2980
        %v3013 = vpack.c.b16 %v2981, %v2981
        %v3014 = vpack.c.b16 %v2982, %v2982
        %v3015 = vpack.c.b16 %v2983, %v2983
        %v3016 = vpack.c.b16 %v2984, %v2984
        %v3017 = vpack.c.b16 %v2985, %v2985
        %v3018 = vpack.c.b16 %v2986, %v2986
        %v3019 = vpack.c.b16 %v2987, %v2987
        %v3020 = vpack.c.b16 %v2988, %v2988
        %v3021 = vpack.c.b16 %v2989, %v2989
        %v3022 = vpack.c.b16 %v2990, %v2990
        %v3023 = vpack.c.b16 %v2991, %v2991
        %v3024 = vpack.c.b16 %v2992, %v2992
        %v3025 = vpack.c.b16 %v2993, %v2993
        %v3026 = vpack.c.b16 %v2994, %v2994
        %v3027 = vpack.c.b16 %v2995, %v2995
        %v3028 = vpack.c.b16 %v2996, %v2996
        %v3029 = vpack.c.b16 %v2997, %v2997
        %v3030 = vpack.c.b16 %v2998, %v2998
        %v3031 = vpack.c.b16 %v2999, %v2999
        %v3032 = vpack.c.b16 %v3000, %v3000
        %v3033 = vpack.c.b16 %v3001, %v3001
        %v3034 = vpack.c.b16 %v3002, %v3002
        %3067 = vst [vmem:[#allocation3 + $0x18] sm:$0xf] %v3003
        %3068 = vst [vmem:[#allocation3 + $0x3c] sm:$0xf] %v3004
        %3069 = vst [vmem:[#allocation3 + $0x60] sm:$0xf] %v3005
        %3070 = vst [vmem:[#allocation3 + $0x84] sm:$0xf] %v3006
        %3071 = vst [vmem:[#allocation3 + $0xa8] sm:$0xf] %v3007
        %3072 = vst [vmem:[#allocation3 + $0xcc] sm:$0xf] %v3008
        %3073 = vst [vmem:[#allocation3 + $0xf0] sm:$0xf] %v3009
        %3074 = vst [vmem:[#allocation3 + $0x114] sm:$0xf] %v3010
        %3075 = vst [vmem:[#allocation3 + $0x138] sm:$0xf] %v3011
        %3076 = vst [vmem:[#allocation3 + $0x15c] sm:$0xf] %v3012
        %3077 = vst [vmem:[#allocation3 + $0x180] sm:$0xf] %v3013
        %3078 = vst [vmem:[#allocation3 + $0x1a4] sm:$0xf] %v3014
        %3079 = vst [vmem:[#allocation3 + $0x1c8] sm:$0xf] %v3015
        %3080 = vst [vmem:[#allocation3 + $0x1ec] sm:$0xf] %v3016
        %3081 = vst [vmem:[#allocation3 + $0x210] sm:$0xf] %v3017
        %3082 = vst [vmem:[#allocation3 + $0x234] sm:$0xf] %v3018
        %3083 = vst [vmem:[#allocation3 + $0x258] sm:$0xf] %v3019
        %3084 = vst [vmem:[#allocation3 + $0x27c] sm:$0xf] %v3020
        %3085 = vst [vmem:[#allocation3 + $0x2a0] sm:$0xf] %v3021
        %3086 = vst [vmem:[#allocation3 + $0x2c4] sm:$0xf] %v3022
        %3087 = vst [vmem:[#allocation3 + $0x2e8] sm:$0xf] %v3023
        %3088 = vst [vmem:[#allocation3 + $0x30c] sm:$0xf] %v3024
        %3089 = vst [vmem:[#allocation3 + $0x330] sm:$0xf] %v3025
        %3090 = vst [vmem:[#allocation3 + $0x354] sm:$0xf] %v3026
        %3091 = vst [vmem:[#allocation3 + $0x378] sm:$0xf] %v3027
        %3092 = vst [vmem:[#allocation3 + $0x39c] sm:$0xf] %v3028
        %3093 = vst [vmem:[#allocation3 + $0x3c0] sm:$0xf] %v3029
        %3094 = vst [vmem:[#allocation3 + $0x3e4] sm:$0xf] %v3030
        %3095 = vst [vmem:[#allocation3 + $0x408] sm:$0xf] %v3031
        %3096 = vst [vmem:[#allocation3 + $0x42c] sm:$0xf] %v3032
        %3097 = vst [vmem:[#allocation3 + $0x450] sm:$0xf] %v3033
        %3098 = vst [vmem:[#allocation3 + $0x474] sm:$0xf] %v3034
        %v3099 = vld [vmem:[#allocation2 + $0x28] sm:$0xff]
        %v3100 = vld [vmem:[#allocation2 + $0x30] sm:$0xff]
        %v3101 = vld [vmem:[#allocation2 + $0x38] sm:$0xff]
        %v3102 = vld [vmem:[#allocation2 + $0x40] sm:$0xff]
        %v3103 = vld [vmem:[#allocation2 + $0x48] sm:$0xff]
        %v3104 = vld [vmem:[#allocation2 + $0x50] sm:$0xff]
        %v3105 = vld [vmem:[#allocation2 + $0x58] sm:$0xff]
        %v3106 = vld [vmem:[#allocation2 + $0x60] sm:$0xff]
        %v3107 = vld [vmem:[#allocation2 + $0x68] sm:$0xff]
        %v3108 = vld [vmem:[#allocation2 + $0x70] sm:$0xff]
        %v3109 = vld [vmem:[#allocation2 + $0x78] sm:$0xff]
        %v3110 = vld [vmem:[#allocation2 + $0x80] sm:$0xff]
        %v3111 = vld [vmem:[#allocation2 + $0x88] sm:$0xff]
        %v3112 = vld [vmem:[#allocation2 + $0x90] sm:$0xff]
        %v3113 = vld [vmem:[#allocation2 + $0x98] sm:$0xff]
        %v3114 = vld [vmem:[#allocation2 + $0xa0] sm:$0xff]
        %v3115 = vld [vmem:[#allocation2 + $0xa8] sm:$0xff]
        %v3116 = vld [vmem:[#allocation2 + $0xb0] sm:$0xff]
        %v3117 = vld [vmem:[#allocation2 + $0xb8] sm:$0xff]
        %v3118 = vld [vmem:[#allocation2 + $0xc0] sm:$0xff]
        %v3119 = vld [vmem:[#allocation2 + $0xc8] sm:$0xff]
        %v3120 = vld [vmem:[#allocation2 + $0xd0] sm:$0xff]
        %v3121 = vld [vmem:[#allocation2 + $0xd8] sm:$0xff]
        %v3122 = vld [vmem:[#allocation2 + $0xe0] sm:$0xff]
        %v3123 = vld [vmem:[#allocation2 + $0xe8] sm:$0xff]
        %v3124 = vld [vmem:[#allocation2 + $0xf0] sm:$0xff]
        %v3125 = vld [vmem:[#allocation2 + $0xf8] sm:$0xff]
        %v3126 = vld [vmem:[#allocation2 + $0x100] sm:$0xff]
        %v3127 = vld [vmem:[#allocation2 + $0x108] sm:$0xff]
        %v3128 = vld [vmem:[#allocation2 + $0x110] sm:$0xff]
        %v3129 = vld [vmem:[#allocation2 + $0x118] sm:$0xff]
        %v3130 = vld [vmem:[#allocation2 + $0x120] sm:$0xff]
        %v3131 = vpack.c.bf16 %v3100, %v3099
        %v3132 = vpack.c.bf16 %v3102, %v3101
        %v3133 = vpack.c.bf16 %v3104, %v3103
        %v3134 = vpack.c.bf16 %v3106, %v3105
        %v3135 = vpack.c.bf16 %v3108, %v3107
        %v3136 = vpack.c.bf16 %v3110, %v3109
        %v3137 = vpack.c.bf16 %v3112, %v3111
        %v3138 = vpack.c.bf16 %v3114, %v3113
        %v3139 = vpack.c.bf16 %v3116, %v3115
        %v3140 = vpack.c.bf16 %v3118, %v3117
        %v3141 = vpack.c.bf16 %v3120, %v3119
        %v3142 = vpack.c.bf16 %v3122, %v3121
        %v3143 = vpack.c.bf16 %v3124, %v3123
        %v3144 = vpack.c.bf16 %v3126, %v3125
        %v3145 = vpack.c.bf16 %v3128, %v3127
        %v3146 = vpack.c.bf16 %v3130, %v3129
        %v3163 = vunpack.c.l.b16 %v3131
        %v3164 = vunpack.c.h.b16 %v3131
        %v3165 = vunpack.c.l.b16 %v3132
        %v3166 = vunpack.c.h.b16 %v3132
        %v3167 = vunpack.c.l.b16 %v3133
        %v3168 = vunpack.c.h.b16 %v3133
        %v3169 = vunpack.c.l.b16 %v3134
        %v3170 = vunpack.c.h.b16 %v3134
        %v3171 = vunpack.c.l.b16 %v3135
        %v3172 = vunpack.c.h.b16 %v3135
        %v3173 = vunpack.c.l.b16 %v3136
        %v3174 = vunpack.c.h.b16 %v3136
        %v3175 = vunpack.c.l.b16 %v3137
        %v3176 = vunpack.c.h.b16 %v3137
        %v3177 = vunpack.c.l.b16 %v3138
        %v3178 = vunpack.c.h.b16 %v3138
        %v3179 = vunpack.c.l.b16 %v3139
        %v3180 = vunpack.c.h.b16 %v3139
        %v3181 = vunpack.c.l.b16 %v3140
        %v3182 = vunpack.c.h.b16 %v3140
        %v3183 = vunpack.c.l.b16 %v3141
        %v3184 = vunpack.c.h.b16 %v3141
        %v3185 = vunpack.c.l.b16 %v3142
        %v3186 = vunpack.c.h.b16 %v3142
        %v3187 = vunpack.c.l.b16 %v3143
        %v3188 = vunpack.c.h.b16 %v3143
        %v3189 = vunpack.c.l.b16 %v3144
        %v3190 = vunpack.c.h.b16 %v3144
        %v3191 = vunpack.c.l.b16 %v3145
        %v3192 = vunpack.c.h.b16 %v3145
        %v3193 = vunpack.c.l.b16 %v3146
        %v3194 = vunpack.c.h.b16 %v3146
        %v3195 = vpack.c.b16 %v3163, %v3163
        %v3196 = vpack.c.b16 %v3164, %v3164
        %v3197 = vpack.c.b16 %v3165, %v3165
        %v3198 = vpack.c.b16 %v3166, %v3166
        %v3199 = vpack.c.b16 %v3167, %v3167
        %v3200 = vpack.c.b16 %v3168, %v3168
        %v3201 = vpack.c.b16 %v3169, %v3169
        %v3202 = vpack.c.b16 %v3170, %v3170
        %v3203 = vpack.c.b16 %v3171, %v3171
        %v3204 = vpack.c.b16 %v3172, %v3172
        %v3205 = vpack.c.b16 %v3173, %v3173
        %v3206 = vpack.c.b16 %v3174, %v3174
        %v3207 = vpack.c.b16 %v3175, %v3175
        %v3208 = vpack.c.b16 %v3176, %v3176
        %v3209 = vpack.c.b16 %v3177, %v3177
        %v3210 = vpack.c.b16 %v3178, %v3178
        %v3211 = vpack.c.b16 %v3179, %v3179
        %v3212 = vpack.c.b16 %v3180, %v3180
        %v3213 = vpack.c.b16 %v3181, %v3181
        %v3214 = vpack.c.b16 %v3182, %v3182
        %v3215 = vpack.c.b16 %v3183, %v3183
        %v3216 = vpack.c.b16 %v3184, %v3184
        %v3217 = vpack.c.b16 %v3185, %v3185
        %v3218 = vpack.c.b16 %v3186, %v3186
        %v3219 = vpack.c.b16 %v3187, %v3187
        %v3220 = vpack.c.b16 %v3188, %v3188
        %v3221 = vpack.c.b16 %v3189, %v3189
        %v3222 = vpack.c.b16 %v3190, %v3190
        %v3223 = vpack.c.b16 %v3191, %v3191
        %v3224 = vpack.c.b16 %v3192, %v3192
        %v3225 = vpack.c.b16 %v3193, %v3193
        %v3226 = vpack.c.b16 %v3194, %v3194
        %3259 = vst [vmem:[#allocation3 + $0x1c] sm:$0xf] %v3195
        %3260 = vst [vmem:[#allocation3 + $0x40] sm:$0xf] %v3196
        %3261 = vst [vmem:[#allocation3 + $0x64] sm:$0xf] %v3197
        %3262 = vst [vmem:[#allocation3 + $0x88] sm:$0xf] %v3198
        %3263 = vst [vmem:[#allocation3 + $0xac] sm:$0xf] %v3199
        %3264 = vst [vmem:[#allocation3 + $0xd0] sm:$0xf] %v3200
        %3265 = vst [vmem:[#allocation3 + $0xf4] sm:$0xf] %v3201
        %3266 = vst [vmem:[#allocation3 + $0x118] sm:$0xf] %v3202
        %3267 = vst [vmem:[#allocation3 + $0x13c] sm:$0xf] %v3203
        %3268 = vst [vmem:[#allocation3 + $0x160] sm:$0xf] %v3204
        %3269 = vst [vmem:[#allocation3 + $0x184] sm:$0xf] %v3205
        %3270 = vst [vmem:[#allocation3 + $0x1a8] sm:$0xf] %v3206
        %3271 = vst [vmem:[#allocation3 + $0x1cc] sm:$0xf] %v3207
        %3272 = vst [vmem:[#allocation3 + $0x1f0] sm:$0xf] %v3208
        %3273 = vst [vmem:[#allocation3 + $0x214] sm:$0xf] %v3209
        %3274 = vst [vmem:[#allocation3 + $0x238] sm:$0xf] %v3210
        %3275 = vst [vmem:[#allocation3 + $0x25c] sm:$0xf] %v3211
        %3276 = vst [vmem:[#allocation3 + $0x280] sm:$0xf] %v3212
        %3277 = vst [vmem:[#allocation3 + $0x2a4] sm:$0xf] %v3213
        %3278 = vst [vmem:[#allocation3 + $0x2c8] sm:$0xf] %v3214
        %3279 = vst [vmem:[#allocation3 + $0x2ec] sm:$0xf] %v3215
        %3280 = vst [vmem:[#allocation3 + $0x310] sm:$0xf] %v3216
        %3281 = vst [vmem:[#allocation3 + $0x334] sm:$0xf] %v3217
        %3282 = vst [vmem:[#allocation3 + $0x358] sm:$0xf] %v3218
        %3283 = vst [vmem:[#allocation3 + $0x37c] sm:$0xf] %v3219
        %3284 = vst [vmem:[#allocation3 + $0x3a0] sm:$0xf] %v3220
        %3285 = vst [vmem:[#allocation3 + $0x3c4] sm:$0xf] %v3221
        %3286 = vst [vmem:[#allocation3 + $0x3e8] sm:$0xf] %v3222
        %3287 = vst [vmem:[#allocation3 + $0x40c] sm:$0xf] %v3223
        %3288 = vst [vmem:[#allocation3 + $0x430] sm:$0xf] %v3224
        %3289 = vst [vmem:[#allocation3 + $0x454] sm:$0xf] %v3225
        %3290 = vst [vmem:[#allocation3 + $0x478] sm:$0xf] %v3226
        %v3291 = vld [vmem:[#allocation2 + $0x29] sm:$0xff]
        %v3292 = vld [vmem:[#allocation2 + $0x31] sm:$0xff]
        %v3293 = vld [vmem:[#allocation2 + $0x39] sm:$0xff]
        %v3294 = vld [vmem:[#allocation2 + $0x41] sm:$0xff]
        %v3295 = vld [vmem:[#allocation2 + $0x49] sm:$0xff]
        %v3296 = vld [vmem:[#allocation2 + $0x51] sm:$0xff]
        %v3297 = vld [vmem:[#allocation2 + $0x59] sm:$0xff]
        %v3298 = vld [vmem:[#allocation2 + $0x61] sm:$0xff]
        %v3299 = vld [vmem:[#allocation2 + $0x69] sm:$0xff]
        %v3300 = vld [vmem:[#allocation2 + $0x71] sm:$0xff]
        %v3301 = vld [vmem:[#allocation2 + $0x79] sm:$0xff]
        %v3302 = vld [vmem:[#allocation2 + $0x81] sm:$0xff]
        %v3303 = vld [vmem:[#allocation2 + $0x89] sm:$0xff]
        %v3304 = vld [vmem:[#allocation2 + $0x91] sm:$0xff]
        %v3305 = vld [vmem:[#allocation2 + $0x99] sm:$0xff]
        %v3306 = vld [vmem:[#allocation2 + $0xa1] sm:$0xff]
        %v3307 = vld [vmem:[#allocation2 + $0xa9] sm:$0xff]
        %v3308 = vld [vmem:[#allocation2 + $0xb1] sm:$0xff]
        %v3309 = vld [vmem:[#allocation2 + $0xb9] sm:$0xff]
        %v3310 = vld [vmem:[#allocation2 + $0xc1] sm:$0xff]
        %v3311 = vld [vmem:[#allocation2 + $0xc9] sm:$0xff]
        %v3312 = vld [vmem:[#allocation2 + $0xd1] sm:$0xff]
        %v3313 = vld [vmem:[#allocation2 + $0xd9] sm:$0xff]
        %v3314 = vld [vmem:[#allocation2 + $0xe1] sm:$0xff]
        %v3315 = vld [vmem:[#allocation2 + $0xe9] sm:$0xff]
        %v3316 = vld [vmem:[#allocation2 + $0xf1] sm:$0xff]
        %v3317 = vld [vmem:[#allocation2 + $0xf9] sm:$0xff]
        %v3318 = vld [vmem:[#allocation2 + $0x101] sm:$0xff]
        %v3319 = vld [vmem:[#allocation2 + $0x109] sm:$0xff]
        %v3320 = vld [vmem:[#allocation2 + $0x111] sm:$0xff]
        %v3321 = vld [vmem:[#allocation2 + $0x119] sm:$0xff]
        %v3322 = vld [vmem:[#allocation2 + $0x121] sm:$0xff]
        %v3323 = vpack.c.bf16 %v3292, %v3291
        %v3324 = vpack.c.bf16 %v3294, %v3293
        %v3325 = vpack.c.bf16 %v3296, %v3295
        %v3326 = vpack.c.bf16 %v3298, %v3297
        %v3327 = vpack.c.bf16 %v3300, %v3299
        %v3328 = vpack.c.bf16 %v3302, %v3301
        %v3329 = vpack.c.bf16 %v3304, %v3303
        %v3330 = vpack.c.bf16 %v3306, %v3305
        %v3331 = vpack.c.bf16 %v3308, %v3307
        %v3332 = vpack.c.bf16 %v3310, %v3309
        %v3333 = vpack.c.bf16 %v3312, %v3311
        %v3334 = vpack.c.bf16 %v3314, %v3313
        %v3335 = vpack.c.bf16 %v3316, %v3315
        %v3336 = vpack.c.bf16 %v3318, %v3317
        %v3337 = vpack.c.bf16 %v3320, %v3319
        %v3338 = vpack.c.bf16 %v3322, %v3321
        %v3339 = vsel %vm2139, %v3323, 0
        %v3340 = vsel %vm2140, %v3324, 0
        %v3341 = vsel %vm2141, %v3325, 0
        %v3342 = vsel %vm2142, %v3326, 0
        %v3343 = vsel %vm2143, %v3327, 0
        %v3344 = vsel %vm2144, %v3328, 0
        %v3345 = vsel %vm2145, %v3329, 0
        %v3346 = vsel %vm2146, %v3330, 0
        %v3347 = vsel %vm2147, %v3331, 0
        %v3348 = vsel %vm2148, %v3332, 0
        %v3349 = vsel %vm2149, %v3333, 0
        %v3350 = vsel %vm2150, %v3334, 0
        %v3351 = vsel %vm2151, %v3335, 0
        %v3352 = vsel %vm2152, %v3336, 0
        %v3353 = vsel %vm2153, %v3337, 0
        %v3354 = vsel %vm2154, %v3338, 0
        %v3371 = vunpack.c.l.b16 %v3339
        %v3372 = vunpack.c.h.b16 %v3339
        %v3373 = vunpack.c.l.b16 %v3340
        %v3374 = vunpack.c.h.b16 %v3340
        %v3375 = vunpack.c.l.b16 %v3341
        %v3376 = vunpack.c.h.b16 %v3341
        %v3377 = vunpack.c.l.b16 %v3342
        %v3378 = vunpack.c.h.b16 %v3342
        %v3379 = vunpack.c.l.b16 %v3343
        %v3380 = vunpack.c.h.b16 %v3343
        %v3381 = vunpack.c.l.b16 %v3344
        %v3382 = vunpack.c.h.b16 %v3344
        %v3383 = vunpack.c.l.b16 %v3345
        %v3384 = vunpack.c.h.b16 %v3345
        %v3385 = vunpack.c.l.b16 %v3346
        %v3386 = vunpack.c.h.b16 %v3346
        %v3387 = vunpack.c.l.b16 %v3347
        %v3388 = vunpack.c.h.b16 %v3347
        %v3389 = vunpack.c.l.b16 %v3348
        %v3390 = vunpack.c.h.b16 %v3348
        %v3391 = vunpack.c.l.b16 %v3349
        %v3392 = vunpack.c.h.b16 %v3349
        %v3393 = vunpack.c.l.b16 %v3350
        %v3394 = vunpack.c.h.b16 %v3350
        %v3395 = vunpack.c.l.b16 %v3351
        %v3396 = vunpack.c.h.b16 %v3351
        %v3397 = vunpack.c.l.b16 %v3352
        %v3398 = vunpack.c.h.b16 %v3352
        %v3399 = vunpack.c.l.b16 %v3353
        %v3400 = vunpack.c.h.b16 %v3353
        %v3401 = vunpack.c.l.b16 %v3354
        %v3402 = vunpack.c.h.b16 %v3354
        %v3403 = vpack.c.b16 %v3371, %v3371
        %v3404 = vpack.c.b16 %v3372, %v3372
        %v3405 = vpack.c.b16 %v3373, %v3373
        %v3406 = vpack.c.b16 %v3374, %v3374
        %v3407 = vpack.c.b16 %v3375, %v3375
        %v3408 = vpack.c.b16 %v3376, %v3376
        %v3409 = vpack.c.b16 %v3377, %v3377
        %v3410 = vpack.c.b16 %v3378, %v3378
        %v3411 = vpack.c.b16 %v3379, %v3379
        %v3412 = vpack.c.b16 %v3380, %v3380
        %v3413 = vpack.c.b16 %v3381, %v3381
        %v3414 = vpack.c.b16 %v3382, %v3382
        %v3415 = vpack.c.b16 %v3383, %v3383
        %v3416 = vpack.c.b16 %v3384, %v3384
        %v3417 = vpack.c.b16 %v3385, %v3385
        %v3418 = vpack.c.b16 %v3386, %v3386
        %v3419 = vpack.c.b16 %v3387, %v3387
        %v3420 = vpack.c.b16 %v3388, %v3388
        %v3421 = vpack.c.b16 %v3389, %v3389
        %v3422 = vpack.c.b16 %v3390, %v3390
        %v3423 = vpack.c.b16 %v3391, %v3391
        %v3424 = vpack.c.b16 %v3392, %v3392
        %v3425 = vpack.c.b16 %v3393, %v3393
        %v3426 = vpack.c.b16 %v3394, %v3394
        %v3427 = vpack.c.b16 %v3395, %v3395
        %v3428 = vpack.c.b16 %v3396, %v3396
        %v3429 = vpack.c.b16 %v3397, %v3397
        %v3430 = vpack.c.b16 %v3398, %v3398
        %v3431 = vpack.c.b16 %v3399, %v3399
        %v3432 = vpack.c.b16 %v3400, %v3400
        %v3433 = vpack.c.b16 %v3401, %v3401
        %v3434 = vpack.c.b16 %v3402, %v3402
        %3467 = vst [vmem:[#allocation3 + $0x20] sm:$0xf] %v3403
        %3468 = vst [vmem:[#allocation3 + $0x44] sm:$0xf] %v3404
        %3469 = vst [vmem:[#allocation3 + $0x68] sm:$0xf] %v3405
        %3470 = vst [vmem:[#allocation3 + $0x8c] sm:$0xf] %v3406
        %3471 = vst [vmem:[#allocation3 + $0xb0] sm:$0xf] %v3407
        %3472 = vst [vmem:[#allocation3 + $0xd4] sm:$0xf] %v3408
        %3473 = vst [vmem:[#allocation3 + $0xf8] sm:$0xf] %v3409
        %3474 = vst [vmem:[#allocation3 + $0x11c] sm:$0xf] %v3410
        %3475 = vst [vmem:[#allocation3 + $0x140] sm:$0xf] %v3411
        %3476 = vst [vmem:[#allocation3 + $0x164] sm:$0xf] %v3412
        %3477 = vst [vmem:[#allocation3 + $0x188] sm:$0xf] %v3413
        %3478 = vst [vmem:[#allocation3 + $0x1ac] sm:$0xf] %v3414
        %3479 = vst [vmem:[#allocation3 + $0x1d0] sm:$0xf] %v3415
        %3480 = vst [vmem:[#allocation3 + $0x1f4] sm:$0xf] %v3416
        %3481 = vst [vmem:[#allocation3 + $0x218] sm:$0xf] %v3417
        %3482 = vst [vmem:[#allocation3 + $0x23c] sm:$0xf] %v3418
        %3483 = vst [vmem:[#allocation3 + $0x260] sm:$0xf] %v3419
        %3484 = vst [vmem:[#allocation3 + $0x284] sm:$0xf] %v3420
        %3485 = vst [vmem:[#allocation3 + $0x2a8] sm:$0xf] %v3421
        %3486 = vst [vmem:[#allocation3 + $0x2cc] sm:$0xf] %v3422
        %3487 = vst [vmem:[#allocation3 + $0x2f0] sm:$0xf] %v3423
        %3488 = vst [vmem:[#allocation3 + $0x314] sm:$0xf] %v3424
        %3489 = vst [vmem:[#allocation3 + $0x338] sm:$0xf] %v3425
        %3490 = vst [vmem:[#allocation3 + $0x35c] sm:$0xf] %v3426
        %3491 = vst [vmem:[#allocation3 + $0x380] sm:$0xf] %v3427
        %3492 = vst [vmem:[#allocation3 + $0x3a4] sm:$0xf] %v3428
        %3493 = vst [vmem:[#allocation3 + $0x3c8] sm:$0xf] %v3429
        %3494 = vst [vmem:[#allocation3 + $0x3ec] sm:$0xf] %v3430
        %3495 = vst [vmem:[#allocation3 + $0x410] sm:$0xf] %v3431
        %3496 = vst [vmem:[#allocation3 + $0x434] sm:$0xf] %v3432
        %3497 = vst [vmem:[#allocation3 + $0x458] sm:$0xf] %v3433
        %3498 = vst [vmem:[#allocation3 + $0x47c] sm:$0xf] %v3434
        %v3499 = vld [vmem:[#allocation3] sm:$0xff]
        %v3500 = vld [vmem:[#allocation3 + $0x8] sm:$0xff]
        %v3501 = vld [vmem:[#allocation3 + $0x10] sm:$0xff]
        %v3502 = vld [vmem:[#allocation3 + $0x18] sm:$0xff]
        %v3503 = vld [vmem:[#allocation3 + $0x20] sm:$0xf]
        %v3504 = vld [vmem:[#allocation3 + $0x24] sm:$0xff]
        %v3505 = vld [vmem:[#allocation3 + $0x2c] sm:$0xff]
        %v3506 = vld [vmem:[#allocation3 + $0x34] sm:$0xff]
        %v3507 = vld [vmem:[#allocation3 + $0x3c] sm:$0xff]
        %v3508 = vld [vmem:[#allocation3 + $0x44] sm:$0xf]
        %v3509 = vld [vmem:[#allocation3 + $0x48] sm:$0xff]
        %v3510 = vld [vmem:[#allocation3 + $0x50] sm:$0xff]
        %v3511 = vld [vmem:[#allocation3 + $0x58] sm:$0xff]
        %v3512 = vld [vmem:[#allocation3 + $0x60] sm:$0xff]
        %v3513 = vld [vmem:[#allocation3 + $0x68] sm:$0xf]
        %v3514 = vld [vmem:[#allocation3 + $0x6c] sm:$0xff]
        %v3515 = vld [vmem:[#allocation3 + $0x74] sm:$0xff]
        %v3516 = vld [vmem:[#allocation3 + $0x7c] sm:$0xff]
        %v3517 = vld [vmem:[#allocation3 + $0x84] sm:$0xff]
        %v3518 = vld [vmem:[#allocation3 + $0x8c] sm:$0xf]
        %v3519 = vld [vmem:[#allocation3 + $0x90] sm:$0xff]
        %v3520 = vld [vmem:[#allocation3 + $0x98] sm:$0xff]
        %v3521 = vld [vmem:[#allocation3 + $0xa0] sm:$0xff]
        %v3522 = vld [vmem:[#allocation3 + $0xa8] sm:$0xff]
        %v3523 = vld [vmem:[#allocation3 + $0xb0] sm:$0xf]
        %v3524 = vld [vmem:[#allocation3 + $0xb4] sm:$0xff]
        %v3525 = vld [vmem:[#allocation3 + $0xbc] sm:$0xff]
        %v3526 = vld [vmem:[#allocation3 + $0xc4] sm:$0xff]
        %v3527 = vld [vmem:[#allocation3 + $0xcc] sm:$0xff]
        %v3528 = vld [vmem:[#allocation3 + $0xd4] sm:$0xf]
        %v3529 = vld [vmem:[#allocation3 + $0xd8] sm:$0xff]
        %v3530 = vld [vmem:[#allocation3 + $0xe0] sm:$0xff]
        %v3531 = vld [vmem:[#allocation3 + $0xe8] sm:$0xff]
        %v3532 = vld [vmem:[#allocation3 + $0xf0] sm:$0xff]
        %v3533 = vld [vmem:[#allocation3 + $0xf8] sm:$0xf]
        %v3534 = vld [vmem:[#allocation3 + $0xfc] sm:$0xff]
        %v3535 = vld [vmem:[#allocation3 + $0x104] sm:$0xff]
        %v3536 = vld [vmem:[#allocation3 + $0x10c] sm:$0xff]
        %v3537 = vld [vmem:[#allocation3 + $0x114] sm:$0xff]
        %v3538 = vld [vmem:[#allocation3 + $0x11c] sm:$0xf]
        %v3539 = vld [vmem:[#allocation3 + $0x120] sm:$0xff]
        %v3540 = vld [vmem:[#allocation3 + $0x128] sm:$0xff]
        %v3541 = vld [vmem:[#allocation3 + $0x130] sm:$0xff]
        %v3542 = vld [vmem:[#allocation3 + $0x138] sm:$0xff]
        %v3543 = vld [vmem:[#allocation3 + $0x140] sm:$0xf]
        %v3544 = vld [vmem:[#allocation3 + $0x144] sm:$0xff]
        %v3545 = vld [vmem:[#allocation3 + $0x14c] sm:$0xff]
        %v3546 = vld [vmem:[#allocation3 + $0x154] sm:$0xff]
        %v3547 = vld [vmem:[#allocation3 + $0x15c] sm:$0xff]
        %v3548 = vld [vmem:[#allocation3 + $0x164] sm:$0xf]
        %v3549 = vld [vmem:[#allocation3 + $0x168] sm:$0xff]
        %v3550 = vld [vmem:[#allocation3 + $0x170] sm:$0xff]
        %v3551 = vld [vmem:[#allocation3 + $0x178] sm:$0xff]
        %v3552 = vld [vmem:[#allocation3 + $0x180] sm:$0xff]
        %v3553 = vld [vmem:[#allocation3 + $0x188] sm:$0xf]
        %v3554 = vld [vmem:[#allocation3 + $0x18c] sm:$0xff]
        %v3555 = vld [vmem:[#allocation3 + $0x194] sm:$0xff]
        %v3556 = vld [vmem:[#allocation3 + $0x19c] sm:$0xff]
        %v3557 = vld [vmem:[#allocation3 + $0x1a4] sm:$0xff]
        %v3558 = vld [vmem:[#allocation3 + $0x1ac] sm:$0xf]
        %v3559 = vld [vmem:[#allocation3 + $0x1b0] sm:$0xff]
        %v3560 = vld [vmem:[#allocation3 + $0x1b8] sm:$0xff]
        %v3561 = vld [vmem:[#allocation3 + $0x1c0] sm:$0xff]
        %v3562 = vld [vmem:[#allocation3 + $0x1c8] sm:$0xff]
        %v3563 = vld [vmem:[#allocation3 + $0x1d0] sm:$0xf]
        %v3564 = vld [vmem:[#allocation3 + $0x1d4] sm:$0xff]
        %v3565 = vld [vmem:[#allocation3 + $0x1dc] sm:$0xff]
        %v3566 = vld [vmem:[#allocation3 + $0x1e4] sm:$0xff]
        %v3567 = vld [vmem:[#allocation3 + $0x1ec] sm:$0xff]
        %v3568 = vld [vmem:[#allocation3 + $0x1f4] sm:$0xf]
        %v3569 = vld [vmem:[#allocation3 + $0x1f8] sm:$0xff]
        %v3570 = vld [vmem:[#allocation3 + $0x200] sm:$0xff]
        %v3571 = vld [vmem:[#allocation3 + $0x208] sm:$0xff]
        %v3572 = vld [vmem:[#allocation3 + $0x210] sm:$0xff]
        %v3573 = vld [vmem:[#allocation3 + $0x218] sm:$0xf]
        %v3574 = vld [vmem:[#allocation3 + $0x21c] sm:$0xff]
        %v3575 = vld [vmem:[#allocation3 + $0x224] sm:$0xff]
        %v3576 = vld [vmem:[#allocation3 + $0x22c] sm:$0xff]
        %v3577 = vld [vmem:[#allocation3 + $0x234] sm:$0xff]
        %v3578 = vld [vmem:[#allocation3 + $0x23c] sm:$0xf]
        %v3579 = vld [vmem:[#allocation3 + $0x240] sm:$0xff]
        %v3580 = vld [vmem:[#allocation3 + $0x248] sm:$0xff]
        %v3581 = vld [vmem:[#allocation3 + $0x250] sm:$0xff]
        %v3582 = vld [vmem:[#allocation3 + $0x258] sm:$0xff]
        %v3583 = vld [vmem:[#allocation3 + $0x260] sm:$0xf]
        %v3584 = vld [vmem:[#allocation3 + $0x264] sm:$0xff]
        %v3585 = vld [vmem:[#allocation3 + $0x26c] sm:$0xff]
        %v3586 = vld [vmem:[#allocation3 + $0x274] sm:$0xff]
        %v3587 = vld [vmem:[#allocation3 + $0x27c] sm:$0xff]
        %v3588 = vld [vmem:[#allocation3 + $0x284] sm:$0xf]
        %v3589 = vld [vmem:[#allocation3 + $0x288] sm:$0xff]
        %v3590 = vld [vmem:[#allocation3 + $0x290] sm:$0xff]
        %v3591 = vld [vmem:[#allocation3 + $0x298] sm:$0xff]
        %v3592 = vld [vmem:[#allocation3 + $0x2a0] sm:$0xff]
        %v3593 = vld [vmem:[#allocation3 + $0x2a8] sm:$0xf]
        %v3594 = vld [vmem:[#allocation3 + $0x2ac] sm:$0xff]
        %v3595 = vld [vmem:[#allocation3 + $0x2b4] sm:$0xff]
        %v3596 = vld [vmem:[#allocation3 + $0x2bc] sm:$0xff]
        %v3597 = vld [vmem:[#allocation3 + $0x2c4] sm:$0xff]
        %v3598 = vld [vmem:[#allocation3 + $0x2cc] sm:$0xf]
        %v3599 = vld [vmem:[#allocation3 + $0x2d0] sm:$0xff]
        %v3600 = vld [vmem:[#allocation3 + $0x2d8] sm:$0xff]
        %v3601 = vld [vmem:[#allocation3 + $0x2e0] sm:$0xff]
        %v3602 = vld [vmem:[#allocation3 + $0x2e8] sm:$0xff]
        %v3603 = vld [vmem:[#allocation3 + $0x2f0] sm:$0xf]
        %v3604 = vld [vmem:[#allocation3 + $0x2f4] sm:$0xff]
        %v3605 = vld [vmem:[#allocation3 + $0x2fc] sm:$0xff]
        %v3606 = vld [vmem:[#allocation3 + $0x304] sm:$0xff]
        %v3607 = vld [vmem:[#allocation3 + $0x30c] sm:$0xff]
        %v3608 = vld [vmem:[#allocation3 + $0x314] sm:$0xf]
        %v3609 = vld [vmem:[#allocation3 + $0x318] sm:$0xff]
        %v3610 = vld [vmem:[#allocation3 + $0x320] sm:$0xff]
        %v3611 = vld [vmem:[#allocation3 + $0x328] sm:$0xff]
        %v3612 = vld [vmem:[#allocation3 + $0x330] sm:$0xff]
        %v3613 = vld [vmem:[#allocation3 + $0x338] sm:$0xf]
        %v3614 = vld [vmem:[#allocation3 + $0x33c] sm:$0xff]
        %v3615 = vld [vmem:[#allocation3 + $0x344] sm:$0xff]
        %v3616 = vld [vmem:[#allocation3 + $0x34c] sm:$0xff]
        %v3617 = vld [vmem:[#allocation3 + $0x354] sm:$0xff]
        %v3618 = vld [vmem:[#allocation3 + $0x35c] sm:$0xf]
        %v3619 = vld [vmem:[#allocation3 + $0x360] sm:$0xff]
        %v3620 = vld [vmem:[#allocation3 + $0x368] sm:$0xff]
        %v3621 = vld [vmem:[#allocation3 + $0x370] sm:$0xff]
        %v3622 = vld [vmem:[#allocation3 + $0x378] sm:$0xff]
        %v3623 = vld [vmem:[#allocation3 + $0x380] sm:$0xf]
        %v3624 = vld [vmem:[#allocation3 + $0x384] sm:$0xff]
        %v3625 = vld [vmem:[#allocation3 + $0x38c] sm:$0xff]
        %v3626 = vld [vmem:[#allocation3 + $0x394] sm:$0xff]
        %v3627 = vld [vmem:[#allocation3 + $0x39c] sm:$0xff]
        %v3628 = vld [vmem:[#allocation3 + $0x3a4] sm:$0xf]
        %v3629 = vld [vmem:[#allocation3 + $0x3a8] sm:$0xff]
        %v3630 = vld [vmem:[#allocation3 + $0x3b0] sm:$0xff]
        %v3631 = vld [vmem:[#allocation3 + $0x3b8] sm:$0xff]
        %v3632 = vld [vmem:[#allocation3 + $0x3c0] sm:$0xff]
        %v3633 = vld [vmem:[#allocation3 + $0x3c8] sm:$0xf]
        %v3634 = vld [vmem:[#allocation3 + $0x3cc] sm:$0xff]
        %v3635 = vld [vmem:[#allocation3 + $0x3d4] sm:$0xff]
        %v3636 = vld [vmem:[#allocation3 + $0x3dc] sm:$0xff]
        %v3637 = vld [vmem:[#allocation3 + $0x3e4] sm:$0xff]
        %v3638 = vld [vmem:[#allocation3 + $0x3ec] sm:$0xf]
        %v3639 = vld [vmem:[#allocation3 + $0x3f0] sm:$0xff]
        %v3640 = vld [vmem:[#allocation3 + $0x3f8] sm:$0xff]
        %v3641 = vld [vmem:[#allocation3 + $0x400] sm:$0xff]
        %v3642 = vld [vmem:[#allocation3 + $0x408] sm:$0xff]
        %v3643 = vld [vmem:[#allocation3 + $0x410] sm:$0xf]
        %v3644 = vld [vmem:[#allocation3 + $0x414] sm:$0xff]
        %v3645 = vld [vmem:[#allocation3 + $0x41c] sm:$0xff]
        %v3646 = vld [vmem:[#allocation3 + $0x424] sm:$0xff]
        %v3647 = vld [vmem:[#allocation3 + $0x42c] sm:$0xff]
        %v3648 = vld [vmem:[#allocation3 + $0x434] sm:$0xf]
        %v3649 = vld [vmem:[#allocation3 + $0x438] sm:$0xff]
        %v3650 = vld [vmem:[#allocation3 + $0x440] sm:$0xff]
        %v3651 = vld [vmem:[#allocation3 + $0x448] sm:$0xff]
        %v3652 = vld [vmem:[#allocation3 + $0x450] sm:$0xff]
        %v3653 = vld [vmem:[#allocation3 + $0x458] sm:$0xf]
        %v3654 = vld [vmem:[#allocation3 + $0x45c] sm:$0xff]
        %v3655 = vld [vmem:[#allocation3 + $0x464] sm:$0xff]
        %v3656 = vld [vmem:[#allocation3 + $0x46c] sm:$0xff]
        %v3657 = vld [vmem:[#allocation3 + $0x474] sm:$0xff]
        %v3658 = vld [vmem:[#allocation3 + $0x47c] sm:$0xf]
        %v3659 = vld [vmem:[#allocation11] sm:$0xf]
        %v3660 = vld [vmem:[#allocation11 + $0x4] sm:$0xf]
        %v3661 = vld [vmem:[#allocation11 + $0x8] sm:$0xf]
        %v3662 = vld [vmem:[#allocation11 + $0xc] sm:$0xf]
        %v3663 = vld [vmem:[#allocation11 + $0x10] sm:$0xf]
        %v3664 = vld [vmem:[#allocation11 + $0x14] sm:$0xf]
        %v3665 = vld [vmem:[#allocation11 + $0x18] sm:$0xf]
        %v3666 = vld [vmem:[#allocation11 + $0x1c] sm:$0xf]
        %v3667 = vld [vmem:[#allocation11 + $0x20] sm:$0xf]
        %v3668 = vld [vmem:[#allocation11 + $0x24] sm:$0xf]
        %v3669 = vld [vmem:[#allocation11 + $0x28] sm:$0xf]
        %v3670 = vld [vmem:[#allocation11 + $0x2c] sm:$0xf]
        %v3671 = vld [vmem:[#allocation11 + $0x30] sm:$0xf]
        %v3672 = vld [vmem:[#allocation11 + $0x34] sm:$0xf]
        %v3673 = vld [vmem:[#allocation11 + $0x38] sm:$0xf]
        %v3674 = vld [vmem:[#allocation11 + $0x3c] sm:$0xf]
        %v3675 = vld [vmem:[#allocation11 + $0x40] sm:$0xf]
        %v3676 = vld [vmem:[#allocation11 + $0x44] sm:$0xf]
        %v3677 = vld [vmem:[#allocation11 + $0x48] sm:$0xf]
        %v3678 = vld [vmem:[#allocation11 + $0x4c] sm:$0xf]
        %v3679 = vld [vmem:[#allocation11 + $0x50] sm:$0xf]
        %v3680 = vld [vmem:[#allocation11 + $0x54] sm:$0xf]
        %v3681 = vld [vmem:[#allocation11 + $0x58] sm:$0xf]
        %v3682 = vld [vmem:[#allocation11 + $0x5c] sm:$0xf]
        %v3683 = vld [vmem:[#allocation11 + $0x60] sm:$0xf]
        %v3684 = vld [vmem:[#allocation11 + $0x64] sm:$0xf]
        %v3685 = vld [vmem:[#allocation11 + $0x68] sm:$0xf]
        %v3686 = vld [vmem:[#allocation11 + $0x6c] sm:$0xf]
        %v3687 = vld [vmem:[#allocation11 + $0x70] sm:$0xf]
        %v3688 = vld [vmem:[#allocation11 + $0x74] sm:$0xf]
        %v3689 = vld [vmem:[#allocation11 + $0x78] sm:$0xf]
        %v3690 = vld [vmem:[#allocation11 + $0x7c] sm:$0xf]
        %v3691 = vld [vmem:[#allocation11 + $0x80] sm:$0xf]
        %v3692 = vld [vmem:[#allocation11 + $0x84] sm:$0xf]
        %v3693 = vld [vmem:[#allocation11 + $0x88] sm:$0xf]
        %v3694 = vld [vmem:[#allocation11 + $0x8c] sm:$0xf]
        %v3695 = vld [vmem:[#allocation11 + $0x90] sm:$0xf]
        %v3696 = vld [vmem:[#allocation11 + $0x94] sm:$0xf]
        %v3697 = vld [vmem:[#allocation11 + $0x98] sm:$0xf]
        %v3698 = vld [vmem:[#allocation11 + $0x9c] sm:$0xf]
        %v3699 = vld [vmem:[#allocation11 + $0xa0] sm:$0xf]
        %v3700 = vld [vmem:[#allocation11 + $0xa4] sm:$0xf]
        %v3701 = vld [vmem:[#allocation11 + $0xa8] sm:$0xf]
        %v3702 = vld [vmem:[#allocation11 + $0xac] sm:$0xf]
        %v3703 = vld [vmem:[#allocation11 + $0xb0] sm:$0xf]
        %v3704 = vld [vmem:[#allocation11 + $0xb4] sm:$0xf]
        %v3705 = vld [vmem:[#allocation11 + $0xb8] sm:$0xf]
        %v3706 = vld [vmem:[#allocation11 + $0xbc] sm:$0xf]
        %v3707 = vld [vmem:[#allocation11 + $0xc0] sm:$0xf]
        %v3708 = vld [vmem:[#allocation11 + $0xc4] sm:$0xf]
        %v3709 = vld [vmem:[#allocation11 + $0xc8] sm:$0xf]
        %v3710 = vld [vmem:[#allocation11 + $0xcc] sm:$0xf]
        %v3711 = vld [vmem:[#allocation11 + $0xd0] sm:$0xf]
        %v3712 = vld [vmem:[#allocation11 + $0xd4] sm:$0xf]
        %v3713 = vld [vmem:[#allocation11 + $0xd8] sm:$0xf]
        %v3714 = vld [vmem:[#allocation11 + $0xdc] sm:$0xf]
        %v3715 = vld [vmem:[#allocation11 + $0xe0] sm:$0xf]
        %v3716 = vld [vmem:[#allocation11 + $0xe4] sm:$0xf]
        %v3717 = vld [vmem:[#allocation11 + $0xe8] sm:$0xf]
        %v3718 = vld [vmem:[#allocation11 + $0xec] sm:$0xf]
        %v3719 = vld [vmem:[#allocation11 + $0xf0] sm:$0xf]
        %v3720 = vld [vmem:[#allocation11 + $0xf4] sm:$0xf]
        %v3721 = vld [vmem:[#allocation11 + $0xf8] sm:$0xf]
        %v3722 = vld [vmem:[#allocation11 + $0xfc] sm:$0xf]
        %v3723 = vld [vmem:[#allocation11 + $0x100] sm:$0xf]
        %v3724 = vld [vmem:[#allocation11 + $0x104] sm:$0xf]
        %v3725 = vld [vmem:[#allocation11 + $0x108] sm:$0xf]
        %v3726 = vld [vmem:[#allocation11 + $0x10c] sm:$0xf]
        %v3727 = vld [vmem:[#allocation11 + $0x110] sm:$0xf]
        %v3728 = vld [vmem:[#allocation11 + $0x114] sm:$0xf]
        %v3729 = vld [vmem:[#allocation11 + $0x118] sm:$0xf]
        %v3730 = vld [vmem:[#allocation11 + $0x11c] sm:$0xf]
        %v3731 = vld [vmem:[#allocation11 + $0x120] sm:$0xf]
        %v3732 = vld [vmem:[#allocation11 + $0x124] sm:$0xf]
        %v3733 = vld [vmem:[#allocation11 + $0x128] sm:$0xf]
        %v3734 = vld [vmem:[#allocation11 + $0x12c] sm:$0xf]
        %v3735 = vld [vmem:[#allocation11 + $0x130] sm:$0xf]
        %v3736 = vld [vmem:[#allocation11 + $0x134] sm:$0xf]
        %v3737 = vld [vmem:[#allocation11 + $0x138] sm:$0xf]
        %v3738 = vld [vmem:[#allocation11 + $0x13c] sm:$0xf]
        %v3739 = vld [vmem:[#allocation11 + $0x140] sm:$0xf]
        %v3740 = vld [vmem:[#allocation11 + $0x144] sm:$0xf]
        %v3741 = vld [vmem:[#allocation11 + $0x148] sm:$0xf]
        %v3742 = vld [vmem:[#allocation11 + $0x14c] sm:$0xf]
        %v3743 = vld [vmem:[#allocation11 + $0x150] sm:$0xf]
        %v3744 = vld [vmem:[#allocation11 + $0x154] sm:$0xf]
        %v3745 = vld [vmem:[#allocation11 + $0x158] sm:$0xf]
        %v3746 = vld [vmem:[#allocation11 + $0x15c] sm:$0xf]
        %v3747 = vld [vmem:[#allocation11 + $0x160] sm:$0xf]
        %v3748 = vld [vmem:[#allocation11 + $0x164] sm:$0xf]
        %v3749 = vld [vmem:[#allocation11 + $0x168] sm:$0xf]
        %v3750 = vld [vmem:[#allocation11 + $0x16c] sm:$0xf]
        %v3751 = vld [vmem:[#allocation11 + $0x170] sm:$0xf]
        %v3752 = vld [vmem:[#allocation11 + $0x174] sm:$0xf]
        %v3753 = vld [vmem:[#allocation11 + $0x178] sm:$0xf]
        %v3754 = vld [vmem:[#allocation11 + $0x17c] sm:$0xf]
        %v3755 = vld [vmem:[#allocation11 + $0x180] sm:$0xf]
        %v3756 = vld [vmem:[#allocation11 + $0x184] sm:$0xf]
        %v3757 = vld [vmem:[#allocation11 + $0x188] sm:$0xf]
        %v3758 = vld [vmem:[#allocation11 + $0x18c] sm:$0xf]
        %v3759 = vld [vmem:[#allocation11 + $0x190] sm:$0xf]
        %v3760 = vld [vmem:[#allocation11 + $0x194] sm:$0xf]
        %v3761 = vld [vmem:[#allocation11 + $0x198] sm:$0xf]
        %v3762 = vld [vmem:[#allocation11 + $0x19c] sm:$0xf]
        %v3763 = vld [vmem:[#allocation11 + $0x1a0] sm:$0xf]
        %v3764 = vld [vmem:[#allocation11 + $0x1a4] sm:$0xf]
        %v3765 = vld [vmem:[#allocation11 + $0x1a8] sm:$0xf]
        %v3766 = vld [vmem:[#allocation11 + $0x1ac] sm:$0xf]
        %v3767 = vld [vmem:[#allocation11 + $0x1b0] sm:$0xf]
        %v3768 = vld [vmem:[#allocation11 + $0x1b4] sm:$0xf]
        %v3769 = vld [vmem:[#allocation11 + $0x1b8] sm:$0xf]
        %v3770 = vld [vmem:[#allocation11 + $0x1bc] sm:$0xf]
        %v3771 = vld [vmem:[#allocation11 + $0x1c0] sm:$0xf]
        %v3772 = vld [vmem:[#allocation11 + $0x1c4] sm:$0xf]
        %v3773 = vld [vmem:[#allocation11 + $0x1c8] sm:$0xf]
        %v3774 = vld [vmem:[#allocation11 + $0x1cc] sm:$0xf]
        %v3775 = vld [vmem:[#allocation11 + $0x1d0] sm:$0xf]
        %v3776 = vld [vmem:[#allocation11 + $0x1d4] sm:$0xf]
        %v3777 = vld [vmem:[#allocation11 + $0x1d8] sm:$0xf]
        %v3778 = vld [vmem:[#allocation11 + $0x1dc] sm:$0xf]
        %v3779 = vld [vmem:[#allocation11 + $0x1e0] sm:$0xf]
        %v3780 = vld [vmem:[#allocation11 + $0x1e4] sm:$0xf]
        %v3781 = vld [vmem:[#allocation11 + $0x1e8] sm:$0xf]
        %v3782 = vld [vmem:[#allocation11 + $0x1ec] sm:$0xf]
        %v3783 = vld [vmem:[#allocation11 + $0x1f0] sm:$0xf]
        %v3784 = vld [vmem:[#allocation11 + $0x1f4] sm:$0xf]
        %v3785 = vld [vmem:[#allocation11 + $0x1f8] sm:$0xf]
        %v3786 = vld [vmem:[#allocation11 + $0x1fc] sm:$0xf]
        %v3787 = vld [vmem:[#allocation11 + $0x200] sm:$0xf]
        %v3788 = vld [vmem:[#allocation11 + $0x204] sm:$0xf]
        %v3789 = vld [vmem:[#allocation11 + $0x208] sm:$0xf]
        %v3790 = vld [vmem:[#allocation11 + $0x20c] sm:$0xf]
        %v3791 = vld [vmem:[#allocation11 + $0x210] sm:$0xf]
        %v3792 = vld [vmem:[#allocation11 + $0x214] sm:$0xf]
        %v3793 = vld [vmem:[#allocation11 + $0x218] sm:$0xf]
        %v3794 = vld [vmem:[#allocation11 + $0x21c] sm:$0xf]
        %v3795 = vld [vmem:[#allocation11 + $0x220] sm:$0xf]
        %v3796 = vld [vmem:[#allocation11 + $0x224] sm:$0xf]
        %v3797 = vld [vmem:[#allocation11 + $0x228] sm:$0xf]
        %v3798 = vld [vmem:[#allocation11 + $0x22c] sm:$0xf]
        %v3799 = vld [vmem:[#allocation11 + $0x230] sm:$0xf]
        %v3800 = vld [vmem:[#allocation11 + $0x234] sm:$0xf]
        %v3801 = vld [vmem:[#allocation11 + $0x238] sm:$0xf]
        %v3802 = vld [vmem:[#allocation11 + $0x23c] sm:$0xf]
        %v3803 = vld [vmem:[%s4] sm:$0x1]
        %v3805 = vlaneseq
        %v3806 = vshrl.u32 %v3805, 7
        %v3807 = vsub.s32 0, %v3806
        %v3808 = vrot.slane %v3803, %v3807
        %v3970 = vunpack.c.l.b16 %v3499
        %v3971 = vunpack.c.h.b16 %v3499
        %v3972 = vunpack.c.l.b16 %v3500
        %v3973 = vunpack.c.h.b16 %v3500
        %v3974 = vunpack.c.l.b16 %v3501
        %v3975 = vunpack.c.h.b16 %v3501
        %v3976 = vunpack.c.l.b16 %v3502
        %v3977 = vunpack.c.h.b16 %v3502
        %v3978 = vunpack.c.l.b16 %v3503
        %v3979 = vunpack.c.l.b16 %v3504
        %v3980 = vunpack.c.h.b16 %v3504
        %v3981 = vunpack.c.l.b16 %v3505
        %v3982 = vunpack.c.h.b16 %v3505
        %v3983 = vunpack.c.l.b16 %v3506
        %v3984 = vunpack.c.h.b16 %v3506
        %v3985 = vunpack.c.l.b16 %v3507
        %v3986 = vunpack.c.h.b16 %v3507
        %v3987 = vunpack.c.l.b16 %v3508
        %v3988 = vunpack.c.l.b16 %v3509
        %v3989 = vunpack.c.h.b16 %v3509
        %v3990 = vunpack.c.l.b16 %v3510
        %v3991 = vunpack.c.h.b16 %v3510
        %v3992 = vunpack.c.l.b16 %v3511
        %v3993 = vunpack.c.h.b16 %v3511
        %v3994 = vunpack.c.l.b16 %v3512
        %v3995 = vunpack.c.h.b16 %v3512
        %v3996 = vunpack.c.l.b16 %v3513
        %v3997 = vunpack.c.l.b16 %v3514
        %v3998 = vunpack.c.h.b16 %v3514
        %v3999 = vunpack.c.l.b16 %v3515
        %v4000 = vunpack.c.h.b16 %v3515
        %v4001 = vunpack.c.l.b16 %v3516
        %v4002 = vunpack.c.h.b16 %v3516
        %v4003 = vunpack.c.l.b16 %v3517
        %v4004 = vunpack.c.h.b16 %v3517
        %v4005 = vunpack.c.l.b16 %v3518
        %v4006 = vunpack.c.l.b16 %v3519
        %v4007 = vunpack.c.h.b16 %v3519
        %v4008 = vunpack.c.l.b16 %v3520
        %v4009 = vunpack.c.h.b16 %v3520
        %v4010 = vunpack.c.l.b16 %v3521
        %v4011 = vunpack.c.h.b16 %v3521
        %v4012 = vunpack.c.l.b16 %v3522
        %v4013 = vunpack.c.h.b16 %v3522
        %v4014 = vunpack.c.l.b16 %v3523
        %v4015 = vunpack.c.l.b16 %v3524
        %v4016 = vunpack.c.h.b16 %v3524
        %v4017 = vunpack.c.l.b16 %v3525
        %v4018 = vunpack.c.h.b16 %v3525
        %v4019 = vunpack.c.l.b16 %v3526
        %v4020 = vunpack.c.h.b16 %v3526
        %v4021 = vunpack.c.l.b16 %v3527
        %v4022 = vunpack.c.h.b16 %v3527
        %v4023 = vunpack.c.l.b16 %v3528
        %v4024 = vunpack.c.l.b16 %v3529
        %v4025 = vunpack.c.h.b16 %v3529
        %v4026 = vunpack.c.l.b16 %v3530
        %v4027 = vunpack.c.h.b16 %v3530
        %v4028 = vunpack.c.l.b16 %v3531
        %v4029 = vunpack.c.h.b16 %v3531
        %v4030 = vunpack.c.l.b16 %v3532
        %v4031 = vunpack.c.h.b16 %v3532
        %v4032 = vunpack.c.l.b16 %v3533
        %v4033 = vunpack.c.l.b16 %v3534
        %v4034 = vunpack.c.h.b16 %v3534
        %v4035 = vunpack.c.l.b16 %v3535
        %v4036 = vunpack.c.h.b16 %v3535
        %v4037 = vunpack.c.l.b16 %v3536
        %v4038 = vunpack.c.h.b16 %v3536
        %v4039 = vunpack.c.l.b16 %v3537
        %v4040 = vunpack.c.h.b16 %v3537
        %v4041 = vunpack.c.l.b16 %v3538
        %v4042 = vunpack.c.l.b16 %v3539
        %v4043 = vunpack.c.h.b16 %v3539
        %v4044 = vunpack.c.l.b16 %v3540
        %v4045 = vunpack.c.h.b16 %v3540
        %v4046 = vunpack.c.l.b16 %v3541
        %v4047 = vunpack.c.h.b16 %v3541
        %v4048 = vunpack.c.l.b16 %v3542
        %v4049 = vunpack.c.h.b16 %v3542
        %v4050 = vunpack.c.l.b16 %v3543
        %v4051 = vunpack.c.l.b16 %v3544
        %v4052 = vunpack.c.h.b16 %v3544
        %v4053 = vunpack.c.l.b16 %v3545
        %v4054 = vunpack.c.h.b16 %v3545
        %v4055 = vunpack.c.l.b16 %v3546
        %v4056 = vunpack.c.h.b16 %v3546
        %v4057 = vunpack.c.l.b16 %v3547
        %v4058 = vunpack.c.h.b16 %v3547
        %v4059 = vunpack.c.l.b16 %v3548
        %v4060 = vunpack.c.l.b16 %v3549
        %v4061 = vunpack.c.h.b16 %v3549
        %v4062 = vunpack.c.l.b16 %v3550
        %v4063 = vunpack.c.h.b16 %v3550
        %v4064 = vunpack.c.l.b16 %v3551
        %v4065 = vunpack.c.h.b16 %v3551
        %v4066 = vunpack.c.l.b16 %v3552
        %v4067 = vunpack.c.h.b16 %v3552
        %v4068 = vunpack.c.l.b16 %v3553
        %v4069 = vunpack.c.l.b16 %v3554
        %v4070 = vunpack.c.h.b16 %v3554
        %v4071 = vunpack.c.l.b16 %v3555
        %v4072 = vunpack.c.h.b16 %v3555
        %v4073 = vunpack.c.l.b16 %v3556
        %v4074 = vunpack.c.h.b16 %v3556
        %v4075 = vunpack.c.l.b16 %v3557
        %v4076 = vunpack.c.h.b16 %v3557
        %v4077 = vunpack.c.l.b16 %v3558
        %v4078 = vunpack.c.l.b16 %v3559
        %v4079 = vunpack.c.h.b16 %v3559
        %v4080 = vunpack.c.l.b16 %v3560
        %v4081 = vunpack.c.h.b16 %v3560
        %v4082 = vunpack.c.l.b16 %v3561
        %v4083 = vunpack.c.h.b16 %v3561
        %v4084 = vunpack.c.l.b16 %v3562
        %v4085 = vunpack.c.h.b16 %v3562
        %v4086 = vunpack.c.l.b16 %v3563
        %v4087 = vunpack.c.l.b16 %v3564
        %v4088 = vunpack.c.h.b16 %v3564
        %v4089 = vunpack.c.l.b16 %v3565
        %v4090 = vunpack.c.h.b16 %v3565
        %v4091 = vunpack.c.l.b16 %v3566
        %v4092 = vunpack.c.h.b16 %v3566
        %v4093 = vunpack.c.l.b16 %v3567
        %v4094 = vunpack.c.h.b16 %v3567
        %v4095 = vunpack.c.l.b16 %v3568
        %v4096 = vunpack.c.l.b16 %v3569
        %v4097 = vunpack.c.h.b16 %v3569
        %v4098 = vunpack.c.l.b16 %v3570
        %v4099 = vunpack.c.h.b16 %v3570
        %v4100 = vunpack.c.l.b16 %v3571
        %v4101 = vunpack.c.h.b16 %v3571
        %v4102 = vunpack.c.l.b16 %v3572
        %v4103 = vunpack.c.h.b16 %v3572
        %v4104 = vunpack.c.l.b16 %v3573
        %v4105 = vunpack.c.l.b16 %v3574
        %v4106 = vunpack.c.h.b16 %v3574
        %v4107 = vunpack.c.l.b16 %v3575
        %v4108 = vunpack.c.h.b16 %v3575
        %v4109 = vunpack.c.l.b16 %v3576
        %v4110 = vunpack.c.h.b16 %v3576
        %v4111 = vunpack.c.l.b16 %v3577
        %v4112 = vunpack.c.h.b16 %v3577
        %v4113 = vunpack.c.l.b16 %v3578
        %v4114 = vunpack.c.l.b16 %v3579
        %v4115 = vunpack.c.h.b16 %v3579
        %v4116 = vunpack.c.l.b16 %v3580
        %v4117 = vunpack.c.h.b16 %v3580
        %v4118 = vunpack.c.l.b16 %v3581
        %v4119 = vunpack.c.h.b16 %v3581
        %v4120 = vunpack.c.l.b16 %v3582
        %v4121 = vunpack.c.h.b16 %v3582
        %v4122 = vunpack.c.l.b16 %v3583
        %v4123 = vunpack.c.l.b16 %v3584
        %v4124 = vunpack.c.h.b16 %v3584
        %v4125 = vunpack.c.l.b16 %v3585
        %v4126 = vunpack.c.h.b16 %v3585
        %v4127 = vunpack.c.l.b16 %v3586
        %v4128 = vunpack.c.h.b16 %v3586
        %v4129 = vunpack.c.l.b16 %v3587
        %v4130 = vunpack.c.h.b16 %v3587
        %v4131 = vunpack.c.l.b16 %v3588
        %v4132 = vunpack.c.l.b16 %v3589
        %v4133 = vunpack.c.h.b16 %v3589
        %v4134 = vunpack.c.l.b16 %v3590
        %v4135 = vunpack.c.h.b16 %v3590
        %v4136 = vunpack.c.l.b16 %v3591
        %v4137 = vunpack.c.h.b16 %v3591
        %v4138 = vunpack.c.l.b16 %v3592
        %v4139 = vunpack.c.h.b16 %v3592
        %v4140 = vunpack.c.l.b16 %v3593
        %v4141 = vunpack.c.l.b16 %v3594
        %v4142 = vunpack.c.h.b16 %v3594
        %v4143 = vunpack.c.l.b16 %v3595
        %v4144 = vunpack.c.h.b16 %v3595
        %v4145 = vunpack.c.l.b16 %v3596
        %v4146 = vunpack.c.h.b16 %v3596
        %v4147 = vunpack.c.l.b16 %v3597
        %v4148 = vunpack.c.h.b16 %v3597
        %v4149 = vunpack.c.l.b16 %v3598
        %v4150 = vunpack.c.l.b16 %v3599
        %v4151 = vunpack.c.h.b16 %v3599
        %v4152 = vunpack.c.l.b16 %v3600
        %v4153 = vunpack.c.h.b16 %v3600
        %v4154 = vunpack.c.l.b16 %v3601
        %v4155 = vunpack.c.h.b16 %v3601
        %v4156 = vunpack.c.l.b16 %v3602
        %v4157 = vunpack.c.h.b16 %v3602
        %v4158 = vunpack.c.l.b16 %v3603
        %v4159 = vunpack.c.l.b16 %v3604
        %v4160 = vunpack.c.h.b16 %v3604
        %v4161 = vunpack.c.l.b16 %v3605
        %v4162 = vunpack.c.h.b16 %v3605
        %v4163 = vunpack.c.l.b16 %v3606
        %v4164 = vunpack.c.h.b16 %v3606
        %v4165 = vunpack.c.l.b16 %v3607
        %v4166 = vunpack.c.h.b16 %v3607
        %v4167 = vunpack.c.l.b16 %v3608
        %v4168 = vunpack.c.l.b16 %v3609
        %v4169 = vunpack.c.h.b16 %v3609
        %v4170 = vunpack.c.l.b16 %v3610
        %v4171 = vunpack.c.h.b16 %v3610
        %v4172 = vunpack.c.l.b16 %v3611
        %v4173 = vunpack.c.h.b16 %v3611
        %v4174 = vunpack.c.l.b16 %v3612
        %v4175 = vunpack.c.h.b16 %v3612
        %v4176 = vunpack.c.l.b16 %v3613
        %v4177 = vunpack.c.l.b16 %v3614
        %v4178 = vunpack.c.h.b16 %v3614
        %v4179 = vunpack.c.l.b16 %v3615
        %v4180 = vunpack.c.h.b16 %v3615
        %v4181 = vunpack.c.l.b16 %v3616
        %v4182 = vunpack.c.h.b16 %v3616
        %v4183 = vunpack.c.l.b16 %v3617
        %v4184 = vunpack.c.h.b16 %v3617
        %v4185 = vunpack.c.l.b16 %v3618
        %v4186 = vunpack.c.l.b16 %v3619
        %v4187 = vunpack.c.h.b16 %v3619
        %v4188 = vunpack.c.l.b16 %v3620
        %v4189 = vunpack.c.h.b16 %v3620
        %v4190 = vunpack.c.l.b16 %v3621
        %v4191 = vunpack.c.h.b16 %v3621
        %v4192 = vunpack.c.l.b16 %v3622
        %v4193 = vunpack.c.h.b16 %v3622
        %v4194 = vunpack.c.l.b16 %v3623
        %v4195 = vunpack.c.l.b16 %v3624
        %v4196 = vunpack.c.h.b16 %v3624
        %v4197 = vunpack.c.l.b16 %v3625
        %v4198 = vunpack.c.h.b16 %v3625
        %v4199 = vunpack.c.l.b16 %v3626
        %v4200 = vunpack.c.h.b16 %v3626
        %v4201 = vunpack.c.l.b16 %v3627
        %v4202 = vunpack.c.h.b16 %v3627
        %v4203 = vunpack.c.l.b16 %v3628
        %v4204 = vunpack.c.l.b16 %v3629
        %v4205 = vunpack.c.h.b16 %v3629
        %v4206 = vunpack.c.l.b16 %v3630
        %v4207 = vunpack.c.h.b16 %v3630
        %v4208 = vunpack.c.l.b16 %v3631
        %v4209 = vunpack.c.h.b16 %v3631
        %v4210 = vunpack.c.l.b16 %v3632
        %v4211 = vunpack.c.h.b16 %v3632
        %v4212 = vunpack.c.l.b16 %v3633
        %v4213 = vunpack.c.l.b16 %v3634
        %v4214 = vunpack.c.h.b16 %v3634
        %v4215 = vunpack.c.l.b16 %v3635
        %v4216 = vunpack.c.h.b16 %v3635
        %v4217 = vunpack.c.l.b16 %v3636
        %v4218 = vunpack.c.h.b16 %v3636
        %v4219 = vunpack.c.l.b16 %v3637
        %v4220 = vunpack.c.h.b16 %v3637
        %v4221 = vunpack.c.l.b16 %v3638
        %v4222 = vunpack.c.l.b16 %v3639
        %v4223 = vunpack.c.h.b16 %v3639
        %v4224 = vunpack.c.l.b16 %v3640
        %v4225 = vunpack.c.h.b16 %v3640
        %v4226 = vunpack.c.l.b16 %v3641
        %v4227 = vunpack.c.h.b16 %v3641
        %v4228 = vunpack.c.l.b16 %v3642
        %v4229 = vunpack.c.h.b16 %v3642
        %v4230 = vunpack.c.l.b16 %v3643
        %v4231 = vunpack.c.l.b16 %v3644
        %v4232 = vunpack.c.h.b16 %v3644
        %v4233 = vunpack.c.l.b16 %v3645
        %v4234 = vunpack.c.h.b16 %v3645
        %v4235 = vunpack.c.l.b16 %v3646
        %v4236 = vunpack.c.h.b16 %v3646
        %v4237 = vunpack.c.l.b16 %v3647
        %v4238 = vunpack.c.h.b16 %v3647
        %v4239 = vunpack.c.l.b16 %v3648
        %v4240 = vunpack.c.l.b16 %v3649
        %v4241 = vunpack.c.h.b16 %v3649
        %v4242 = vunpack.c.l.b16 %v3650
        %v4243 = vunpack.c.h.b16 %v3650
        %v4244 = vunpack.c.l.b16 %v3651
        %v4245 = vunpack.c.h.b16 %v3651
        %v4246 = vunpack.c.l.b16 %v3652
        %v4247 = vunpack.c.h.b16 %v3652
        %v4248 = vunpack.c.l.b16 %v3653
        %v4249 = vunpack.c.l.b16 %v3654
        %v4250 = vunpack.c.h.b16 %v3654
        %v4251 = vunpack.c.l.b16 %v3655
        %v4252 = vunpack.c.h.b16 %v3655
        %v4253 = vunpack.c.l.b16 %v3656
        %v4254 = vunpack.c.h.b16 %v3656
        %v4255 = vunpack.c.l.b16 %v3657
        %v4256 = vunpack.c.h.b16 %v3657
        %v4257 = vunpack.c.l.b16 %v3658
        %v4258 = vpack.c.b16 %v3979, %v3970
        %v4259 = vpack.c.b16 %v3980, %v3971
        %v4260 = vpack.c.b16 %v3981, %v3972
        %v4261 = vpack.c.b16 %v3982, %v3973
        %v4262 = vpack.c.b16 %v3983, %v3974
        %v4263 = vpack.c.b16 %v3984, %v3975
        %v4264 = vpack.c.b16 %v3985, %v3976
        %v4265 = vpack.c.b16 %v3986, %v3977
        %v4266 = vpack.c.b16 %v3987, %v3978
        %v4267 = vpack.c.b16 %v3997, %v3988
        %v4268 = vpack.c.b16 %v3998, %v3989
        %v4269 = vpack.c.b16 %v3999, %v3990
        %v4270 = vpack.c.b16 %v4000, %v3991
        %v4271 = vpack.c.b16 %v4001, %v3992
        %v4272 = vpack.c.b16 %v4002, %v3993
        %v4273 = vpack.c.b16 %v4003, %v3994
        %v4274 = vpack.c.b16 %v4004, %v3995
        %v4275 = vpack.c.b16 %v4005, %v3996
        %v4276 = vpack.c.b16 %v4015, %v4006
        %v4277 = vpack.c.b16 %v4016, %v4007
        %v4278 = vpack.c.b16 %v4017, %v4008
        %v4279 = vpack.c.b16 %v4018, %v4009
        %v4280 = vpack.c.b16 %v4019, %v4010
        %v4281 = vpack.c.b16 %v4020, %v4011
        %v4282 = vpack.c.b16 %v4021, %v4012
        %v4283 = vpack.c.b16 %v4022, %v4013
        %v4284 = vpack.c.b16 %v4023, %v4014
        %v4285 = vpack.c.b16 %v4033, %v4024
        %v4286 = vpack.c.b16 %v4034, %v4025
        %v4287 = vpack.c.b16 %v4035, %v4026
        %v4288 = vpack.c.b16 %v4036, %v4027
        %v4289 = vpack.c.b16 %v4037, %v4028
        %v4290 = vpack.c.b16 %v4038, %v4029
        %v4291 = vpack.c.b16 %v4039, %v4030
        %v4292 = vpack.c.b16 %v4040, %v4031
        %v4293 = vpack.c.b16 %v4041, %v4032
        %v4294 = vpack.c.b16 %v4051, %v4042
        %v4295 = vpack.c.b16 %v4052, %v4043
        %v4296 = vpack.c.b16 %v4053, %v4044
        %v4297 = vpack.c.b16 %v4054, %v4045
        %v4298 = vpack.c.b16 %v4055, %v4046
        %v4299 = vpack.c.b16 %v4056, %v4047
        %v4300 = vpack.c.b16 %v4057, %v4048
        %v4301 = vpack.c.b16 %v4058, %v4049
        %v4302 = vpack.c.b16 %v4059, %v4050
        %v4303 = vpack.c.b16 %v4069, %v4060
        %v4304 = vpack.c.b16 %v4070, %v4061
        %v4305 = vpack.c.b16 %v4071, %v4062
        %v4306 = vpack.c.b16 %v4072, %v4063
        %v4307 = vpack.c.b16 %v4073, %v4064
        %v4308 = vpack.c.b16 %v4074, %v4065
        %v4309 = vpack.c.b16 %v4075, %v4066
        %v4310 = vpack.c.b16 %v4076, %v4067
        %v4311 = vpack.c.b16 %v4077, %v4068
        %v4312 = vpack.c.b16 %v4087, %v4078
        %v4313 = vpack.c.b16 %v4088, %v4079
        %v4314 = vpack.c.b16 %v4089, %v4080
        %v4315 = vpack.c.b16 %v4090, %v4081
        %v4316 = vpack.c.b16 %v4091, %v4082
        %v4317 = vpack.c.b16 %v4092, %v4083
        %v4318 = vpack.c.b16 %v4093, %v4084
        %v4319 = vpack.c.b16 %v4094, %v4085
        %v4320 = vpack.c.b16 %v4095, %v4086
        %v4321 = vpack.c.b16 %v4105, %v4096
        %v4322 = vpack.c.b16 %v4106, %v4097
        %v4323 = vpack.c.b16 %v4107, %v4098
        %v4324 = vpack.c.b16 %v4108, %v4099
        %v4325 = vpack.c.b16 %v4109, %v4100
        %v4326 = vpack.c.b16 %v4110, %v4101
        %v4327 = vpack.c.b16 %v4111, %v4102
        %v4328 = vpack.c.b16 %v4112, %v4103
        %v4329 = vpack.c.b16 %v4113, %v4104
        %v4330 = vpack.c.b16 %v4123, %v4114
        %v4331 = vpack.c.b16 %v4124, %v4115
        %v4332 = vpack.c.b16 %v4125, %v4116
        %v4333 = vpack.c.b16 %v4126, %v4117
        %v4334 = vpack.c.b16 %v4127, %v4118
        %v4335 = vpack.c.b16 %v4128, %v4119
        %v4336 = vpack.c.b16 %v4129, %v4120
        %v4337 = vpack.c.b16 %v4130, %v4121
        %v4338 = vpack.c.b16 %v4131, %v4122
        %v4339 = vpack.c.b16 %v4141, %v4132
        %v4340 = vpack.c.b16 %v4142, %v4133
        %v4341 = vpack.c.b16 %v4143, %v4134
        %v4342 = vpack.c.b16 %v4144, %v4135
        %v4343 = vpack.c.b16 %v4145, %v4136
        %v4344 = vpack.c.b16 %v4146, %v4137
        %v4345 = vpack.c.b16 %v4147, %v4138
        %v4346 = vpack.c.b16 %v4148, %v4139
        %v4347 = vpack.c.b16 %v4149, %v4140
        %v4348 = vpack.c.b16 %v4159, %v4150
        %v4349 = vpack.c.b16 %v4160, %v4151
        %v4350 = vpack.c.b16 %v4161, %v4152
        %v4351 = vpack.c.b16 %v4162, %v4153
        %v4352 = vpack.c.b16 %v4163, %v4154
        %v4353 = vpack.c.b16 %v4164, %v4155
        %v4354 = vpack.c.b16 %v4165, %v4156
        %v4355 = vpack.c.b16 %v4166, %v4157
        %v4356 = vpack.c.b16 %v4167, %v4158
        %v4357 = vpack.c.b16 %v4177, %v4168
        %v4358 = vpack.c.b16 %v4178, %v4169
        %v4359 = vpack.c.b16 %v4179, %v4170
        %v4360 = vpack.c.b16 %v4180, %v4171
        %v4361 = vpack.c.b16 %v4181, %v4172
        %v4362 = vpack.c.b16 %v4182, %v4173
        %v4363 = vpack.c.b16 %v4183, %v4174
        %v4364 = vpack.c.b16 %v4184, %v4175
        %v4365 = vpack.c.b16 %v4185, %v4176
        %v4366 = vpack.c.b16 %v4195, %v4186
        %v4367 = vpack.c.b16 %v4196, %v4187
        %v4368 = vpack.c.b16 %v4197, %v4188
        %v4369 = vpack.c.b16 %v4198, %v4189
        %v4370 = vpack.c.b16 %v4199, %v4190
        %v4371 = vpack.c.b16 %v4200, %v4191
        %v4372 = vpack.c.b16 %v4201, %v4192
        %v4373 = vpack.c.b16 %v4202, %v4193
        %v4374 = vpack.c.b16 %v4203, %v4194
        %v4375 = vpack.c.b16 %v4213, %v4204
        %v4376 = vpack.c.b16 %v4214, %v4205
        %v4377 = vpack.c.b16 %v4215, %v4206
        %v4378 = vpack.c.b16 %v4216, %v4207
        %v4379 = vpack.c.b16 %v4217, %v4208
        %v4380 = vpack.c.b16 %v4218, %v4209
        %v4381 = vpack.c.b16 %v4219, %v4210
        %v4382 = vpack.c.b16 %v4220, %v4211
        %v4383 = vpack.c.b16 %v4221, %v4212
        %v4384 = vpack.c.b16 %v4231, %v4222
        %v4385 = vpack.c.b16 %v4232, %v4223
        %v4386 = vpack.c.b16 %v4233, %v4224
        %v4387 = vpack.c.b16 %v4234, %v4225
        %v4388 = vpack.c.b16 %v4235, %v4226
        %v4389 = vpack.c.b16 %v4236, %v4227
        %v4390 = vpack.c.b16 %v4237, %v4228
        %v4391 = vpack.c.b16 %v4238, %v4229
        %v4392 = vpack.c.b16 %v4239, %v4230
        %v4393 = vpack.c.b16 %v4249, %v4240
        %v4394 = vpack.c.b16 %v4250, %v4241
        %v4395 = vpack.c.b16 %v4251, %v4242
        %v4396 = vpack.c.b16 %v4252, %v4243
        %v4397 = vpack.c.b16 %v4253, %v4244
        %v4398 = vpack.c.b16 %v4254, %v4245
        %v4399 = vpack.c.b16 %v4255, %v4246
        %v4400 = vpack.c.b16 %v4256, %v4247
        %v4401 = vpack.c.b16 %v4257, %v4248
        %v4690 = vunpack.c.l.b16 %v3659
        %v4691 = vunpack.c.l.b16 %v3660
        %v4692 = vunpack.c.l.b16 %v3661
        %v4693 = vunpack.c.l.b16 %v3662
        %v4694 = vunpack.c.l.b16 %v3663
        %v4695 = vunpack.c.l.b16 %v3664
        %v4696 = vunpack.c.l.b16 %v3665
        %v4697 = vunpack.c.l.b16 %v3666
        %v4698 = vunpack.c.l.b16 %v3667
        %v4699 = vunpack.c.l.b16 %v3668
        %v4700 = vunpack.c.l.b16 %v3669
        %v4701 = vunpack.c.l.b16 %v3670
        %v4702 = vunpack.c.l.b16 %v3671
        %v4703 = vunpack.c.l.b16 %v3672
        %v4704 = vunpack.c.l.b16 %v3673
        %v4705 = vunpack.c.l.b16 %v3674
        %v4706 = vunpack.c.l.b16 %v3675
        %v4707 = vunpack.c.l.b16 %v3676
        %v4708 = vunpack.c.l.b16 %v3677
        %v4709 = vunpack.c.l.b16 %v3678
        %v4710 = vunpack.c.l.b16 %v3679
        %v4711 = vunpack.c.l.b16 %v3680
        %v4712 = vunpack.c.l.b16 %v3681
        %v4713 = vunpack.c.l.b16 %v3682
        %v4714 = vunpack.c.l.b16 %v3683
        %v4715 = vunpack.c.l.b16 %v3684
        %v4716 = vunpack.c.l.b16 %v3685
        %v4717 = vunpack.c.l.b16 %v3686
        %v4718 = vunpack.c.l.b16 %v3687
        %v4719 = vunpack.c.l.b16 %v3688
        %v4720 = vunpack.c.l.b16 %v3689
        %v4721 = vunpack.c.l.b16 %v3690
        %v4722 = vunpack.c.l.b16 %v3691
        %v4723 = vunpack.c.l.b16 %v3692
        %v4724 = vunpack.c.l.b16 %v3693
        %v4725 = vunpack.c.l.b16 %v3694
        %v4726 = vunpack.c.l.b16 %v3695
        %v4727 = vunpack.c.l.b16 %v3696
        %v4728 = vunpack.c.l.b16 %v3697
        %v4729 = vunpack.c.l.b16 %v3698
        %v4730 = vunpack.c.l.b16 %v3699
        %v4731 = vunpack.c.l.b16 %v3700
        %v4732 = vunpack.c.l.b16 %v3701
        %v4733 = vunpack.c.l.b16 %v3702
        %v4734 = vunpack.c.l.b16 %v3703
        %v4735 = vunpack.c.l.b16 %v3704
        %v4736 = vunpack.c.l.b16 %v3705
        %v4737 = vunpack.c.l.b16 %v3706
        %v4738 = vunpack.c.l.b16 %v3707
        %v4739 = vunpack.c.l.b16 %v3708
        %v4740 = vunpack.c.l.b16 %v3709
        %v4741 = vunpack.c.l.b16 %v3710
        %v4742 = vunpack.c.l.b16 %v3711
        %v4743 = vunpack.c.l.b16 %v3712
        %v4744 = vunpack.c.l.b16 %v3713
        %v4745 = vunpack.c.l.b16 %v3714
        %v4746 = vunpack.c.l.b16 %v3715
        %v4747 = vunpack.c.l.b16 %v3716
        %v4748 = vunpack.c.l.b16 %v3717
        %v4749 = vunpack.c.l.b16 %v3718
        %v4750 = vunpack.c.l.b16 %v3719
        %v4751 = vunpack.c.l.b16 %v3720
        %v4752 = vunpack.c.l.b16 %v3721
        %v4753 = vunpack.c.l.b16 %v3722
        %v4754 = vunpack.c.l.b16 %v3723
        %v4755 = vunpack.c.l.b16 %v3724
        %v4756 = vunpack.c.l.b16 %v3725
        %v4757 = vunpack.c.l.b16 %v3726
        %v4758 = vunpack.c.l.b16 %v3727
        %v4759 = vunpack.c.l.b16 %v3728
        %v4760 = vunpack.c.l.b16 %v3729
        %v4761 = vunpack.c.l.b16 %v3730
        %v4762 = vunpack.c.l.b16 %v3731
        %v4763 = vunpack.c.l.b16 %v3732
        %v4764 = vunpack.c.l.b16 %v3733
        %v4765 = vunpack.c.l.b16 %v3734
        %v4766 = vunpack.c.l.b16 %v3735
        %v4767 = vunpack.c.l.b16 %v3736
        %v4768 = vunpack.c.l.b16 %v3737
        %v4769 = vunpack.c.l.b16 %v3738
        %v4770 = vunpack.c.l.b16 %v3739
        %v4771 = vunpack.c.l.b16 %v3740
        %v4772 = vunpack.c.l.b16 %v3741
        %v4773 = vunpack.c.l.b16 %v3742
        %v4774 = vunpack.c.l.b16 %v3743
        %v4775 = vunpack.c.l.b16 %v3744
        %v4776 = vunpack.c.l.b16 %v3745
        %v4777 = vunpack.c.l.b16 %v3746
        %v4778 = vunpack.c.l.b16 %v3747
        %v4779 = vunpack.c.l.b16 %v3748
        %v4780 = vunpack.c.l.b16 %v3749
        %v4781 = vunpack.c.l.b16 %v3750
        %v4782 = vunpack.c.l.b16 %v3751
        %v4783 = vunpack.c.l.b16 %v3752
        %v4784 = vunpack.c.l.b16 %v3753
        %v4785 = vunpack.c.l.b16 %v3754
        %v4786 = vunpack.c.l.b16 %v3755
        %v4787 = vunpack.c.l.b16 %v3756
        %v4788 = vunpack.c.l.b16 %v3757
        %v4789 = vunpack.c.l.b16 %v3758
        %v4790 = vunpack.c.l.b16 %v3759
        %v4791 = vunpack.c.l.b16 %v3760
        %v4792 = vunpack.c.l.b16 %v3761
        %v4793 = vunpack.c.l.b16 %v3762
        %v4794 = vunpack.c.l.b16 %v3763
        %v4795 = vunpack.c.l.b16 %v3764
        %v4796 = vunpack.c.l.b16 %v3765
        %v4797 = vunpack.c.l.b16 %v3766
        %v4798 = vunpack.c.l.b16 %v3767
        %v4799 = vunpack.c.l.b16 %v3768
        %v4800 = vunpack.c.l.b16 %v3769
        %v4801 = vunpack.c.l.b16 %v3770
        %v4802 = vunpack.c.l.b16 %v3771
        %v4803 = vunpack.c.l.b16 %v3772
        %v4804 = vunpack.c.l.b16 %v3773
        %v4805 = vunpack.c.l.b16 %v3774
        %v4806 = vunpack.c.l.b16 %v3775
        %v4807 = vunpack.c.l.b16 %v3776
        %v4808 = vunpack.c.l.b16 %v3777
        %v4809 = vunpack.c.l.b16 %v3778
        %v4810 = vunpack.c.l.b16 %v3779
        %v4811 = vunpack.c.l.b16 %v3780
        %v4812 = vunpack.c.l.b16 %v3781
        %v4813 = vunpack.c.l.b16 %v3782
        %v4814 = vunpack.c.l.b16 %v3783
        %v4815 = vunpack.c.l.b16 %v3784
        %v4816 = vunpack.c.l.b16 %v3785
        %v4817 = vunpack.c.l.b16 %v3786
        %v4818 = vunpack.c.l.b16 %v3787
        %v4819 = vunpack.c.l.b16 %v3788
        %v4820 = vunpack.c.l.b16 %v3789
        %v4821 = vunpack.c.l.b16 %v3790
        %v4822 = vunpack.c.l.b16 %v3791
        %v4823 = vunpack.c.l.b16 %v3792
        %v4824 = vunpack.c.l.b16 %v3793
        %v4825 = vunpack.c.l.b16 %v3794
        %v4826 = vunpack.c.l.b16 %v3795
        %v4827 = vunpack.c.l.b16 %v3796
        %v4828 = vunpack.c.l.b16 %v3797
        %v4829 = vunpack.c.l.b16 %v3798
        %v4830 = vunpack.c.l.b16 %v3799
        %v4831 = vunpack.c.l.b16 %v3800
        %v4832 = vunpack.c.l.b16 %v3801
        %v4833 = vunpack.c.l.b16 %v3802
        %v4834 = vpack.c.b16 %v4691, %v4690
        %v4835 = vpack.c.b16 %v4693, %v4692
        %v4836 = vpack.c.b16 %v4695, %v4694
        %v4837 = vpack.c.b16 %v4697, %v4696
        %v4838 = vpack.c.b16 %v4699, %v4698
        %v4839 = vpack.c.b16 %v4701, %v4700
        %v4840 = vpack.c.b16 %v4703, %v4702
        %v4841 = vpack.c.b16 %v4705, %v4704
        %v4842 = vpack.c.b16 %v4707, %v4706
        %v4843 = vpack.c.b16 %v4709, %v4708
        %v4844 = vpack.c.b16 %v4711, %v4710
        %v4845 = vpack.c.b16 %v4713, %v4712
        %v4846 = vpack.c.b16 %v4715, %v4714
        %v4847 = vpack.c.b16 %v4717, %v4716
        %v4848 = vpack.c.b16 %v4719, %v4718
        %v4849 = vpack.c.b16 %v4721, %v4720
        %v4850 = vpack.c.b16 %v4723, %v4722
        %v4851 = vpack.c.b16 %v4725, %v4724
        %v4852 = vpack.c.b16 %v4727, %v4726
        %v4853 = vpack.c.b16 %v4729, %v4728
        %v4854 = vpack.c.b16 %v4731, %v4730
        %v4855 = vpack.c.b16 %v4733, %v4732
        %v4856 = vpack.c.b16 %v4735, %v4734
        %v4857 = vpack.c.b16 %v4737, %v4736
        %v4858 = vpack.c.b16 %v4739, %v4738
        %v4859 = vpack.c.b16 %v4741, %v4740
        %v4860 = vpack.c.b16 %v4743, %v4742
        %v4861 = vpack.c.b16 %v4745, %v4744
        %v4862 = vpack.c.b16 %v4747, %v4746
        %v4863 = vpack.c.b16 %v4749, %v4748
        %v4864 = vpack.c.b16 %v4751, %v4750
        %v4865 = vpack.c.b16 %v4753, %v4752
        %v4866 = vpack.c.b16 %v4755, %v4754
        %v4867 = vpack.c.b16 %v4757, %v4756
        %v4868 = vpack.c.b16 %v4759, %v4758
        %v4869 = vpack.c.b16 %v4761, %v4760
        %v4870 = vpack.c.b16 %v4763, %v4762
        %v4871 = vpack.c.b16 %v4765, %v4764
        %v4872 = vpack.c.b16 %v4767, %v4766
        %v4873 = vpack.c.b16 %v4769, %v4768
        %v4874 = vpack.c.b16 %v4771, %v4770
        %v4875 = vpack.c.b16 %v4773, %v4772
        %v4876 = vpack.c.b16 %v4775, %v4774
        %v4877 = vpack.c.b16 %v4777, %v4776
        %v4878 = vpack.c.b16 %v4779, %v4778
        %v4879 = vpack.c.b16 %v4781, %v4780
        %v4880 = vpack.c.b16 %v4783, %v4782
        %v4881 = vpack.c.b16 %v4785, %v4784
        %v4882 = vpack.c.b16 %v4787, %v4786
        %v4883 = vpack.c.b16 %v4789, %v4788
        %v4884 = vpack.c.b16 %v4791, %v4790
        %v4885 = vpack.c.b16 %v4793, %v4792
        %v4886 = vpack.c.b16 %v4795, %v4794
        %v4887 = vpack.c.b16 %v4797, %v4796
        %v4888 = vpack.c.b16 %v4799, %v4798
        %v4889 = vpack.c.b16 %v4801, %v4800
        %v4890 = vpack.c.b16 %v4803, %v4802
        %v4891 = vpack.c.b16 %v4805, %v4804
        %v4892 = vpack.c.b16 %v4807, %v4806
        %v4893 = vpack.c.b16 %v4809, %v4808
        %v4894 = vpack.c.b16 %v4811, %v4810
        %v4895 = vpack.c.b16 %v4813, %v4812
        %v4896 = vpack.c.b16 %v4815, %v4814
        %v4897 = vpack.c.b16 %v4817, %v4816
        %v4898 = vpack.c.b16 %v4819, %v4818
        %v4899 = vpack.c.b16 %v4821, %v4820
        %v4900 = vpack.c.b16 %v4823, %v4822
        %v4901 = vpack.c.b16 %v4825, %v4824
        %v4902 = vpack.c.b16 %v4827, %v4826
        %v4903 = vpack.c.b16 %v4829, %v4828
        %v4904 = vpack.c.b16 %v4831, %v4830
        %v4905 = vpack.c.b16 %v4833, %v4832
        %4978 = vmatprep.subr.bf16.mxu0 0
        %4979 = vmatpush1.bf16.msra.mxu0 %v4841
        %4980 = vmatprep.subr.bf16.mxu0 0
        %4981 = vmatpush1.bf16.msra.mxu0 %v4840
        %4982 = vmatprep.subr.bf16.mxu0 0
        %4983 = vmatpush1.bf16.msra.mxu0 %v4839
        %4984 = vmatprep.subr.bf16.mxu0 0
        %4985 = vmatpush1.bf16.msra.mxu0 %v4838
        %4986 = vmatprep.subr.bf16.mxu0 0
        %4987 = vmatpush1.bf16.msra.mxu0 %v4837
        %4988 = vmatprep.subr.bf16.mxu0 0
        %4989 = vmatpush1.bf16.msra.mxu0 %v4836
        %4990 = vmatprep.subr.bf16.mxu0 0
        %4991 = vmatpush1.bf16.msra.mxu0 %v4835
        %4992 = vmatprep.subr.bf16.mxu0 0
        %4993 = vmatpush1.bf16.msra.mxu0 %v4834
        %4994 = vmatprep.subr.bf16.mxu0 0
        %4995 = vmatpush2.bf16.msra.mxu0 %v4849
        %4996 = vmatprep.subr.bf16.mxu0 0
        %4997 = vmatpush2.bf16.msra.mxu0 %v4848
        %4998 = vmatprep.subr.bf16.mxu0 0
        %4999 = vmatpush2.bf16.msra.mxu0 %v4847
        %5000 = vmatprep.subr.bf16.mxu0 0
        %5001 = vmatpush2.bf16.msra.mxu0 %v4846
        %5002 = vmatprep.subr.bf16.mxu0 0
        %5003 = vmatpush2.bf16.msra.mxu0 %v4845
        %5004 = vmatprep.subr.bf16.mxu0 0
        %5005 = vmatpush2.bf16.msra.mxu0 %v4844
        %5006 = vmatprep.subr.bf16.mxu0 0
        %5007 = vmatpush2.bf16.msra.mxu0 %v4843
        %5008 = vmatprep.subr.bf16.mxu0 0
        %5009 = vmatpush2.bf16.msra.mxu0 %v4842
        %5010 = vmatprep.mubr.bf16.mxu0 %v4259
        %5011 = vmatmul.mubr.bf16.gmra.mxu0 %v4258
        %v5012 = vpop.f32.mrf.mxu0
        %v5013 = vadd.f32 %v3808, %v5012
        %v5014 = vpop.f32.mrf.mxu0
        %v5015 = vpop.f32.mrf.mxu0
        %v5016 = vadd.f32 %v3808, %v5015
        %v5017 = vpop.f32.mrf.mxu0
        %5018 = vmatprep.mubr.bf16.mxu0 %v4268
        %5019 = vmatmul.mubr.bf16.gmra.mxu0 %v4267
        %v5020 = vpop.f32.mrf.mxu0
        %v5021 = vadd.f32 %v3808, %v5020
        %v5022 = vpop.f32.mrf.mxu0
        %v5023 = vpop.f32.mrf.mxu0
        %v5024 = vadd.f32 %v3808, %v5023
        %v5025 = vpop.f32.mrf.mxu0
        %5026 = vmatprep.mubr.bf16.mxu0 %v4277
        %5027 = vmatmul.mubr.bf16.gmra.mxu0 %v4276
        %v5028 = vpop.f32.mrf.mxu0
        %v5029 = vadd.f32 %v3808, %v5028
        %v5030 = vpop.f32.mrf.mxu0
        %v5031 = vpop.f32.mrf.mxu0
        %v5032 = vadd.f32 %v3808, %v5031
        %v5033 = vpop.f32.mrf.mxu0
        %5034 = vmatprep.mubr.bf16.mxu0 %v4286
        %5035 = vmatmul.mubr.bf16.gmra.mxu0 %v4285
        %v5036 = vpop.f32.mrf.mxu0
        %v5037 = vadd.f32 %v3808, %v5036
        %v5038 = vpop.f32.mrf.mxu0
        %v5039 = vpop.f32.mrf.mxu0
        %v5040 = vadd.f32 %v3808, %v5039
        %v5041 = vpop.f32.mrf.mxu0
        %5042 = vmatprep.mubr.bf16.mxu0 %v4295
        %5043 = vmatmul.mubr.bf16.gmra.mxu0 %v4294
        %v5044 = vpop.f32.mrf.mxu0
        %v5045 = vadd.f32 %v3808, %v5044
        %v5046 = vpop.f32.mrf.mxu0
        %v5047 = vpop.f32.mrf.mxu0
        %v5048 = vadd.f32 %v3808, %v5047
        %v5049 = vpop.f32.mrf.mxu0
        %5050 = vmatprep.mubr.bf16.mxu0 %v4304
        %5051 = vmatmul.mubr.bf16.gmra.mxu0 %v4303
        %v5052 = vpop.f32.mrf.mxu0
        %v5053 = vadd.f32 %v3808, %v5052
        %v5054 = vpop.f32.mrf.mxu0
        %v5055 = vpop.f32.mrf.mxu0
        %v5056 = vadd.f32 %v3808, %v5055
        %v5057 = vpop.f32.mrf.mxu0
        %5058 = vmatprep.mubr.bf16.mxu0 %v4313
        %5059 = vmatmul.mubr.bf16.gmra.mxu0 %v4312
        %v5060 = vpop.f32.mrf.mxu0
        %v5061 = vadd.f32 %v3808, %v5060
        %v5062 = vpop.f32.mrf.mxu0
        %v5063 = vpop.f32.mrf.mxu0
        %v5064 = vadd.f32 %v3808, %v5063
        %v5065 = vpop.f32.mrf.mxu0
        %5066 = vmatprep.mubr.bf16.mxu0 %v4322
        %5067 = vmatmul.mubr.bf16.gmra.mxu0 %v4321
        %v5068 = vpop.f32.mrf.mxu0
        %v5069 = vadd.f32 %v3808, %v5068
        %v5070 = vpop.f32.mrf.mxu0
        %v5071 = vpop.f32.mrf.mxu0
        %v5072 = vadd.f32 %v3808, %v5071
        %v5073 = vpop.f32.mrf.mxu0
        %5074 = vmatprep.mubr.bf16.mxu0 %v4331
        %5075 = vmatmul.mubr.bf16.gmra.mxu0 %v4330
        %v5076 = vpop.f32.mrf.mxu0
        %v5077 = vadd.f32 %v3808, %v5076
        %v5078 = vpop.f32.mrf.mxu0
        %v5079 = vpop.f32.mrf.mxu0
        %v5080 = vadd.f32 %v3808, %v5079
        %v5081 = vpop.f32.mrf.mxu0
        %5082 = vmatprep.mubr.bf16.mxu0 %v4340
        %5083 = vmatmul.mubr.bf16.gmra.mxu0 %v4339
        %v5084 = vpop.f32.mrf.mxu0
        %v5085 = vadd.f32 %v3808, %v5084
        %v5086 = vpop.f32.mrf.mxu0
        %v5087 = vpop.f32.mrf.mxu0
        %v5088 = vadd.f32 %v3808, %v5087
        %v5089 = vpop.f32.mrf.mxu0
        %5090 = vmatprep.mubr.bf16.mxu0 %v4349
        %5091 = vmatmul.mubr.bf16.gmra.mxu0 %v4348
        %v5092 = vpop.f32.mrf.mxu0
        %v5093 = vadd.f32 %v3808, %v5092
        %v5094 = vpop.f32.mrf.mxu0
        %v5095 = vpop.f32.mrf.mxu0
        %v5096 = vadd.f32 %v3808, %v5095
        %v5097 = vpop.f32.mrf.mxu0
        %5098 = vmatprep.mubr.bf16.mxu0 %v4358
        %5099 = vmatmul.mubr.bf16.gmra.mxu0 %v4357
        %v5100 = vpop.f32.mrf.mxu0
        %v5101 = vadd.f32 %v3808, %v5100
        %v5102 = vpop.f32.mrf.mxu0
        %v5103 = vpop.f32.mrf.mxu0
        %v5104 = vadd.f32 %v3808, %v5103
        %v5105 = vpop.f32.mrf.mxu0
        %5106 = vmatprep.mubr.bf16.mxu0 %v4367
        %5107 = vmatmul.mubr.bf16.gmra.mxu0 %v4366
        %v5108 = vpop.f32.mrf.mxu0
        %v5109 = vadd.f32 %v3808, %v5108
        %v5110 = vpop.f32.mrf.mxu0
        %v5111 = vpop.f32.mrf.mxu0
        %v5112 = vadd.f32 %v3808, %v5111
        %v5113 = vpop.f32.mrf.mxu0
        %5114 = vmatprep.mubr.bf16.mxu0 %v4376
        %5115 = vmatmul.mubr.bf16.gmra.mxu0 %v4375
        %v5116 = vpop.f32.mrf.mxu0
        %v5117 = vadd.f32 %v3808, %v5116
        %v5118 = vpop.f32.mrf.mxu0
        %v5119 = vpop.f32.mrf.mxu0
        %v5120 = vadd.f32 %v3808, %v5119
        %v5121 = vpop.f32.mrf.mxu0
        %5122 = vmatprep.mubr.bf16.mxu0 %v4385
        %5123 = vmatmul.mubr.bf16.gmra.mxu0 %v4384
        %v5124 = vpop.f32.mrf.mxu0
        %v5125 = vadd.f32 %v3808, %v5124
        %v5126 = vpop.f32.mrf.mxu0
        %v5127 = vpop.f32.mrf.mxu0
        %v5128 = vadd.f32 %v3808, %v5127
        %v5129 = vpop.f32.mrf.mxu0
        %5130 = vmatprep.mubr.bf16.mxu0 %v4394
        %5131 = vmatmul.mubr.bf16.gmra.mxu0 %v4393
        %v5132 = vpop.f32.mrf.mxu0
        %v5133 = vadd.f32 %v3808, %v5132
        %v5134 = vpop.f32.mrf.mxu0
        %v5135 = vpop.f32.mrf.mxu0
        %v5136 = vadd.f32 %v3808, %v5135
        %v5137 = vpop.f32.mrf.mxu0
        %5138 = vdwg.mxu0
        %5139 = vmatprep.subr.bf16.mxu0 0
        %5140 = vmatpush1.bf16.msra.mxu0 %v4857
        %5141 = vmatprep.subr.bf16.mxu0 0
        %5142 = vmatpush1.bf16.msra.mxu0 %v4856
        %5143 = vmatprep.subr.bf16.mxu0 0
        %5144 = vmatpush1.bf16.msra.mxu0 %v4855
        %5145 = vmatprep.subr.bf16.mxu0 0
        %5146 = vmatpush1.bf16.msra.mxu0 %v4854
        %5147 = vmatprep.subr.bf16.mxu0 0
        %5148 = vmatpush1.bf16.msra.mxu0 %v4853
        %5149 = vmatprep.subr.bf16.mxu0 0
        %5150 = vmatpush1.bf16.msra.mxu0 %v4852
        %5151 = vmatprep.subr.bf16.mxu0 0
        %5152 = vmatpush1.bf16.msra.mxu0 %v4851
        %5153 = vmatprep.subr.bf16.mxu0 0
        %5154 = vmatpush1.bf16.msra.mxu0 %v4850
        %5155 = vmatprep.subr.bf16.mxu0 0
        %5156 = vmatpush2.bf16.msra.mxu0 %v4865
        %5157 = vmatprep.subr.bf16.mxu0 0
        %5158 = vmatpush2.bf16.msra.mxu0 %v4864
        %5159 = vmatprep.subr.bf16.mxu0 0
        %5160 = vmatpush2.bf16.msra.mxu0 %v4863
        %5161 = vmatprep.subr.bf16.mxu0 0
        %5162 = vmatpush2.bf16.msra.mxu0 %v4862
        %5163 = vmatprep.subr.bf16.mxu0 0
        %5164 = vmatpush2.bf16.msra.mxu0 %v4861
        %5165 = vmatprep.subr.bf16.mxu0 0
        %5166 = vmatpush2.bf16.msra.mxu0 %v4860
        %5167 = vmatprep.subr.bf16.mxu0 0
        %5168 = vmatpush2.bf16.msra.mxu0 %v4859
        %5169 = vmatprep.subr.bf16.mxu0 0
        %5170 = vmatpush2.bf16.msra.mxu0 %v4858
        %5171 = vmatprep.mubr.bf16.mxu0 %v4261
        %5172 = vmatmul.mubr.bf16.gmra.mxu0 %v4260
        %v5173 = vpop.f32.mrf.mxu0
        %v5174 = vadd.f32 %v5013, %v5173
        %v5175 = vpop.f32.mrf.mxu0
        %v5176 = vpop.f32.mrf.mxu0
        %v5177 = vadd.f32 %v5016, %v5176
        %v5178 = vpop.f32.mrf.mxu0
        %5179 = vmatprep.mubr.bf16.mxu0 %v4270
        %5180 = vmatmul.mubr.bf16.gmra.mxu0 %v4269
        %v5181 = vpop.f32.mrf.mxu0
        %v5182 = vadd.f32 %v5021, %v5181
        %v5183 = vpop.f32.mrf.mxu0
        %v5184 = vpop.f32.mrf.mxu0
        %v5185 = vadd.f32 %v5024, %v5184
        %v5186 = vpop.f32.mrf.mxu0
        %5187 = vmatprep.mubr.bf16.mxu0 %v4279
        %5188 = vmatmul.mubr.bf16.gmra.mxu0 %v4278
        %v5189 = vpop.f32.mrf.mxu0
        %v5190 = vadd.f32 %v5029, %v5189
        %v5191 = vpop.f32.mrf.mxu0
        %v5192 = vpop.f32.mrf.mxu0
        %v5193 = vadd.f32 %v5032, %v5192
        %v5194 = vpop.f32.mrf.mxu0
        %5195 = vmatprep.mubr.bf16.mxu0 %v4288
        %5196 = vmatmul.mubr.bf16.gmra.mxu0 %v4287
        %v5197 = vpop.f32.mrf.mxu0
        %v5198 = vadd.f32 %v5037, %v5197
        %v5199 = vpop.f32.mrf.mxu0
        %v5200 = vpop.f32.mrf.mxu0
        %v5201 = vadd.f32 %v5040, %v5200
        %v5202 = vpop.f32.mrf.mxu0
        %5203 = vmatprep.mubr.bf16.mxu0 %v4297
        %5204 = vmatmul.mubr.bf16.gmra.mxu0 %v4296
        %v5205 = vpop.f32.mrf.mxu0
        %v5206 = vadd.f32 %v5045, %v5205
        %v5207 = vpop.f32.mrf.mxu0
        %v5208 = vpop.f32.mrf.mxu0
        %v5209 = vadd.f32 %v5048, %v5208
        %v5210 = vpop.f32.mrf.mxu0
        %5211 = vmatprep.mubr.bf16.mxu0 %v4306
        %5212 = vmatmul.mubr.bf16.gmra.mxu0 %v4305
        %v5213 = vpop.f32.mrf.mxu0
        %v5214 = vadd.f32 %v5053, %v5213
        %v5215 = vpop.f32.mrf.mxu0
        %v5216 = vpop.f32.mrf.mxu0
        %v5217 = vadd.f32 %v5056, %v5216
        %v5218 = vpop.f32.mrf.mxu0
        %5219 = vmatprep.mubr.bf16.mxu0 %v4315
        %5220 = vmatmul.mubr.bf16.gmra.mxu0 %v4314
        %v5221 = vpop.f32.mrf.mxu0
        %v5222 = vadd.f32 %v5061, %v5221
        %v5223 = vpop.f32.mrf.mxu0
        %v5224 = vpop.f32.mrf.mxu0
        %v5225 = vadd.f32 %v5064, %v5224
        %v5226 = vpop.f32.mrf.mxu0
        %5227 = vmatprep.mubr.bf16.mxu0 %v4324
        %5228 = vmatmul.mubr.bf16.gmra.mxu0 %v4323
        %v5229 = vpop.f32.mrf.mxu0
        %v5230 = vadd.f32 %v5069, %v5229
        %v5231 = vpop.f32.mrf.mxu0
        %v5232 = vpop.f32.mrf.mxu0
        %v5233 = vadd.f32 %v5072, %v5232
        %v5234 = vpop.f32.mrf.mxu0
        %5235 = vmatprep.mubr.bf16.mxu0 %v4333
        %5236 = vmatmul.mubr.bf16.gmra.mxu0 %v4332
        %v5237 = vpop.f32.mrf.mxu0
        %v5238 = vadd.f32 %v5077, %v5237
        %v5239 = vpop.f32.mrf.mxu0
        %v5240 = vpop.f32.mrf.mxu0
        %v5241 = vadd.f32 %v5080, %v5240
        %v5242 = vpop.f32.mrf.mxu0
        %5243 = vmatprep.mubr.bf16.mxu0 %v4342
        %5244 = vmatmul.mubr.bf16.gmra.mxu0 %v4341
        %v5245 = vpop.f32.mrf.mxu0
        %v5246 = vadd.f32 %v5085, %v5245
        %v5247 = vpop.f32.mrf.mxu0
        %v5248 = vpop.f32.mrf.mxu0
        %v5249 = vadd.f32 %v5088, %v5248
        %v5250 = vpop.f32.mrf.mxu0
        %5251 = vmatprep.mubr.bf16.mxu0 %v4351
        %5252 = vmatmul.mubr.bf16.gmra.mxu0 %v4350
        %v5253 = vpop.f32.mrf.mxu0
        %v5254 = vadd.f32 %v5093, %v5253
        %v5255 = vpop.f32.mrf.mxu0
        %v5256 = vpop.f32.mrf.mxu0
        %v5257 = vadd.f32 %v5096, %v5256
        %v5258 = vpop.f32.mrf.mxu0
        %5259 = vmatprep.mubr.bf16.mxu0 %v4360
        %5260 = vmatmul.mubr.bf16.gmra.mxu0 %v4359
        %v5261 = vpop.f32.mrf.mxu0
        %v5262 = vadd.f32 %v5101, %v5261
        %v5263 = vpop.f32.mrf.mxu0
        %v5264 = vpop.f32.mrf.mxu0
        %v5265 = vadd.f32 %v5104, %v5264
        %v5266 = vpop.f32.mrf.mxu0
        %5267 = vmatprep.mubr.bf16.mxu0 %v4369
        %5268 = vmatmul.mubr.bf16.gmra.mxu0 %v4368
        %v5269 = vpop.f32.mrf.mxu0
        %v5270 = vadd.f32 %v5109, %v5269
        %v5271 = vpop.f32.mrf.mxu0
        %v5272 = vpop.f32.mrf.mxu0
        %v5273 = vadd.f32 %v5112, %v5272
        %v5274 = vpop.f32.mrf.mxu0
        %5275 = vmatprep.mubr.bf16.mxu0 %v4378
        %5276 = vmatmul.mubr.bf16.gmra.mxu0 %v4377
        %v5277 = vpop.f32.mrf.mxu0
        %v5278 = vadd.f32 %v5117, %v5277
        %v5279 = vpop.f32.mrf.mxu0
        %v5280 = vpop.f32.mrf.mxu0
        %v5281 = vadd.f32 %v5120, %v5280
        %v5282 = vpop.f32.mrf.mxu0
        %5283 = vmatprep.mubr.bf16.mxu0 %v4387
        %5284 = vmatmul.mubr.bf16.gmra.mxu0 %v4386
        %v5285 = vpop.f32.mrf.mxu0
        %v5286 = vadd.f32 %v5125, %v5285
        %v5287 = vpop.f32.mrf.mxu0
        %v5288 = vpop.f32.mrf.mxu0
        %v5289 = vadd.f32 %v5128, %v5288
        %v5290 = vpop.f32.mrf.mxu0
        %5291 = vmatprep.mubr.bf16.mxu0 %v4396
        %5292 = vmatmul.mubr.bf16.gmra.mxu0 %v4395
        %v5293 = vpop.f32.mrf.mxu0
        %v5294 = vadd.f32 %v5133, %v5293
        %v5295 = vpop.f32.mrf.mxu0
        %v5296 = vpop.f32.mrf.mxu0
        %v5297 = vadd.f32 %v5136, %v5296
        %v5298 = vpop.f32.mrf.mxu0
        %5299 = vdwg.mxu0
        %5300 = vmatprep.subr.bf16.mxu0 0
        %5301 = vmatpush1.bf16.msra.mxu0 %v4873
        %5302 = vmatprep.subr.bf16.mxu0 0
        %5303 = vmatpush1.bf16.msra.mxu0 %v4872
        %5304 = vmatprep.subr.bf16.mxu0 0
        %5305 = vmatpush1.bf16.msra.mxu0 %v4871
        %5306 = vmatprep.subr.bf16.mxu0 0
        %5307 = vmatpush1.bf16.msra.mxu0 %v4870
        %5308 = vmatprep.subr.bf16.mxu0 0
        %5309 = vmatpush1.bf16.msra.mxu0 %v4869
        %5310 = vmatprep.subr.bf16.mxu0 0
        %5311 = vmatpush1.bf16.msra.mxu0 %v4868
        %5312 = vmatprep.subr.bf16.mxu0 0
        %5313 = vmatpush1.bf16.msra.mxu0 %v4867
        %5314 = vmatprep.subr.bf16.mxu0 0
        %5315 = vmatpush1.bf16.msra.mxu0 %v4866
        %5316 = vmatprep.subr.bf16.mxu0 0
        %5317 = vmatpush2.bf16.msra.mxu0 %v4881
        %5318 = vmatprep.subr.bf16.mxu0 0
        %5319 = vmatpush2.bf16.msra.mxu0 %v4880
        %5320 = vmatprep.subr.bf16.mxu0 0
        %5321 = vmatpush2.bf16.msra.mxu0 %v4879
        %5322 = vmatprep.subr.bf16.mxu0 0
        %5323 = vmatpush2.bf16.msra.mxu0 %v4878
        %5324 = vmatprep.subr.bf16.mxu0 0
        %5325 = vmatpush2.bf16.msra.mxu0 %v4877
        %5326 = vmatprep.subr.bf16.mxu0 0
        %5327 = vmatpush2.bf16.msra.mxu0 %v4876
        %5328 = vmatprep.subr.bf16.mxu0 0
        %5329 = vmatpush2.bf16.msra.mxu0 %v4875
        %5330 = vmatprep.subr.bf16.mxu0 0
        %5331 = vmatpush2.bf16.msra.mxu0 %v4874
        %5332 = vmatprep.mubr.bf16.mxu0 %v4263
        %5333 = vmatmul.mubr.bf16.gmra.mxu0 %v4262
        %v5334 = vpop.f32.mrf.mxu0
        %v5335 = vadd.f32 %v5174, %v5334
        %v5336 = vpop.f32.mrf.mxu0
        %v5337 = vpop.f32.mrf.mxu0
        %v5338 = vadd.f32 %v5177, %v5337
        %v5339 = vpop.f32.mrf.mxu0
        %5340 = vmatprep.mubr.bf16.mxu0 %v4272
        %5341 = vmatmul.mubr.bf16.gmra.mxu0 %v4271
        %v5342 = vpop.f32.mrf.mxu0
        %v5343 = vadd.f32 %v5182, %v5342
        %v5344 = vpop.f32.mrf.mxu0
        %v5345 = vpop.f32.mrf.mxu0
        %v5346 = vadd.f32 %v5185, %v5345
        %v5347 = vpop.f32.mrf.mxu0
        %5348 = vmatprep.mubr.bf16.mxu0 %v4281
        %5349 = vmatmul.mubr.bf16.gmra.mxu0 %v4280
        %v5350 = vpop.f32.mrf.mxu0
        %v5351 = vadd.f32 %v5190, %v5350
        %v5352 = vpop.f32.mrf.mxu0
        %v5353 = vpop.f32.mrf.mxu0
        %v5354 = vadd.f32 %v5193, %v5353
        %v5355 = vpop.f32.mrf.mxu0
        %5356 = vmatprep.mubr.bf16.mxu0 %v4290
        %5357 = vmatmul.mubr.bf16.gmra.mxu0 %v4289
        %v5358 = vpop.f32.mrf.mxu0
        %v5359 = vadd.f32 %v5198, %v5358
        %v5360 = vpop.f32.mrf.mxu0
        %v5361 = vpop.f32.mrf.mxu0
        %v5362 = vadd.f32 %v5201, %v5361
        %v5363 = vpop.f32.mrf.mxu0
        %5364 = vmatprep.mubr.bf16.mxu0 %v4299
        %5365 = vmatmul.mubr.bf16.gmra.mxu0 %v4298
        %v5366 = vpop.f32.mrf.mxu0
        %v5367 = vadd.f32 %v5206, %v5366
        %v5368 = vpop.f32.mrf.mxu0
        %v5369 = vpop.f32.mrf.mxu0
        %v5370 = vadd.f32 %v5209, %v5369
        %v5371 = vpop.f32.mrf.mxu0
        %5372 = vmatprep.mubr.bf16.mxu0 %v4308
        %5373 = vmatmul.mubr.bf16.gmra.mxu0 %v4307
        %v5374 = vpop.f32.mrf.mxu0
        %v5375 = vadd.f32 %v5214, %v5374
        %v5376 = vpop.f32.mrf.mxu0
        %v5377 = vpop.f32.mrf.mxu0
        %v5378 = vadd.f32 %v5217, %v5377
        %v5379 = vpop.f32.mrf.mxu0
        %5380 = vmatprep.mubr.bf16.mxu0 %v4317
        %5381 = vmatmul.mubr.bf16.gmra.mxu0 %v4316
        %v5382 = vpop.f32.mrf.mxu0
        %v5383 = vadd.f32 %v5222, %v5382
        %v5384 = vpop.f32.mrf.mxu0
        %v5385 = vpop.f32.mrf.mxu0
        %v5386 = vadd.f32 %v5225, %v5385
        %v5387 = vpop.f32.mrf.mxu0
        %5388 = vmatprep.mubr.bf16.mxu0 %v4326
        %5389 = vmatmul.mubr.bf16.gmra.mxu0 %v4325
        %v5390 = vpop.f32.mrf.mxu0
        %v5391 = vadd.f32 %v5230, %v5390
        %v5392 = vpop.f32.mrf.mxu0
        %v5393 = vpop.f32.mrf.mxu0
        %v5394 = vadd.f32 %v5233, %v5393
        %v5395 = vpop.f32.mrf.mxu0
        %5396 = vmatprep.mubr.bf16.mxu0 %v4335
        %5397 = vmatmul.mubr.bf16.gmra.mxu0 %v4334
        %v5398 = vpop.f32.mrf.mxu0
        %v5399 = vadd.f32 %v5238, %v5398
        %v5400 = vpop.f32.mrf.mxu0
        %v5401 = vpop.f32.mrf.mxu0
        %v5402 = vadd.f32 %v5241, %v5401
        %v5403 = vpop.f32.mrf.mxu0
        %5404 = vmatprep.mubr.bf16.mxu0 %v4344
        %5405 = vmatmul.mubr.bf16.gmra.mxu0 %v4343
        %v5406 = vpop.f32.mrf.mxu0
        %v5407 = vadd.f32 %v5246, %v5406
        %v5408 = vpop.f32.mrf.mxu0
        %v5409 = vpop.f32.mrf.mxu0
        %v5410 = vadd.f32 %v5249, %v5409
        %v5411 = vpop.f32.mrf.mxu0
        %5412 = vmatprep.mubr.bf16.mxu0 %v4353
        %5413 = vmatmul.mubr.bf16.gmra.mxu0 %v4352
        %v5414 = vpop.f32.mrf.mxu0
        %v5415 = vadd.f32 %v5254, %v5414
        %v5416 = vpop.f32.mrf.mxu0
        %v5417 = vpop.f32.mrf.mxu0
        %v5418 = vadd.f32 %v5257, %v5417
        %v5419 = vpop.f32.mrf.mxu0
        %5420 = vmatprep.mubr.bf16.mxu0 %v4362
        %5421 = vmatmul.mubr.bf16.gmra.mxu0 %v4361
        %v5422 = vpop.f32.mrf.mxu0
        %v5423 = vadd.f32 %v5262, %v5422
        %v5424 = vpop.f32.mrf.mxu0
        %v5425 = vpop.f32.mrf.mxu0
        %v5426 = vadd.f32 %v5265, %v5425
        %v5427 = vpop.f32.mrf.mxu0
        %5428 = vmatprep.mubr.bf16.mxu0 %v4371
        %5429 = vmatmul.mubr.bf16.gmra.mxu0 %v4370
        %v5430 = vpop.f32.mrf.mxu0
        %v5431 = vadd.f32 %v5270, %v5430
        %v5432 = vpop.f32.mrf.mxu0
        %v5433 = vpop.f32.mrf.mxu0
        %v5434 = vadd.f32 %v5273, %v5433
        %v5435 = vpop.f32.mrf.mxu0
        %5436 = vmatprep.mubr.bf16.mxu0 %v4380
        %5437 = vmatmul.mubr.bf16.gmra.mxu0 %v4379
        %v5438 = vpop.f32.mrf.mxu0
        %v5439 = vadd.f32 %v5278, %v5438
        %v5440 = vpop.f32.mrf.mxu0
        %v5441 = vpop.f32.mrf.mxu0
        %v5442 = vadd.f32 %v5281, %v5441
        %v5443 = vpop.f32.mrf.mxu0
        %5444 = vmatprep.mubr.bf16.mxu0 %v4389
        %5445 = vmatmul.mubr.bf16.gmra.mxu0 %v4388
        %v5446 = vpop.f32.mrf.mxu0
        %v5447 = vadd.f32 %v5286, %v5446
        %v5448 = vpop.f32.mrf.mxu0
        %v5449 = vpop.f32.mrf.mxu0
        %v5450 = vadd.f32 %v5289, %v5449
        %v5451 = vpop.f32.mrf.mxu0
        %5452 = vmatprep.mubr.bf16.mxu0 %v4398
        %5453 = vmatmul.mubr.bf16.gmra.mxu0 %v4397
        %v5454 = vpop.f32.mrf.mxu0
        %v5455 = vadd.f32 %v5294, %v5454
        %v5456 = vpop.f32.mrf.mxu0
        %v5457 = vpop.f32.mrf.mxu0
        %v5458 = vadd.f32 %v5297, %v5457
        %v5459 = vpop.f32.mrf.mxu0
        %5460 = vdwg.mxu0
        %5461 = vmatprep.subr.bf16.mxu0 0
        %5462 = vmatpush1.bf16.msra.mxu0 %v4889
        %5463 = vmatprep.subr.bf16.mxu0 0
        %5464 = vmatpush1.bf16.msra.mxu0 %v4888
        %5465 = vmatprep.subr.bf16.mxu0 0
        %5466 = vmatpush1.bf16.msra.mxu0 %v4887
        %5467 = vmatprep.subr.bf16.mxu0 0
        %5468 = vmatpush1.bf16.msra.mxu0 %v4886
        %5469 = vmatprep.subr.bf16.mxu0 0
        %5470 = vmatpush1.bf16.msra.mxu0 %v4885
        %5471 = vmatprep.subr.bf16.mxu0 0
        %5472 = vmatpush1.bf16.msra.mxu0 %v4884
        %5473 = vmatprep.subr.bf16.mxu0 0
        %5474 = vmatpush1.bf16.msra.mxu0 %v4883
        %5475 = vmatprep.subr.bf16.mxu0 0
        %5476 = vmatpush1.bf16.msra.mxu0 %v4882
        %5477 = vmatprep.subr.bf16.mxu0 0
        %5478 = vmatpush2.bf16.msra.mxu0 %v4897
        %5479 = vmatprep.subr.bf16.mxu0 0
        %5480 = vmatpush2.bf16.msra.mxu0 %v4896
        %5481 = vmatprep.subr.bf16.mxu0 0
        %5482 = vmatpush2.bf16.msra.mxu0 %v4895
        %5483 = vmatprep.subr.bf16.mxu0 0
        %5484 = vmatpush2.bf16.msra.mxu0 %v4894
        %5485 = vmatprep.subr.bf16.mxu0 0
        %5486 = vmatpush2.bf16.msra.mxu0 %v4893
        %5487 = vmatprep.subr.bf16.mxu0 0
        %5488 = vmatpush2.bf16.msra.mxu0 %v4892
        %5489 = vmatprep.subr.bf16.mxu0 0
        %5490 = vmatpush2.bf16.msra.mxu0 %v4891
        %5491 = vmatprep.subr.bf16.mxu0 0
        %5492 = vmatpush2.bf16.msra.mxu0 %v4890
        %5493 = vmatprep.mubr.bf16.mxu0 %v4265
        %5494 = vmatmul.mubr.bf16.gmra.mxu0 %v4264
        %v5495 = vpop.f32.mrf.mxu0
        %v5496 = vadd.f32 %v5335, %v5495
        %v5497 = vpop.f32.mrf.mxu0
        %v5498 = vpop.f32.mrf.mxu0
        %v5499 = vadd.f32 %v5338, %v5498
        %v5500 = vpop.f32.mrf.mxu0
        %5501 = vmatprep.mubr.bf16.mxu0 %v4274
        %5502 = vmatmul.mubr.bf16.gmra.mxu0 %v4273
        %v5503 = vpop.f32.mrf.mxu0
        %v5504 = vadd.f32 %v5343, %v5503
        %v5505 = vpop.f32.mrf.mxu0
        %v5506 = vpop.f32.mrf.mxu0
        %v5507 = vadd.f32 %v5346, %v5506
        %v5508 = vpop.f32.mrf.mxu0
        %5509 = vmatprep.mubr.bf16.mxu0 %v4283
        %5510 = vmatmul.mubr.bf16.gmra.mxu0 %v4282
        %v5511 = vpop.f32.mrf.mxu0
        %v5512 = vadd.f32 %v5351, %v5511
        %v5513 = vpop.f32.mrf.mxu0
        %v5514 = vpop.f32.mrf.mxu0
        %v5515 = vadd.f32 %v5354, %v5514
        %v5516 = vpop.f32.mrf.mxu0
        %5517 = vmatprep.mubr.bf16.mxu0 %v4292
        %5518 = vmatmul.mubr.bf16.gmra.mxu0 %v4291
        %v5519 = vpop.f32.mrf.mxu0
        %v5520 = vadd.f32 %v5359, %v5519
        %v5521 = vpop.f32.mrf.mxu0
        %v5522 = vpop.f32.mrf.mxu0
        %v5523 = vadd.f32 %v5362, %v5522
        %v5524 = vpop.f32.mrf.mxu0
        %5525 = vmatprep.mubr.bf16.mxu0 %v4301
        %5526 = vmatmul.mubr.bf16.gmra.mxu0 %v4300
        %v5527 = vpop.f32.mrf.mxu0
        %v5528 = vadd.f32 %v5367, %v5527
        %v5529 = vpop.f32.mrf.mxu0
        %v5530 = vpop.f32.mrf.mxu0
        %v5531 = vadd.f32 %v5370, %v5530
        %v5532 = vpop.f32.mrf.mxu0
        %5533 = vmatprep.mubr.bf16.mxu0 %v4310
        %5534 = vmatmul.mubr.bf16.gmra.mxu0 %v4309
        %v5535 = vpop.f32.mrf.mxu0
        %v5536 = vadd.f32 %v5375, %v5535
        %v5537 = vpop.f32.mrf.mxu0
        %v5538 = vpop.f32.mrf.mxu0
        %v5539 = vadd.f32 %v5378, %v5538
        %v5540 = vpop.f32.mrf.mxu0
        %5541 = vmatprep.mubr.bf16.mxu0 %v4319
        %5542 = vmatmul.mubr.bf16.gmra.mxu0 %v4318
        %v5543 = vpop.f32.mrf.mxu0
        %v5544 = vadd.f32 %v5383, %v5543
        %v5545 = vpop.f32.mrf.mxu0
        %v5546 = vpop.f32.mrf.mxu0
        %v5547 = vadd.f32 %v5386, %v5546
        %v5548 = vpop.f32.mrf.mxu0
        %5549 = vmatprep.mubr.bf16.mxu0 %v4328
        %5550 = vmatmul.mubr.bf16.gmra.mxu0 %v4327
        %v5551 = vpop.f32.mrf.mxu0
        %v5552 = vadd.f32 %v5391, %v5551
        %v5553 = vpop.f32.mrf.mxu0
        %v5554 = vpop.f32.mrf.mxu0
        %v5555 = vadd.f32 %v5394, %v5554
        %v5556 = vpop.f32.mrf.mxu0
        %5557 = vmatprep.mubr.bf16.mxu0 %v4337
        %5558 = vmatmul.mubr.bf16.gmra.mxu0 %v4336
        %v5559 = vpop.f32.mrf.mxu0
        %v5560 = vadd.f32 %v5399, %v5559
        %v5561 = vpop.f32.mrf.mxu0
        %v5562 = vpop.f32.mrf.mxu0
        %v5563 = vadd.f32 %v5402, %v5562
        %v5564 = vpop.f32.mrf.mxu0
        %5565 = vmatprep.mubr.bf16.mxu0 %v4346
        %5566 = vmatmul.mubr.bf16.gmra.mxu0 %v4345
        %v5567 = vpop.f32.mrf.mxu0
        %v5568 = vadd.f32 %v5407, %v5567
        %v5569 = vpop.f32.mrf.mxu0
        %v5570 = vpop.f32.mrf.mxu0
        %v5571 = vadd.f32 %v5410, %v5570
        %v5572 = vpop.f32.mrf.mxu0
        %5573 = vmatprep.mubr.bf16.mxu0 %v4355
        %5574 = vmatmul.mubr.bf16.gmra.mxu0 %v4354
        %v5575 = vpop.f32.mrf.mxu0
        %v5576 = vadd.f32 %v5415, %v5575
        %v5577 = vpop.f32.mrf.mxu0
        %v5578 = vpop.f32.mrf.mxu0
        %v5579 = vadd.f32 %v5418, %v5578
        %v5580 = vpop.f32.mrf.mxu0
        %5581 = vmatprep.mubr.bf16.mxu0 %v4364
        %5582 = vmatmul.mubr.bf16.gmra.mxu0 %v4363
        %v5583 = vpop.f32.mrf.mxu0
        %v5584 = vadd.f32 %v5423, %v5583
        %v5585 = vpop.f32.mrf.mxu0
        %v5586 = vpop.f32.mrf.mxu0
        %v5587 = vadd.f32 %v5426, %v5586
        %v5588 = vpop.f32.mrf.mxu0
        %5589 = vmatprep.mubr.bf16.mxu0 %v4373
        %5590 = vmatmul.mubr.bf16.gmra.mxu0 %v4372
        %v5591 = vpop.f32.mrf.mxu0
        %v5592 = vadd.f32 %v5431, %v5591
        %v5593 = vpop.f32.mrf.mxu0
        %v5594 = vpop.f32.mrf.mxu0
        %v5595 = vadd.f32 %v5434, %v5594
        %v5596 = vpop.f32.mrf.mxu0
        %5597 = vmatprep.mubr.bf16.mxu0 %v4382
        %5598 = vmatmul.mubr.bf16.gmra.mxu0 %v4381
        %v5599 = vpop.f32.mrf.mxu0
        %v5600 = vadd.f32 %v5439, %v5599
        %v5601 = vpop.f32.mrf.mxu0
        %v5602 = vpop.f32.mrf.mxu0
        %v5603 = vadd.f32 %v5442, %v5602
        %v5604 = vpop.f32.mrf.mxu0
        %5605 = vmatprep.mubr.bf16.mxu0 %v4391
        %5606 = vmatmul.mubr.bf16.gmra.mxu0 %v4390
        %v5607 = vpop.f32.mrf.mxu0
        %v5608 = vadd.f32 %v5447, %v5607
        %v5609 = vpop.f32.mrf.mxu0
        %v5610 = vpop.f32.mrf.mxu0
        %v5611 = vadd.f32 %v5450, %v5610
        %v5612 = vpop.f32.mrf.mxu0
        %5613 = vmatprep.mubr.bf16.mxu0 %v4400
        %5614 = vmatmul.mubr.bf16.gmra.mxu0 %v4399
        %v5615 = vpop.f32.mrf.mxu0
        %v5616 = vadd.f32 %v5455, %v5615
        %v5617 = vpop.f32.mrf.mxu0
        %v5618 = vpop.f32.mrf.mxu0
        %v5619 = vadd.f32 %v5458, %v5618
        %v5620 = vpop.f32.mrf.mxu0
        %5621 = vdwg.mxu0
        %5622 = vmatprep.subr.bf16.mxu0 0
        %5623 = vmatpush1.bf16.msra.mxu0 %v4905
        %5624 = vmatprep.subr.bf16.mxu0 0
        %5625 = vmatpush1.bf16.msra.mxu0 %v4904
        %5626 = vmatprep.subr.bf16.mxu0 0
        %5627 = vmatpush1.bf16.msra.mxu0 %v4903
        %5628 = vmatprep.subr.bf16.mxu0 0
        %5629 = vmatpush1.bf16.msra.mxu0 %v4902
        %5630 = vmatprep.subr.bf16.mxu0 0
        %5631 = vmatpush1.bf16.msra.mxu0 %v4901
        %5632 = vmatprep.subr.bf16.mxu0 0
        %5633 = vmatpush1.bf16.msra.mxu0 %v4900
        %5634 = vmatprep.subr.bf16.mxu0 0
        %5635 = vmatpush1.bf16.msra.mxu0 %v4899
        %5636 = vmatprep.subr.bf16.mxu0 0
        %5637 = vmatpush1.bf16.msra.mxu0 %v4898
        %5638 = vmatprep.subr.bf16.mxu0 0
        %5639 = vmatpush2.bf16.msra.mxu0 0
        %5640 = vmatprep.subr.bf16.mxu0 0
        %5641 = vmatpush2.bf16.msra.mxu0 0
        %5642 = vmatprep.subr.bf16.mxu0 0
        %5643 = vmatpush2.bf16.msra.mxu0 0
        %5644 = vmatprep.subr.bf16.mxu0 0
        %5645 = vmatpush2.bf16.msra.mxu0 0
        %5646 = vmatprep.subr.bf16.mxu0 0
        %5647 = vmatpush2.bf16.msra.mxu0 0
        %5648 = vmatprep.subr.bf16.mxu0 0
        %5649 = vmatpush2.bf16.msra.mxu0 0
        %5650 = vmatprep.subr.bf16.mxu0 0
        %5651 = vmatpush2.bf16.msra.mxu0 0
        %5652 = vmatprep.subr.bf16.mxu0 0
        %5653 = vmatpush2.bf16.msra.mxu0 0
        %5654 = vmatprep.mubr.bf16.mxu0 0
        %5655 = vmatmul.mubr.bf16.gmra.mxu0 %v4266
        %v5656 = vpop.f32.mrf.mxu0
        %v5657 = vadd.f32 %v5496, %v5656
        %v5658 = vpop.f32.mrf.mxu0
        %v5659 = vpop.f32.mrf.mxu0
        %v5660 = vadd.f32 %v5499, %v5659
        %v5661 = vpop.f32.mrf.mxu0
        %5662 = vmatprep.mubr.bf16.mxu0 0
        %5663 = vmatmul.mubr.bf16.gmra.mxu0 %v4275
        %v5664 = vpop.f32.mrf.mxu0
        %v5665 = vadd.f32 %v5504, %v5664
        %v5666 = vpop.f32.mrf.mxu0
        %v5667 = vpop.f32.mrf.mxu0
        %v5668 = vadd.f32 %v5507, %v5667
        %v5669 = vpop.f32.mrf.mxu0
        %5670 = vmatprep.mubr.bf16.mxu0 0
        %5671 = vmatmul.mubr.bf16.gmra.mxu0 %v4284
        %v5672 = vpop.f32.mrf.mxu0
        %v5673 = vadd.f32 %v5512, %v5672
        %v5674 = vpop.f32.mrf.mxu0
        %v5675 = vpop.f32.mrf.mxu0
        %v5676 = vadd.f32 %v5515, %v5675
        %v5677 = vpop.f32.mrf.mxu0
        %5678 = vmatprep.mubr.bf16.mxu0 0
        %5679 = vmatmul.mubr.bf16.gmra.mxu0 %v4293
        %v5680 = vpop.f32.mrf.mxu0
        %v5681 = vadd.f32 %v5520, %v5680
        %v5682 = vpop.f32.mrf.mxu0
        %v5683 = vpop.f32.mrf.mxu0
        %v5684 = vadd.f32 %v5523, %v5683
        %v5685 = vpop.f32.mrf.mxu0
        %5686 = vmatprep.mubr.bf16.mxu0 0
        %5687 = vmatmul.mubr.bf16.gmra.mxu0 %v4302
        %v5688 = vpop.f32.mrf.mxu0
        %v5689 = vadd.f32 %v5528, %v5688
        %v5690 = vpop.f32.mrf.mxu0
        %v5691 = vpop.f32.mrf.mxu0
        %v5692 = vadd.f32 %v5531, %v5691
        %v5693 = vpop.f32.mrf.mxu0
        %5694 = vmatprep.mubr.bf16.mxu0 0
        %5695 = vmatmul.mubr.bf16.gmra.mxu0 %v4311
        %v5696 = vpop.f32.mrf.mxu0
        %v5697 = vadd.f32 %v5536, %v5696
        %v5698 = vpop.f32.mrf.mxu0
        %v5699 = vpop.f32.mrf.mxu0
        %v5700 = vadd.f32 %v5539, %v5699
        %v5701 = vpop.f32.mrf.mxu0
        %5702 = vmatprep.mubr.bf16.mxu0 0
        %5703 = vmatmul.mubr.bf16.gmra.mxu0 %v4320
        %v5704 = vpop.f32.mrf.mxu0
        %v5705 = vadd.f32 %v5544, %v5704
        %v5706 = vpop.f32.mrf.mxu0
        %v5707 = vpop.f32.mrf.mxu0
        %v5708 = vadd.f32 %v5547, %v5707
        %v5709 = vpop.f32.mrf.mxu0
        %5710 = vmatprep.mubr.bf16.mxu0 0
        %5711 = vmatmul.mubr.bf16.gmra.mxu0 %v4329
        %v5712 = vpop.f32.mrf.mxu0
        %v5713 = vadd.f32 %v5552, %v5712
        %v5714 = vpop.f32.mrf.mxu0
        %v5715 = vpop.f32.mrf.mxu0
        %v5716 = vadd.f32 %v5555, %v5715
        %v5717 = vpop.f32.mrf.mxu0
        %5718 = vmatprep.mubr.bf16.mxu0 0
        %5719 = vmatmul.mubr.bf16.gmra.mxu0 %v4338
        %v5720 = vpop.f32.mrf.mxu0
        %v5721 = vadd.f32 %v5560, %v5720
        %v5722 = vpop.f32.mrf.mxu0
        %v5723 = vpop.f32.mrf.mxu0
        %v5724 = vadd.f32 %v5563, %v5723
        %v5725 = vpop.f32.mrf.mxu0
        %5726 = vmatprep.mubr.bf16.mxu0 0
        %5727 = vmatmul.mubr.bf16.gmra.mxu0 %v4347
        %v5728 = vpop.f32.mrf.mxu0
        %v5729 = vadd.f32 %v5568, %v5728
        %v5730 = vpop.f32.mrf.mxu0
        %v5731 = vpop.f32.mrf.mxu0
        %v5732 = vadd.f32 %v5571, %v5731
        %v5733 = vpop.f32.mrf.mxu0
        %5734 = vmatprep.mubr.bf16.mxu0 0
        %5735 = vmatmul.mubr.bf16.gmra.mxu0 %v4356
        %v5736 = vpop.f32.mrf.mxu0
        %v5737 = vadd.f32 %v5576, %v5736
        %v5738 = vpop.f32.mrf.mxu0
        %v5739 = vpop.f32.mrf.mxu0
        %v5740 = vadd.f32 %v5579, %v5739
        %v5741 = vpop.f32.mrf.mxu0
        %5742 = vmatprep.mubr.bf16.mxu0 0
        %5743 = vmatmul.mubr.bf16.gmra.mxu0 %v4365
        %v5744 = vpop.f32.mrf.mxu0
        %v5745 = vadd.f32 %v5584, %v5744
        %v5746 = vpop.f32.mrf.mxu0
        %v5747 = vpop.f32.mrf.mxu0
        %v5748 = vadd.f32 %v5587, %v5747
        %v5749 = vpop.f32.mrf.mxu0
        %5750 = vmatprep.mubr.bf16.mxu0 0
        %5751 = vmatmul.mubr.bf16.gmra.mxu0 %v4374
        %v5752 = vpop.f32.mrf.mxu0
        %v5753 = vadd.f32 %v5592, %v5752
        %v5754 = vpop.f32.mrf.mxu0
        %v5755 = vpop.f32.mrf.mxu0
        %v5756 = vadd.f32 %v5595, %v5755
        %v5757 = vpop.f32.mrf.mxu0
        %5758 = vmatprep.mubr.bf16.mxu0 0
        %5759 = vmatmul.mubr.bf16.gmra.mxu0 %v4383
        %v5760 = vpop.f32.mrf.mxu0
        %v5761 = vadd.f32 %v5600, %v5760
        %v5762 = vpop.f32.mrf.mxu0
        %v5763 = vpop.f32.mrf.mxu0
        %v5764 = vadd.f32 %v5603, %v5763
        %v5765 = vpop.f32.mrf.mxu0
        %5766 = vmatprep.mubr.bf16.mxu0 0
        %5767 = vmatmul.mubr.bf16.gmra.mxu0 %v4392
        %v5768 = vpop.f32.mrf.mxu0
        %v5769 = vadd.f32 %v5608, %v5768
        %v5770 = vpop.f32.mrf.mxu0
        %v5771 = vpop.f32.mrf.mxu0
        %v5772 = vadd.f32 %v5611, %v5771
        %v5773 = vpop.f32.mrf.mxu0
        %5774 = vmatprep.mubr.bf16.mxu0 0
        %5775 = vmatmul.mubr.bf16.gmra.mxu0 %v4401
        %v5776 = vpop.f32.mrf.mxu0
        %v5777 = vadd.f32 %v5616, %v5776
        %v5778 = vpop.f32.mrf.mxu0
        %v5779 = vpop.f32.mrf.mxu0
        %v5780 = vadd.f32 %v5619, %v5779
        %v5781 = vpop.f32.mrf.mxu0
        %5782 = vdwg.mxu0
        %v5783 = vmax.f32 %v5657, 0.0
        %v5784 = vmax.f32 %v5660, 0.0
        %v5785 = vmax.f32 %v5665, 0.0
        %v5786 = vmax.f32 %v5668, 0.0
        %v5787 = vmax.f32 %v5673, 0.0
        %v5788 = vmax.f32 %v5676, 0.0
        %v5789 = vmax.f32 %v5681, 0.0
        %v5790 = vmax.f32 %v5684, 0.0
        %v5791 = vmax.f32 %v5689, 0.0
        %v5792 = vmax.f32 %v5692, 0.0
        %v5793 = vmax.f32 %v5697, 0.0
        %v5794 = vmax.f32 %v5700, 0.0
        %v5795 = vmax.f32 %v5705, 0.0
        %v5796 = vmax.f32 %v5708, 0.0
        %v5797 = vmax.f32 %v5713, 0.0
        %v5798 = vmax.f32 %v5716, 0.0
        %v5799 = vmax.f32 %v5721, 0.0
        %v5800 = vmax.f32 %v5724, 0.0
        %v5801 = vmax.f32 %v5729, 0.0
        %v5802 = vmax.f32 %v5732, 0.0
        %v5803 = vmax.f32 %v5737, 0.0
        %v5804 = vmax.f32 %v5740, 0.0
        %v5805 = vmax.f32 %v5745, 0.0
        %v5806 = vmax.f32 %v5748, 0.0
        %v5807 = vmax.f32 %v5753, 0.0
        %v5808 = vmax.f32 %v5756, 0.0
        %v5809 = vmax.f32 %v5761, 0.0
        %v5810 = vmax.f32 %v5764, 0.0
        %v5811 = vmax.f32 %v5769, 0.0
        %v5812 = vmax.f32 %v5772, 0.0
        %v5813 = vmax.f32 %v5777, 0.0
        %v5814 = vmax.f32 %v5780, 0.0
        %v5815 = vadd.f32 %v5783, %v5785
        %v5816 = vadd.f32 %v5784, %v5786
        %v5817 = vadd.f32 %v5787, %v5789
        %v5818 = vadd.f32 %v5788, %v5790
        %v5819 = vadd.f32 %v5791, %v5793
        %v5820 = vadd.f32 %v5792, %v5794
        %v5821 = vadd.f32 %v5795, %v5797
        %v5822 = vadd.f32 %v5796, %v5798
        %v5823 = vadd.f32 %v5799, %v5801
        %v5824 = vadd.f32 %v5800, %v5802
        %v5825 = vadd.f32 %v5803, %v5805
        %v5826 = vadd.f32 %v5804, %v5806
        %v5827 = vadd.f32 %v5807, %v5809
        %v5828 = vadd.f32 %v5808, %v5810
        %v5829 = vadd.f32 %v5811, %v5813
        %v5830 = vadd.f32 %v5812, %v5814
        %5831 = vst [vmem:[#allocation4] sm:$0xff] %v5815
        %5832 = vst [vmem:[#allocation4 + $0x8] sm:$0xff] %v5816
        %5833 = vst [vmem:[#allocation4 + $0x10] sm:$0xff] %v5817
        %5834 = vst [vmem:[#allocation4 + $0x18] sm:$0xff] %v5818
        %5835 = vst [vmem:[#allocation4 + $0x20] sm:$0xff] %v5819
        %5836 = vst [vmem:[#allocation4 + $0x28] sm:$0xff] %v5820
        %5837 = vst [vmem:[#allocation4 + $0x30] sm:$0xff] %v5821
        %5838 = vst [vmem:[#allocation4 + $0x38] sm:$0xff] %v5822
        %5839 = vst [vmem:[#allocation4 + $0x40] sm:$0xff] %v5823
        %5840 = vst [vmem:[#allocation4 + $0x48] sm:$0xff] %v5824
        %5841 = vst [vmem:[#allocation4 + $0x50] sm:$0xff] %v5825
        %5842 = vst [vmem:[#allocation4 + $0x58] sm:$0xff] %v5826
        %5843 = vst [vmem:[#allocation4 + $0x60] sm:$0xff] %v5827
        %5844 = vst [vmem:[#allocation4 + $0x68] sm:$0xff] %v5828
        %5845 = vst [vmem:[#allocation4 + $0x70] sm:$0xff] %v5829
        %5846 = vst [vmem:[#allocation4 + $0x78] sm:$0xff] %v5830
        %v5847 = vld [vmem:[#allocation4] ss:$2 sm:$0xff]
        %s5848 = scalar_lea.vmem [#allocation4], 16
        %v5849 = vld [vmem:[%s5848] ss:$2 sm:$0xff]
        %s5850 = scalar_lea.vmem [#allocation4], 32
        %v5851 = vld [vmem:[%s5850] ss:$2 sm:$0xff]
        %s5852 = scalar_lea.vmem [#allocation4], 48
        %v5853 = vld [vmem:[%s5852] ss:$2 sm:$0xff]
        %s5854 = scalar_lea.vmem [#allocation4], 64
        %v5855 = vld [vmem:[%s5854] ss:$2 sm:$0xff]
        %s5856 = scalar_lea.vmem [#allocation4], 80
        %v5857 = vld [vmem:[%s5856] ss:$2 sm:$0xff]
        %s5858 = scalar_lea.vmem [#allocation4], 96
        %v5859 = vld [vmem:[%s5858] ss:$2 sm:$0xff]
        %s5860 = scalar_lea.vmem [#allocation4], 112
        %v5861 = vld [vmem:[%s5860] ss:$2 sm:$0xff]
        %s5862 = scalar_lea.vmem [#allocation4], 1
        %v5863 = vld [vmem:[%s5862] ss:$2 sm:$0xff]
        %s5864 = scalar_lea.vmem [#allocation4], 17
        %v5865 = vld [vmem:[%s5864] ss:$2 sm:$0xff]
        %s5866 = scalar_lea.vmem [#allocation4], 33
        %v5867 = vld [vmem:[%s5866] ss:$2 sm:$0xff]
        %s5868 = scalar_lea.vmem [#allocation4], 49
        %v5869 = vld [vmem:[%s5868] ss:$2 sm:$0xff]
        %s5870 = scalar_lea.vmem [#allocation4], 65
        %v5871 = vld [vmem:[%s5870] ss:$2 sm:$0xff]
        %s5872 = scalar_lea.vmem [#allocation4], 81
        %v5873 = vld [vmem:[%s5872] ss:$2 sm:$0xff]
        %s5874 = scalar_lea.vmem [#allocation4], 97
        %v5875 = vld [vmem:[%s5874] ss:$2 sm:$0xff]
        %s5876 = scalar_lea.vmem [#allocation4], 113
        %v5877 = vld [vmem:[%s5876] ss:$2 sm:$0xff]
        %v5878 = vadd.f32 %v5847, %v5863
        %v5879 = vadd.f32 %v5849, %v5865
        %v5880 = vadd.f32 %v5851, %v5867
        %v5881 = vadd.f32 %v5853, %v5869
        %v5882 = vadd.f32 %v5855, %v5871
        %v5883 = vadd.f32 %v5857, %v5873
        %v5884 = vadd.f32 %v5859, %v5875
        %v5885 = vadd.f32 %v5861, %v5877
        %v5886 = vmul.f32 %v5878, 0.25
        %v5887 = vmul.f32 %v5879, 0.25
        %v5888 = vmul.f32 %v5880, 0.25
        %v5889 = vmul.f32 %v5881, 0.25
        %v5890 = vmul.f32 %v5882, 0.25
        %v5891 = vmul.f32 %v5883, 0.25
        %v5892 = vmul.f32 %v5884, 0.25
        %v5893 = vmul.f32 %v5885, 0.25
        %v5894 = vpack.c.bf16 %v5887, %v5886
        %v5895 = vpack.c.bf16 %v5889, %v5888
        %v5896 = vpack.c.bf16 %v5891, %v5890
        %v5897 = vpack.c.bf16 %v5893, %v5892
        %v5898 = vld [vmem:[#allocation12] sm:$0xf]
        %v5899 = vld [vmem:[#allocation12 + $0x4] sm:$0xf]
        %v5900 = vld [vmem:[#allocation12 + $0x8] sm:$0xf]
        %v5901 = vld [vmem:[#allocation12 + $0xc] sm:$0xf]
        %v5902 = vld [vmem:[#allocation12 + $0x10] sm:$0xf]
        %v5903 = vld [vmem:[#allocation12 + $0x14] sm:$0xf]
        %v5904 = vld [vmem:[#allocation12 + $0x18] sm:$0xf]
        %v5905 = vld [vmem:[#allocation12 + $0x1c] sm:$0xf]
        %v5906 = vld [vmem:[#allocation12 + $0x20] sm:$0xf]
        %v5907 = vld [vmem:[#allocation12 + $0x24] sm:$0xf]
        %v5908 = vld [vmem:[#allocation12 + $0x28] sm:$0xf]
        %v5909 = vld [vmem:[#allocation12 + $0x2c] sm:$0xf]
        %v5910 = vld [vmem:[#allocation12 + $0x30] sm:$0xf]
        %v5911 = vld [vmem:[#allocation12 + $0x34] sm:$0xf]
        %v5912 = vld [vmem:[#allocation12 + $0x38] sm:$0xf]
        %v5913 = vld [vmem:[#allocation12 + $0x3c] sm:$0xf]
        %v5914 = vld [vmem:[%s6] sm:$0x1]
        %v5916 = vlaneseq
        %v5917 = vshrl.u32 %v5916, 7
        %v5918 = vsub.s32 0, %v5917
        %v5919 = vrot.slane %v5914, %v5918
        %v5937 = vunpack.c.l.b16 %v5898
        %v5938 = vunpack.c.l.b16 %v5899
        %v5939 = vunpack.c.l.b16 %v5900
        %v5940 = vunpack.c.l.b16 %v5901
        %v5941 = vunpack.c.l.b16 %v5902
        %v5942 = vunpack.c.l.b16 %v5903
        %v5943 = vunpack.c.l.b16 %v5904
        %v5944 = vunpack.c.l.b16 %v5905
        %v5945 = vunpack.c.l.b16 %v5906
        %v5946 = vunpack.c.l.b16 %v5907
        %v5947 = vunpack.c.l.b16 %v5908
        %v5948 = vunpack.c.l.b16 %v5909
        %v5949 = vunpack.c.l.b16 %v5910
        %v5950 = vunpack.c.l.b16 %v5911
        %v5951 = vunpack.c.l.b16 %v5912
        %v5952 = vunpack.c.l.b16 %v5913
        %v5953 = vpack.c.b16 %v5938, %v5937
        %v5954 = vpack.c.b16 %v5940, %v5939
        %v5955 = vpack.c.b16 %v5942, %v5941
        %v5956 = vpack.c.b16 %v5944, %v5943
        %v5957 = vpack.c.b16 %v5946, %v5945
        %v5958 = vpack.c.b16 %v5948, %v5947
        %v5959 = vpack.c.b16 %v5950, %v5949
        %v5960 = vpack.c.b16 %v5952, %v5951
        %5969 = vmatprep.subr.bf16.mxu0 0
        %5970 = vmatpush1.bf16.msra.mxu0 %v5960
        %5971 = vmatprep.subr.bf16.mxu0 0
        %5972 = vmatpush1.bf16.msra.mxu0 %v5959
        %5973 = vmatprep.subr.bf16.mxu0 0
        %5974 = vmatpush1.bf16.msra.mxu0 %v5958
        %5975 = vmatprep.subr.bf16.mxu0 0
        %5976 = vmatpush1.bf16.msra.mxu0 %v5957
        %5977 = vmatprep.subr.bf16.mxu0 0
        %5978 = vmatpush1.bf16.msra.mxu0 %v5956
        %5979 = vmatprep.subr.bf16.mxu0 0
        %5980 = vmatpush1.bf16.msra.mxu0 %v5955
        %5981 = vmatprep.subr.bf16.mxu0 0
        %5982 = vmatpush1.bf16.msra.mxu0 %v5954
        %5983 = vmatprep.subr.bf16.mxu0 0
        %5984 = vmatpush1.bf16.msra.mxu0 %v5953
        %5985 = vmatprep.subr.bf16.mxu0 0
        %5986 = vmatpush2.bf16.msra.mxu0 0
        %5987 = vmatprep.subr.bf16.mxu0 0
        %5988 = vmatpush2.bf16.msra.mxu0 0
        %5989 = vmatprep.subr.bf16.mxu0 0
        %5990 = vmatpush2.bf16.msra.mxu0 0
        %5991 = vmatprep.subr.bf16.mxu0 0
        %5992 = vmatpush2.bf16.msra.mxu0 0
        %5993 = vmatprep.subr.bf16.mxu0 0
        %5994 = vmatpush2.bf16.msra.mxu0 0
        %5995 = vmatprep.subr.bf16.mxu0 0
        %5996 = vmatpush2.bf16.msra.mxu0 0
        %5997 = vmatprep.subr.bf16.mxu0 0
        %5998 = vmatpush2.bf16.msra.mxu0 0
        %5999 = vmatprep.subr.bf16.mxu0 0
        %6000 = vmatpush2.bf16.msra.mxu0 0
        %6001 = vmatprep.mubr.bf16.mxu0 0
        %6002 = vmatmul.mubr.bf16.gmra.mxu0 %v5894
        %v6003 = vpop.f32.mrf.mxu0
        %v6004 = vadd.f32 %v5919, %v6003
        %v6005 = vpop.f32.mrf.mxu0
        %v6006 = vpop.f32.mrf.mxu0
        %v6007 = vadd.f32 %v5919, %v6006
        %v6008 = vpop.f32.mrf.mxu0
        %6009 = vmatprep.mubr.bf16.mxu0 0
        %6010 = vmatmul.mubr.bf16.gmra.mxu0 %v5895
        %v6011 = vpop.f32.mrf.mxu0
        %v6012 = vadd.f32 %v5919, %v6011
        %v6013 = vpop.f32.mrf.mxu0
        %v6014 = vpop.f32.mrf.mxu0
        %v6015 = vadd.f32 %v5919, %v6014
        %v6016 = vpop.f32.mrf.mxu0
        %6017 = vmatprep.mubr.bf16.mxu0 0
        %6018 = vmatmul.mubr.bf16.gmra.mxu0 %v5896
        %v6019 = vpop.f32.mrf.mxu0
        %v6020 = vadd.f32 %v5919, %v6019
        %v6021 = vpop.f32.mrf.mxu0
        %v6022 = vpop.f32.mrf.mxu0
        %v6023 = vadd.f32 %v5919, %v6022
        %v6024 = vpop.f32.mrf.mxu0
        %6025 = vmatprep.mubr.bf16.mxu0 0
        %6026 = vmatmul.mubr.bf16.gmra.mxu0 %v5897
        %v6027 = vpop.f32.mrf.mxu0
        %v6028 = vadd.f32 %v5919, %v6027
        %v6029 = vpop.f32.mrf.mxu0
        %v6030 = vpop.f32.mrf.mxu0
        %v6031 = vadd.f32 %v5919, %v6030
        %v6032 = vpop.f32.mrf.mxu0
        %6033 = vdwg.mxu0
        %v6034 = vunpack.c.l.bf16 %v412
        %v6035 = vunpack.c.l.bf16 %v413
        %v6036 = vunpack.c.l.bf16 %v414
        %v6037 = vunpack.c.l.bf16 %v415
        %v6038 = vunpack.c.l.bf16 %v416
        %v6039 = vunpack.c.l.bf16 %v417
        %v6040 = vunpack.c.l.bf16 %v418
        %v6041 = vunpack.c.l.bf16 %v419
        %v6042 = vunpack.c.l.bf16 %v420
        %v6043 = vunpack.c.l.bf16 %v421
        %v6044 = vunpack.c.l.bf16 %v422
        %v6045 = vunpack.c.l.bf16 %v423
        %v6046 = vunpack.c.l.bf16 %v424
        %v6047 = vunpack.c.l.bf16 %v425
        %v6048 = vunpack.c.l.bf16 %v426
        %v6049 = vunpack.c.l.bf16 %v427
        %v6050 = vunpack.c.l.bf16 %v428
        %v6051 = vunpack.c.l.bf16 %v429
        %v6052 = vunpack.c.l.bf16 %v430
        %v6053 = vunpack.c.l.bf16 %v431
        %v6054 = vunpack.c.l.bf16 %v432
        %v6055 = vunpack.c.l.bf16 %v433
        %v6056 = vunpack.c.l.bf16 %v434
        %v6057 = vunpack.c.l.bf16 %v435
        %v6058 = vunpack.c.l.bf16 %v436
        %v6059 = vunpack.c.l.bf16 %v437
        %v6060 = vunpack.c.l.bf16 %v438
        %v6061 = vunpack.c.l.bf16 %v439
        %v6062 = vunpack.c.l.bf16 %v440
        %v6063 = vunpack.c.l.bf16 %v441
        %v6064 = vunpack.c.l.bf16 %v442
        %v6065 = vunpack.c.l.bf16 %v443
        %v6066 = vadd.f32 %v6034, %v6036
        %v6067 = vadd.f32 %v6035, %v6037
        %v6068 = vadd.f32 %v6038, %v6040
        %v6069 = vadd.f32 %v6039, %v6041
        %v6070 = vadd.f32 %v6042, %v6044
        %v6071 = vadd.f32 %v6043, %v6045
        %v6072 = vadd.f32 %v6046, %v6048
        %v6073 = vadd.f32 %v6047, %v6049
        %v6074 = vadd.f32 %v6050, %v6052
        %v6075 = vadd.f32 %v6051, %v6053
        %v6076 = vadd.f32 %v6054, %v6056
        %v6077 = vadd.f32 %v6055, %v6057
        %v6078 = vadd.f32 %v6058, %v6060
        %v6079 = vadd.f32 %v6059, %v6061
        %v6080 = vadd.f32 %v6062, %v6064
        %v6081 = vadd.f32 %v6063, %v6065
        %6082 = vst [vmem:[#allocation5] sm:$0xff] %v6066
        %6083 = vst [vmem:[#allocation5 + $0x8] sm:$0xff] %v6067
        %6084 = vst [vmem:[#allocation5 + $0x10] sm:$0xff] %v6068
        %6085 = vst [vmem:[#allocation5 + $0x18] sm:$0xff] %v6069
        %6086 = vst [vmem:[#allocation5 + $0x20] sm:$0xff] %v6070
        %6087 = vst [vmem:[#allocation5 + $0x28] sm:$0xff] %v6071
        %6088 = vst [vmem:[#allocation5 + $0x30] sm:$0xff] %v6072
        %6089 = vst [vmem:[#allocation5 + $0x38] sm:$0xff] %v6073
        %6090 = vst [vmem:[#allocation5 + $0x40] sm:$0xff] %v6074
        %6091 = vst [vmem:[#allocation5 + $0x48] sm:$0xff] %v6075
        %6092 = vst [vmem:[#allocation5 + $0x50] sm:$0xff] %v6076
        %6093 = vst [vmem:[#allocation5 + $0x58] sm:$0xff] %v6077
        %6094 = vst [vmem:[#allocation5 + $0x60] sm:$0xff] %v6078
        %6095 = vst [vmem:[#allocation5 + $0x68] sm:$0xff] %v6079
        %6096 = vst [vmem:[#allocation5 + $0x70] sm:$0xff] %v6080
        %6097 = vst [vmem:[#allocation5 + $0x78] sm:$0xff] %v6081
        %v6098 = vld [vmem:[#allocation5] ss:$2 sm:$0xff]
        %s6099 = scalar_lea.vmem [#allocation5], 16
        %v6100 = vld [vmem:[%s6099] ss:$2 sm:$0xff]
        %s6101 = scalar_lea.vmem [#allocation5], 32
        %v6102 = vld [vmem:[%s6101] ss:$2 sm:$0xff]
        %s6103 = scalar_lea.vmem [#allocation5], 48
        %v6104 = vld [vmem:[%s6103] ss:$2 sm:$0xff]
        %s6105 = scalar_lea.vmem [#allocation5], 64
        %v6106 = vld [vmem:[%s6105] ss:$2 sm:$0xff]
        %s6107 = scalar_lea.vmem [#allocation5], 80
        %v6108 = vld [vmem:[%s6107] ss:$2 sm:$0xff]
        %s6109 = scalar_lea.vmem [#allocation5], 96
        %v6110 = vld [vmem:[%s6109] ss:$2 sm:$0xff]
        %s6111 = scalar_lea.vmem [#allocation5], 112
        %v6112 = vld [vmem:[%s6111] ss:$2 sm:$0xff]
        %s6113 = scalar_lea.vmem [#allocation5], 1
        %v6114 = vld [vmem:[%s6113] ss:$2 sm:$0xff]
        %s6115 = scalar_lea.vmem [#allocation5], 17
        %v6116 = vld [vmem:[%s6115] ss:$2 sm:$0xff]
        %s6117 = scalar_lea.vmem [#allocation5], 33
        %v6118 = vld [vmem:[%s6117] ss:$2 sm:$0xff]
        %s6119 = scalar_lea.vmem [#allocation5], 49
        %v6120 = vld [vmem:[%s6119] ss:$2 sm:$0xff]
        %s6121 = scalar_lea.vmem [#allocation5], 65
        %v6122 = vld [vmem:[%s6121] ss:$2 sm:$0xff]
        %s6123 = scalar_lea.vmem [#allocation5], 81
        %v6124 = vld [vmem:[%s6123] ss:$2 sm:$0xff]
        %s6125 = scalar_lea.vmem [#allocation5], 97
        %v6126 = vld [vmem:[%s6125] ss:$2 sm:$0xff]
        %s6127 = scalar_lea.vmem [#allocation5], 113
        %v6128 = vld [vmem:[%s6127] ss:$2 sm:$0xff]
        %v6129 = vadd.f32 %v6098, %v6114
        %v6130 = vadd.f32 %v6100, %v6116
        %v6131 = vadd.f32 %v6102, %v6118
        %v6132 = vadd.f32 %v6104, %v6120
        %v6133 = vadd.f32 %v6106, %v6122
        %v6134 = vadd.f32 %v6108, %v6124
        %v6135 = vadd.f32 %v6110, %v6126
        %v6136 = vadd.f32 %v6112, %v6128
        %v6137 = vmul.f32 %v6129, 0.25
        %v6138 = vmul.f32 %v6130, 0.25
        %v6139 = vmul.f32 %v6131, 0.25
        %v6140 = vmul.f32 %v6132, 0.25
        %v6141 = vmul.f32 %v6133, 0.25
        %v6142 = vmul.f32 %v6134, 0.25
        %v6143 = vmul.f32 %v6135, 0.25
        %v6144 = vmul.f32 %v6136, 0.25
        %v6145 = vpack.c.bf16 %v6138, %v6137
        %v6146 = vpack.c.bf16 %v6140, %v6139
        %v6147 = vpack.c.bf16 %v6142, %v6141
        %v6148 = vpack.c.bf16 %v6144, %v6143
        %v6149 = vld [vmem:[#allocation14] sm:$0xf]
        %v6150 = vld [vmem:[#allocation14 + $0x4] sm:$0xf]
        %v6151 = vld [vmem:[#allocation14 + $0x8] sm:$0xf]
        %v6152 = vld [vmem:[#allocation14 + $0xc] sm:$0xf]
        %v6153 = vld [vmem:[#allocation14 + $0x10] sm:$0xf]
        %v6154 = vld [vmem:[#allocation14 + $0x14] sm:$0xf]
        %v6155 = vld [vmem:[#allocation14 + $0x18] sm:$0xf]
        %v6156 = vld [vmem:[#allocation14 + $0x1c] sm:$0xf]
        %v6157 = vld [vmem:[#allocation14 + $0x20] sm:$0xf]
        %v6158 = vld [vmem:[#allocation14 + $0x24] sm:$0xf]
        %v6159 = vld [vmem:[#allocation14 + $0x28] sm:$0xf]
        %v6160 = vld [vmem:[#allocation14 + $0x2c] sm:$0xf]
        %v6161 = vld [vmem:[#allocation14 + $0x30] sm:$0xf]
        %v6162 = vld [vmem:[#allocation14 + $0x34] sm:$0xf]
        %v6163 = vld [vmem:[#allocation14 + $0x38] sm:$0xf]
        %v6164 = vld [vmem:[#allocation14 + $0x3c] sm:$0xf]
        %v6165 = vld [vmem:[%s8] sm:$0x1]
        %v6167 = vlaneseq
        %v6168 = vshrl.u32 %v6167, 7
        %v6169 = vsub.s32 0, %v6168
        %v6170 = vrot.slane %v6165, %v6169
        %v6188 = vunpack.c.l.b16 %v6149
        %v6189 = vunpack.c.l.b16 %v6150
        %v6190 = vunpack.c.l.b16 %v6151
        %v6191 = vunpack.c.l.b16 %v6152
        %v6192 = vunpack.c.l.b16 %v6153
        %v6193 = vunpack.c.l.b16 %v6154
        %v6194 = vunpack.c.l.b16 %v6155
        %v6195 = vunpack.c.l.b16 %v6156
        %v6196 = vunpack.c.l.b16 %v6157
        %v6197 = vunpack.c.l.b16 %v6158
        %v6198 = vunpack.c.l.b16 %v6159
        %v6199 = vunpack.c.l.b16 %v6160
        %v6200 = vunpack.c.l.b16 %v6161
        %v6201 = vunpack.c.l.b16 %v6162
        %v6202 = vunpack.c.l.b16 %v6163
        %v6203 = vunpack.c.l.b16 %v6164
        %v6204 = vpack.c.b16 %v6189, %v6188
        %v6205 = vpack.c.b16 %v6191, %v6190
        %v6206 = vpack.c.b16 %v6193, %v6192
        %v6207 = vpack.c.b16 %v6195, %v6194
        %v6208 = vpack.c.b16 %v6197, %v6196
        %v6209 = vpack.c.b16 %v6199, %v6198
        %v6210 = vpack.c.b16 %v6201, %v6200
        %v6211 = vpack.c.b16 %v6203, %v6202
        %6220 = vmatprep.subr.bf16.mxu0 0
        %6221 = vmatpush1.bf16.msra.mxu0 %v6211
        %6222 = vmatprep.subr.bf16.mxu0 0
        %6223 = vmatpush1.bf16.msra.mxu0 %v6210
        %6224 = vmatprep.subr.bf16.mxu0 0
        %6225 = vmatpush1.bf16.msra.mxu0 %v6209
        %6226 = vmatprep.subr.bf16.mxu0 0
        %6227 = vmatpush1.bf16.msra.mxu0 %v6208
        %6228 = vmatprep.subr.bf16.mxu0 0
        %6229 = vmatpush1.bf16.msra.mxu0 %v6207
        %6230 = vmatprep.subr.bf16.mxu0 0
        %6231 = vmatpush1.bf16.msra.mxu0 %v6206
        %6232 = vmatprep.subr.bf16.mxu0 0
        %6233 = vmatpush1.bf16.msra.mxu0 %v6205
        %6234 = vmatprep.subr.bf16.mxu0 0
        %6235 = vmatpush1.bf16.msra.mxu0 %v6204
        %6236 = vmatprep.subr.bf16.mxu0 0
        %6237 = vmatpush2.bf16.msra.mxu0 0
        %6238 = vmatprep.subr.bf16.mxu0 0
        %6239 = vmatpush2.bf16.msra.mxu0 0
        %6240 = vmatprep.subr.bf16.mxu0 0
        %6241 = vmatpush2.bf16.msra.mxu0 0
        %6242 = vmatprep.subr.bf16.mxu0 0
        %6243 = vmatpush2.bf16.msra.mxu0 0
        %6244 = vmatprep.subr.bf16.mxu0 0
        %6245 = vmatpush2.bf16.msra.mxu0 0
        %6246 = vmatprep.subr.bf16.mxu0 0
        %6247 = vmatpush2.bf16.msra.mxu0 0
        %6248 = vmatprep.subr.bf16.mxu0 0
        %6249 = vmatpush2.bf16.msra.mxu0 0
        %6250 = vmatprep.subr.bf16.mxu0 0
        %6251 = vmatpush2.bf16.msra.mxu0 0
        %6252 = vmatprep.mubr.bf16.mxu0 0
        %6253 = vmatmul.mubr.bf16.gmra.mxu0 %v6145
        %v6254 = vpop.f32.mrf.mxu0
        %v6255 = vadd.f32 %v6170, %v6254
        %v6256 = vpop.f32.mrf.mxu0
        %v6257 = vpop.f32.mrf.mxu0
        %v6258 = vadd.f32 %v6170, %v6257
        %v6259 = vpop.f32.mrf.mxu0
        %6260 = vmatprep.mubr.bf16.mxu0 0
        %6261 = vmatmul.mubr.bf16.gmra.mxu0 %v6146
        %v6262 = vpop.f32.mrf.mxu0
        %v6263 = vadd.f32 %v6170, %v6262
        %v6264 = vpop.f32.mrf.mxu0
        %v6265 = vpop.f32.mrf.mxu0
        %v6266 = vadd.f32 %v6170, %v6265
        %v6267 = vpop.f32.mrf.mxu0
        %6268 = vmatprep.mubr.bf16.mxu0 0
        %6269 = vmatmul.mubr.bf16.gmra.mxu0 %v6147
        %v6270 = vpop.f32.mrf.mxu0
        %v6271 = vadd.f32 %v6170, %v6270
        %v6272 = vpop.f32.mrf.mxu0
        %v6273 = vpop.f32.mrf.mxu0
        %v6274 = vadd.f32 %v6170, %v6273
        %v6275 = vpop.f32.mrf.mxu0
        %6276 = vmatprep.mubr.bf16.mxu0 0
        %6277 = vmatmul.mubr.bf16.gmra.mxu0 %v6148
        %v6278 = vpop.f32.mrf.mxu0
        %v6279 = vadd.f32 %v6170, %v6278
        %v6280 = vpop.f32.mrf.mxu0
        %v6281 = vpop.f32.mrf.mxu0
        %v6282 = vadd.f32 %v6170, %v6281
        %v6283 = vpop.f32.mrf.mxu0
        %6284 = vdwg.mxu0
        %v6285 = vadd.f32 %v6004, %v6255
        %v6286 = vadd.f32 %v6007, %v6258
        %v6287 = vadd.f32 %v6012, %v6263
        %v6288 = vadd.f32 %v6015, %v6266
        %v6289 = vadd.f32 %v6020, %v6271
        %v6290 = vadd.f32 %v6023, %v6274
        %v6291 = vadd.f32 %v6028, %v6279
        %v6292 = vadd.f32 %v6031, %v6282
        %v6293 = vmax.f32 %v6285, 0.0
        %v6294 = vmax.f32 %v6286, 0.0
        %v6295 = vmax.f32 %v6287, 0.0
        %v6296 = vmax.f32 %v6288, 0.0
        %v6297 = vmax.f32 %v6289, 0.0
        %v6298 = vmax.f32 %v6290, 0.0
        %v6299 = vmax.f32 %v6291, 0.0
        %v6300 = vmax.f32 %v6292, 0.0
        %v6301 = vpack.c.bf16 %v6294, %v6293
        %v6302 = vpack.c.bf16 %v6296, %v6295
        %v6303 = vpack.c.bf16 %v6298, %v6297
        %v6304 = vpack.c.bf16 %v6300, %v6299
        %v6309 = vunpack.c.l.b16 %v6301
        %v6310 = vunpack.c.h.b16 %v6301
        %v6311 = vunpack.c.l.b16 %v6302
        %v6312 = vunpack.c.h.b16 %v6302
        %v6313 = vunpack.c.l.b16 %v6303
        %v6314 = vunpack.c.h.b16 %v6303
        %v6315 = vunpack.c.l.b16 %v6304
        %v6316 = vunpack.c.h.b16 %v6304
        %v6317 = vpack.c.b16 %v6309, %v6309
        %v6318 = vpack.c.b16 %v6310, %v6310
        %v6319 = vpack.c.b16 %v6311, %v6311
        %v6320 = vpack.c.b16 %v6312, %v6312
        %v6321 = vpack.c.b16 %v6313, %v6313
        %v6322 = vpack.c.b16 %v6314, %v6314
        %v6323 = vpack.c.b16 %v6315, %v6315
        %v6324 = vpack.c.b16 %v6316, %v6316
        %6333 = vst [vmem:[%s408] sm:$0xf] %v6317
        %6334 = vst [vmem:[%s408 + $0x4] sm:$0xf] %v6318
        %6335 = vst [vmem:[%s408 + $0x8] sm:$0xf] %v6319
        %6336 = vst [vmem:[%s408 + $0xc] sm:$0xf] %v6320
        %6337 = vst [vmem:[%s408 + $0x10] sm:$0xf] %v6321
        %6338 = vst [vmem:[%s408 + $0x14] sm:$0xf] %v6322
        %6339 = vst [vmem:[%s408 + $0x18] sm:$0xf] %v6323
        %6340 = vst [vmem:[%s408 + $0x1c] sm:$0xf] %v6324
        %s6341 = sand.u32 %s230, 1
        %s6342 = scalar_lea.sflag [#allocation8], %s6341
        %s6343 = sand.u32 %s230, 1
        %s6344 = smul.addr %s6343, 32
        %s6345 = scalar_lea.vmem [#allocation15], %s6344
        // Predicated region
        $region77: #{tpu_custom_call.1} parent=55 // pred_check
          %p6346 = pneg %p240
        $region78: #{tpu_custom_call.1} parent=55 // pred_check_branch
          %6348 = sbr.rel (%p6346) target = $region80
        $region79: #{tpu_custom_call.1} parent=55 // pred_region
          %s6350 = ssub.s32 512, 512
          %6351 = vsyncadd %s6342, %s6350
          %s6352 = smul.addr %s28, 8
          %s6353 = smul.addr %s6352, 64
          %s6354 = scalar_lea.hbm %s9, %s6353
          %s6355 = sshll.u32 %s6345, 4
          %s6356 = int_to_ptr.vmem [resolvable:$true] %s6355
          %6361 = dma.vmem_to_hbm [thread:$0]  %s6356, 512, %s6354, %s6342, 64, 64, 4
        $region80: #{tpu_custom_call.1} parent=55 // pred_fallthru
          _
      $region56: #{tpu_custom_call.1} parent=5 // pred_fallthru
        _
      %p6362 = scmp.le.s32.totalorder 2, %s23
      // Predicated region
      $region81: #{tpu_custom_call.1} parent=5 // pred_check
        %p6363 = pneg %p6362
      $region82: #{tpu_custom_call.1} parent=5 // pred_check_branch
        %6365 = sbr.rel (%p6363) target = $region84
      $region83: #{tpu_custom_call.1} parent=5 // pred_region
        %s6366 = ssub.s32 %s23, 2
        // Predicated region
        $region85: #{tpu_custom_call.1} parent=83 // pred_check
          %p6367 = pneg %p246
        $region86: #{tpu_custom_call.1} parent=83 // pred_check_branch
          %6369 = sbr.rel (%p6367) target = $region88
        $region87: #{tpu_custom_call.1} parent=83 // pred_region
          %s6370 = sand.u32 %s231, 1
          %s6371 = scalar_lea.sflag [#allocation8], %s6370
          %s6372 = sand.u32 %s231, 1
          %s6373 = smul.addr %s6372, 32
          %s6374 = scalar_lea.vmem [#allocation15], %s6373
          %6375 = dma.done %s6371, 512
        $region88: #{tpu_custom_call.1} parent=83 // pred_fallthru
          _
      $region84: #{tpu_custom_call.1} parent=5 // pred_fallthru
        _
    $region6: #{tpu_custom_call.1} parent=1 // loop_footer
      %s27 = sadd.s32 1, %s23
    $region7: #{tpu_custom_call.1} parent=1 // loop_footer_branch
      %22 = sbr.rel target = $region3
    $region8: #{tpu_custom_call.1} parent=1 // loop_exit
      _
    %6376 = vsyncpa [#allocation7], 1
    %s6377 = scalar_lea.sflag [#allocation7], 1
    %6378 = vsyncpa %s6377, 1
    %6379 = vsyncpa [#allocation10], 1
    %6380 = vsyncpa [#allocation13], 1
    %6381 = vsyncpa [#allocation8], 1
    %s6382 = scalar_lea.sflag [#allocation8], 1
    %6383 = vsyncpa %s6382, 1

</llo_original>
